<compile_context>
chip_gen: v5e
topology: v5e:2x2
jax: 0.10.0
libtpu: 0.0.40
codegen_flags: <defaults>
</compile_context>

<pallas_src>
import functools

import jax
import jax.numpy as jnp
from jax.experimental import pallas as pl
from jax.experimental.pallas import tpu as pltpu


def _lstm_classifier_kernel(x_ref, wih_ref, b_ref, b1_ref, b2_ref,
                            whh_hbm, w1_hbm, w2_hbm,
                            out_ref,
                            gx_sc, whh_sc, w1_sc, w2_sc, sems,
                            *, seq_len, batch_pad, hidden_size):
    H = hidden_size
    BP = batch_pad

    # ---- Phase 0: kick off weight DMAs so they overlap Phase A / recurrence.
    cp_whh = pltpu.make_async_copy(whh_hbm, whh_sc, sems.at[0])
    cp_w1 = pltpu.make_async_copy(w1_hbm, w1_sc, sems.at[1])
    cp_w2 = pltpu.make_async_copy(w2_hbm, w2_sc, sems.at[2])
    cp_whh.start()
    cp_w1.start()
    cp_w2.start()

    # ---- Phase A: input projection for ALL timesteps (one tall MXU matmul),
    # with the LSTM bias folded in here (off the serial critical path).
    # x_ref: (T*BP, I) bf16, wih_ref: (I, 4H) bf16, b_ref: (1, 4H) f32.
    gx_sc[...] = (jnp.dot(x_ref[...], wih_ref[...],
                          preferred_element_type=jnp.float32)
                  + b_ref[...])

    # W_hh must be in VMEM before the recurrence starts.
    cp_whh.wait()

    # ---- Phase B: serial recurrence, fully unrolled, (h, c) carried in vregs.
    def step(t, carry):
        h, c = carry
        row = pl.multiple_of(t * BP, BP)          # 8-aligned sublane offset
        # whh_sc[...] is used as a streamed VMEM matmul operand per step
        # (avoids a ~512 KB value being live across the whole unrolled loop).
        gates = (gx_sc[pl.ds(row, BP), :]
                 + jnp.dot(h.astype(jnp.bfloat16), whh_sc[...],
                           preferred_element_type=jnp.float32))  # (BP,4H) f32
        # gate order (reordered on host): [i, f, o, g]
        sig = jax.nn.sigmoid(gates[:, :3 * H])     # one wide EUP call
        g_g = jnp.tanh(gates[:, 3 * H:])
        i_g = sig[:, 0 * H:1 * H]
        f_g = sig[:, 1 * H:2 * H]
        o_g = sig[:, 2 * H:3 * H]
        c_new = f_g * c + i_g * g_g
        h_new = o_g * jnp.tanh(c_new)
        return (h_new, c_new)

    h0 = jnp.zeros((BP, H), jnp.float32)
    c0 = jnp.zeros((BP, H), jnp.float32)
    h, _ = jax.lax.fori_loop(0, seq_len, step, (h0, c0), unroll=True)

    # Classifier weights must have landed by now (they had the whole
    # recurrence to arrive).
    cp_w1.wait()
    cp_w2.wait()

    # ---- Phase C: classifier on the last hidden state (lane-dense output:
    # W2/b2 were zero-padded to 128 columns on the host).
    z = jnp.dot(h.astype(jnp.bfloat16), w1_sc[...],
                preferred_element_type=jnp.float32) + b1_ref[...]
    z = jnp.maximum(z, 0.0)
    logits = jnp.dot(z.astype(jnp.bfloat16), w2_sc[...],
                     preferred_element_type=jnp.float32) + b2_ref[...]
    out_ref[...] = logits.astype(out_ref.dtype)


def rnn_forward(x_btd, params):
    """x_btd: (B, T, I) float32, batch_first like the PyTorch module."""
    B, T, I = x_btd.shape
    H = params["w_hh"].shape[0]
    G4 = params["w_hh"].shape[1]          # 4H
    MID = params["w1"].shape[1]
    C = params["w2"].shape[1]

    # Pad batch to the f32 sublane count (8) for full vreg/MXU-row fill and
    # aligned per-step slices into the precomputed-gates scratch.
    BP = max(8, ((B + 7) // 8) * 8)
    # Pad the class dimension to a full 128-lane width for unmasked stores.
    CP = max(128, ((C + 127) // 128) * 128)

    # time-major, batch-padded, flattened: (T, BP, I) -> (T*BP, I), bf16.
    x_tbi = jnp.transpose(x_btd, (1, 0, 2))
    x_pad = jnp.pad(x_tbi, ((0, 0), (0, BP - B), (0, 0)))
    x_flat = x_pad.reshape(T * BP, I).astype(jnp.bfloat16)

    # Reorder gate columns (done once, on host): PyTorch [i, f, g, o] ->
    # [i, f, o, g] so sigmoid gates are contiguous and tanh gate is last.
    def reorder(w):
        return jnp.concatenate(
            [w[..., :2 * H], w[..., 3 * H:4 * H], w[..., 2 * H:3 * H]], axis=-1)

    w_ih = reorder(params["w_ih"]).astype(jnp.bfloat16)
    w_hh = reorder(params["w_hh"]).astype(jnp.bfloat16)
    b = reorder(params["b"]).astype(jnp.float32)
    w1 = params["w1"].astype(jnp.bfloat16)
    b1 = params["b1"].astype(jnp.float32)
    # Zero-pad classifier output columns to CP (lane-dense out_spec).
    w2 = jnp.zeros((MID, CP), jnp.bfloat16).at[:, :C].set(
        params["w2"].astype(jnp.bfloat16))
    b2 = jnp.zeros((1, CP), jnp.float32).at[:, :C].set(
        params["b2"].astype(jnp.float32))

    kernel = functools.partial(_lstm_classifier_kernel,
                               seq_len=T, batch_pad=BP, hidden_size=H)

    out = pl.pallas_call(
        kernel,
        out_shape=jax.ShapeDtypeStruct((BP, CP), jnp.float32),
        grid_spec=pltpu.PrefetchScalarGridSpec(
            num_scalar_prefetch=0,
            grid=(1,),                                  # single program
            in_specs=[
                pl.BlockSpec((T * BP, I), lambda i: (0, 0)),   # x (flattened)
                pl.BlockSpec((I, G4), lambda i: (0, 0)),        # W_ih^T
                pl.BlockSpec((1, G4), lambda i: (0, 0)),        # b_ih + b_hh
                pl.BlockSpec((1, MID), lambda i: (0, 0)),       # b1
                pl.BlockSpec((1, CP), lambda i: (0, 0)),        # b2 (padded)
                pl.BlockSpec(memory_space=pl.ANY),              # W_hh^T (HBM)
                pl.BlockSpec(memory_space=pl.ANY),              # W1^T   (HBM)
                pl.BlockSpec(memory_space=pl.ANY),              # W2^T   (HBM)
            ],
            out_specs=pl.BlockSpec((BP, CP), lambda i: (0, 0)),
            scratch_shapes=[
                pltpu.VMEM((T * BP, G4), jnp.float32),  # X @ W_ih + b
                pltpu.VMEM((H, G4), jnp.bfloat16),      # W_hh landing buffer
                pltpu.VMEM((H, MID), jnp.bfloat16),     # W1 landing buffer
                pltpu.VMEM((MID, CP), jnp.bfloat16),    # W2 landing buffer
                pltpu.SemaphoreType.DMA((3,)),          # one sem per copy
            ],
        ),
        compiler_params=pltpu.CompilerParams(
            dimension_semantics=("arbitrary",),
            vmem_limit_bytes=32 << 20),
    )(x_flat, w_ih, b, b1, b2, w_hh, w1, w2)
    # Padded batch rows carry garbage (sigmoid(bias) etc.) — slicing to the
    # real batch / class counts is load-bearing.
    return out[:B, :C]


def init_params(key, input_size=128, hidden_size=256, mid=128, num_classes=10):
    ks = jax.random.split(key, 8)
    s_lstm = 1.0 / jnp.sqrt(hidden_size)
    s_l1 = 1.0 / jnp.sqrt(hidden_size)
    s_l2 = 1.0 / jnp.sqrt(mid)
    u = lambda k, shape, s: jax.random.uniform(k, shape, jnp.float32, -s, s)
    # stored pre-transposed (in_features, out_features), PyTorch gate order.
    return {
        "w_ih": u(ks[0], (input_size, 4 * hidden_size), s_lstm),
        "w_hh": u(ks[1], (hidden_size, 4 * hidden_size), s_lstm),
        "b":    u(ks[2], (1, 4 * hidden_size), s_lstm)
              + u(ks[3], (1, 4 * hidden_size), s_lstm),   # b_ih + b_hh
        "w1":   u(ks[4], (hidden_size, mid), s_l1),
        "b1":   u(ks[5], (1, mid), s_l1),
        "w2":   u(ks[6], (mid, num_classes), s_l2),
        "b2":   u(ks[7], (1, num_classes), s_l2),
    }


def rnn_forward_ref(x_btd, params):
    """Pure-JAX f32 reference (lax.scan LSTM), PyTorch gate order [i,f,g,o]."""
    B, T, I = x_btd.shape
    H = params["w_hh"].shape[1] // 4

    def step(carry, x_t):
        h, c = carry
        gates = x_t @ params["w_ih"] + h @ params["w_hh"] + params["b"]
        i = jax.nn.sigmoid(gates[:, 0 * H:1 * H])
        f = jax.nn.sigmoid(gates[:, 1 * H:2 * H])
        g = jnp.tanh(gates[:, 2 * H:3 * H])
        o = jax.nn.sigmoid(gates[:, 3 * H:4 * H])
        c = f * c + i * g
        h = o * jnp.tanh(c)
        return (h, c), None

    h0 = jnp.zeros((B, H), jnp.float32)
    (h, _), _ = jax.lax.scan(step, (h0, h0), jnp.transpose(x_btd, (1, 0, 2)))
    z = jnp.maximum(h @ params["w1"] + params["b1"], 0.0)
    return z @ params["w2"] + params["b2"]


if __name__ == "__main__":
    key = jax.random.PRNGKey(0)
    k_x, k_p = jax.random.split(key)

    B, T, I = 2, 8, 128
    params = init_params(k_p, input_size=I, hidden_size=256,
                         mid=128, num_classes=10)
    x = jax.random.normal(k_x, (B, T, I), jnp.float32)

    out = jax.block_until_ready(rnn_forward(x, params))
    ref = jax.block_until_ready(rnn_forward_ref(x, params))

    assert out.shape == (B, 10)
    # bf16 weights/activations in the kernel vs f32 reference -> looser tol.
    assert jnp.allclose(out, ref, atol=5e-2, rtol=5e-2), (
        f"max abs diff {jnp.max(jnp.abs(out - ref))}")
    print("KERNEL_OK")
</pallas_src>

<mosaic_0001>
module attributes {stable_mosaic.version = 11 : i64} {
  func.func @_lstm_classifier_kernel(%arg0: i32, %arg1: memref<64x128xbf16, #tpu.memory_space<vmem>>, %arg2: memref<128x1024xbf16, #tpu.memory_space<vmem>>, %arg3: memref<1x1024xf32, #tpu.memory_space<vmem>>, %arg4: memref<1x128xf32, #tpu.memory_space<vmem>>, %arg5: memref<1x128xf32, #tpu.memory_space<vmem>>, %arg6: memref<256x1024xbf16, #tpu.memory_space<any>>, %arg7: memref<256x128xbf16, #tpu.memory_space<any>>, %arg8: memref<128x128xbf16, #tpu.memory_space<any>>, %arg9: memref<8x128xf32, #tpu.memory_space<vmem>>, %arg10: memref<64x1024xf32, #tpu.memory_space<vmem>>, %arg11: memref<256x1024xbf16, #tpu.memory_space<vmem>>, %arg12: memref<256x128xbf16, #tpu.memory_space<vmem>>, %arg13: memref<128x128xbf16, #tpu.memory_space<vmem>>, %arg14: memref<3x!tpu.dma_semaphore, #tpu.memory_space<semaphore_mem>>) attributes {dimension_semantics = [#tpu.dimension_semantics<arbitrary>], iteration_bounds = array<i64: 1>, scalar_prefetch = 0 : i64, scratch_operands = 5 : i64, tpu.core_type = #tpu.core_type<tc>, window_params = [{pipeline_mode = #tpu.pipeline_mode<synchronous>, transform_indices = @transform_0, window_bounds = array<i64: 64, 128>}, {pipeline_mode = #tpu.pipeline_mode<synchronous>, transform_indices = @transform_1, window_bounds = array<i64: 128, 1024>}, {pipeline_mode = #tpu.pipeline_mode<synchronous>, transform_indices = @transform_2, window_bounds = array<i64: 1, 1024>}, {pipeline_mode = #tpu.pipeline_mode<synchronous>, transform_indices = @transform_3, window_bounds = array<i64: 1, 128>}, {pipeline_mode = #tpu.pipeline_mode<synchronous>, transform_indices = @transform_4, window_bounds = array<i64: 1, 128>}, {}, {}, {}, {pipeline_mode = #tpu.pipeline_mode<synchronous>, transform_indices = @transform_8, window_bounds = array<i64: 8, 128>}]} {
    %c0_i32 = arith.constant 0 : i32
    %0 = tpu.memref_slice %arg14[%c0_i32] : memref<3x!tpu.dma_semaphore, #tpu.memory_space<semaphore_mem>> -> memref<1x!tpu.dma_semaphore, #tpu.memory_space<semaphore_mem>>
    %1 = tpu.memref_squeeze %0 : memref<1x!tpu.dma_semaphore, #tpu.memory_space<semaphore_mem>> -> memref<!tpu.dma_semaphore, #tpu.memory_space<semaphore_mem>>
    tpu.enqueue_dma source(%arg6 : memref<256x1024xbf16, #tpu.memory_space<any>>) target(%arg11 : memref<256x1024xbf16, #tpu.memory_space<vmem>>) target_semaphore(%1 : memref<!tpu.dma_semaphore, #tpu.memory_space<semaphore_mem>>)
    %c1_i32 = arith.constant 1 : i32
    %2 = tpu.memref_slice %arg14[%c1_i32] : memref<3x!tpu.dma_semaphore, #tpu.memory_space<semaphore_mem>> -> memref<1x!tpu.dma_semaphore, #tpu.memory_space<semaphore_mem>>
    %3 = tpu.memref_squeeze %2 : memref<1x!tpu.dma_semaphore, #tpu.memory_space<semaphore_mem>> -> memref<!tpu.dma_semaphore, #tpu.memory_space<semaphore_mem>>
    tpu.enqueue_dma source(%arg7 : memref<256x128xbf16, #tpu.memory_space<any>>) target(%arg12 : memref<256x128xbf16, #tpu.memory_space<vmem>>) target_semaphore(%3 : memref<!tpu.dma_semaphore, #tpu.memory_space<semaphore_mem>>)
    %c2_i32 = arith.constant 2 : i32
    %4 = tpu.memref_slice %arg14[%c2_i32] : memref<3x!tpu.dma_semaphore, #tpu.memory_space<semaphore_mem>> -> memref<1x!tpu.dma_semaphore, #tpu.memory_space<semaphore_mem>>
    %5 = tpu.memref_squeeze %4 : memref<1x!tpu.dma_semaphore, #tpu.memory_space<semaphore_mem>> -> memref<!tpu.dma_semaphore, #tpu.memory_space<semaphore_mem>>
    tpu.enqueue_dma source(%arg8 : memref<128x128xbf16, #tpu.memory_space<any>>) target(%arg13 : memref<128x128xbf16, #tpu.memory_space<vmem>>) target_semaphore(%5 : memref<!tpu.dma_semaphore, #tpu.memory_space<semaphore_mem>>)
    %c0 = arith.constant 0 : index
    %c0_0 = arith.constant 0 : index
    %6 = vector.load %arg1[%c0, %c0_0] : memref<64x128xbf16, #tpu.memory_space<vmem>>, vector<64x128xbf16>
    %c0_1 = arith.constant 0 : index
    %c0_2 = arith.constant 0 : index
    %7 = vector.load %arg2[%c0_1, %c0_2] : memref<128x1024xbf16, #tpu.memory_space<vmem>>, vector<128x1024xbf16>
    %cst = arith.constant dense<0.000000e+00> : vector<64x1024xf32>
    %8 = tpu.matmul %6, %7, %cst {dimension_numbers = #tpu.dot_dimension_numbers<[1], [0], [0], [1], [0, 0, 1, 1], [], []>} : vector<64x128xbf16>, vector<128x1024xbf16>, vector<64x1024xf32> -> vector<64x1024xf32>
    %c0_3 = arith.constant 0 : index
    %c0_4 = arith.constant 0 : index
    %9 = vector.load %arg3[%c0_3, %c0_4] : memref<1x1024xf32, #tpu.memory_space<vmem>>, vector<1x1024xf32>
    %10 = vector.broadcast %9 : vector<1x1024xf32> to vector<64x1024xf32>
    %11 = arith.addf %8, %10 : vector<64x1024xf32>
    %c0_5 = arith.constant 0 : index
    %c0_6 = arith.constant 0 : index
    %12 = vector.load %arg10[%c0_5, %c0_6] : memref<64x1024xf32, #tpu.memory_space<vmem>>, vector<64x1024xf32>
    tpu.vector_store %arg10[%c0_5, %c0_6], %11 {strides = array<i32>} : memref<64x1024xf32, #tpu.memory_space<vmem>>, vector<64x1024xf32>,
    %c0_i32_7 = arith.constant 0 : i32
    %13 = tpu.memref_slice %arg14[%c0_i32_7] : memref<3x!tpu.dma_semaphore, #tpu.memory_space<semaphore_mem>> -> memref<1x!tpu.dma_semaphore, #tpu.memory_space<semaphore_mem>>
    %14 = tpu.memref_squeeze %13 : memref<1x!tpu.dma_semaphore, #tpu.memory_space<semaphore_mem>> -> memref<!tpu.dma_semaphore, #tpu.memory_space<semaphore_mem>>
    tpu.wait_dma2 semaphore(%14 : memref<!tpu.dma_semaphore, #tpu.memory_space<semaphore_mem>>) src(%arg6 : memref<256x1024xbf16, #tpu.memory_space<any>>) dst(%arg11 : memref<256x1024xbf16, #tpu.memory_space<vmem>>)
    %cst_8 = arith.constant 0.000000e+00 : f32
    %15 = vector.broadcast %cst_8 : f32 to vector<8x256xf32>
    %cst_9 = arith.constant 0.000000e+00 : f32
    %16 = vector.broadcast %cst_9 : f32 to vector<8x256xf32>
    %c0_i32_10 = arith.constant 0 : i32
    %c8_i32 = arith.constant 8 : i32
    %17 = arith.muli %c0_i32_10, %c8_i32 : i32
    %18 = tpu.assume_multiple %17, 8 : i32
    %19 = arith.index_cast %18 : i32 to index
    %c0_11 = arith.constant 0 : index
    %20 = vector.load %arg10[%19, %c0_11] : memref<64x1024xf32, #tpu.memory_space<vmem>>, vector<8x1024xf32>
    %21 = arith.truncf %15 : vector<8x256xf32> to vector<8x256xbf16>
    %c0_12 = arith.constant 0 : index
    %c0_13 = arith.constant 0 : index
    %22 = vector.load %arg11[%c0_12, %c0_13] : memref<256x1024xbf16, #tpu.memory_space<vmem>>, vector<256x1024xbf16>
    %cst_14 = arith.constant dense<0.000000e+00> : vector<8x1024xf32>
    %23 = tpu.matmul %21, %22, %cst_14 {dimension_numbers = #tpu.dot_dimension_numbers<[1], [0], [0], [1], [0, 0, 1, 1], [], []>} : vector<8x256xbf16>, vector<256x1024xbf16>, vector<8x1024xf32> -> vector<8x1024xf32>
    %24 = arith.addf %20, %23 : vector<8x1024xf32>
    %25 = vector.extract_strided_slice %24 {offsets = [0, 0], sizes = [8, 768], strides = [1, 1]} : vector<8x1024xf32> to vector<8x768xf32>
    %26 = arith.negf %25 : vector<8x768xf32>
    %27 = math.exp %26 : vector<8x768xf32>
    %cst_15 = arith.constant 1.000000e+00 : f32
    %28 = vector.broadcast %cst_15 : f32 to vector<8x768xf32>
    %29 = arith.addf %28, %27 : vector<8x768xf32>
    %30 = arith.divf %28, %29 : vector<8x768xf32>
    %31 = vector.extract_strided_slice %24 {offsets = [0, 768], sizes = [8, 256], strides = [1, 1]} : vector<8x1024xf32> to vector<8x256xf32>
    %32 = math.tanh %31 : vector<8x256xf32>
    %33 = vector.extract_strided_slice %30 {offsets = [0, 0], sizes = [8, 256], strides = [1, 1]} : vector<8x768xf32> to vector<8x256xf32>
    %34 = vector.extract_strided_slice %30 {offsets = [0, 256], sizes = [8, 256], strides = [1, 1]} : vector<8x768xf32> to vector<8x256xf32>
    %35 = vector.extract_strided_slice %30 {offsets = [0, 512], sizes = [8, 256], strides = [1, 1]} : vector<8x768xf32> to vector<8x256xf32>
    %36 = arith.mulf %34, %16 : vector<8x256xf32>
    %37 = arith.mulf %33, %32 : vector<8x256xf32>
    %38 = arith.addf %36, %37 : vector<8x256xf32>
    %39 = math.tanh %38 : vector<8x256xf32>
    %40 = arith.mulf %35, %39 : vector<8x256xf32>
    %c1_i32_16 = arith.constant 1 : i32
    %c8_i32_17 = arith.constant 8 : i32
    %41 = arith.muli %c1_i32_16, %c8_i32_17 : i32
    %42 = tpu.assume_multiple %41, 8 : i32
    %43 = arith.index_cast %42 : i32 to index
    %c0_18 = arith.constant 0 : index
    %44 = vector.load %arg10[%43, %c0_18] : memref<64x1024xf32, #tpu.memory_space<vmem>>, vector<8x1024xf32>
    %45 = arith.truncf %40 : vector<8x256xf32> to vector<8x256xbf16>
    %c0_19 = arith.constant 0 : index
    %c0_20 = arith.constant 0 : index
    %46 = vector.load %arg11[%c0_19, %c0_20] : memref<256x1024xbf16, #tpu.memory_space<vmem>>, vector<256x1024xbf16>
    %cst_21 = arith.constant dense<0.000000e+00> : vector<8x1024xf32>
    %47 = tpu.matmul %45, %46, %cst_21 {dimension_numbers = #tpu.dot_dimension_numbers<[1], [0], [0], [1], [0, 0, 1, 1], [], []>} : vector<8x256xbf16>, vector<256x1024xbf16>, vector<8x1024xf32> -> vector<8x1024xf32>
    %48 = arith.addf %44, %47 : vector<8x1024xf32>
    %49 = vector.extract_strided_slice %48 {offsets = [0, 0], sizes = [8, 768], strides = [1, 1]} : vector<8x1024xf32> to vector<8x768xf32>
    %50 = arith.negf %49 : vector<8x768xf32>
    %51 = math.exp %50 : vector<8x768xf32>
    %cst_22 = arith.constant 1.000000e+00 : f32
    %52 = vector.broadcast %cst_22 : f32 to vector<8x768xf32>
    %53 = arith.addf %52, %51 : vector<8x768xf32>
    %54 = arith.divf %52, %53 : vector<8x768xf32>
    %55 = vector.extract_strided_slice %48 {offsets = [0, 768], sizes = [8, 256], strides = [1, 1]} : vector<8x1024xf32> to vector<8x256xf32>
    %56 = math.tanh %55 : vector<8x256xf32>
    %57 = vector.extract_strided_slice %54 {offsets = [0, 0], sizes = [8, 256], strides = [1, 1]} : vector<8x768xf32> to vector<8x256xf32>
    %58 = vector.extract_strided_slice %54 {offsets = [0, 256], sizes = [8, 256], strides = [1, 1]} : vector<8x768xf32> to vector<8x256xf32>
    %59 = vector.extract_strided_slice %54 {offsets = [0, 512], sizes = [8, 256], strides = [1, 1]} : vector<8x768xf32> to vector<8x256xf32>
    %60 = arith.mulf %58, %38 : vector<8x256xf32>
    %61 = arith.mulf %57, %56 : vector<8x256xf32>
    %62 = arith.addf %60, %61 : vector<8x256xf32>
    %63 = math.tanh %62 : vector<8x256xf32>
    %64 = arith.mulf %59, %63 : vector<8x256xf32>
    %c2_i32_23 = arith.constant 2 : i32
    %c8_i32_24 = arith.constant 8 : i32
    %65 = arith.muli %c2_i32_23, %c8_i32_24 : i32
    %66 = tpu.assume_multiple %65, 8 : i32
    %67 = arith.index_cast %66 : i32 to index
    %c0_25 = arith.constant 0 : index
    %68 = vector.load %arg10[%67, %c0_25] : memref<64x1024xf32, #tpu.memory_space<vmem>>, vector<8x1024xf32>
    %69 = arith.truncf %64 : vector<8x256xf32> to vector<8x256xbf16>
    %c0_26 = arith.constant 0 : index
    %c0_27 = arith.constant 0 : index
    %70 = vector.load %arg11[%c0_26, %c0_27] : memref<256x1024xbf16, #tpu.memory_space<vmem>>, vector<256x1024xbf16>
    %cst_28 = arith.constant dense<0.000000e+00> : vector<8x1024xf32>
    %71 = tpu.matmul %69, %70, %cst_28 {dimension_numbers = #tpu.dot_dimension_numbers<[1], [0], [0], [1], [0, 0, 1, 1], [], []>} : vector<8x256xbf16>, vector<256x1024xbf16>, vector<8x1024xf32> -> vector<8x1024xf32>
    %72 = arith.addf %68, %71 : vector<8x1024xf32>
    %73 = vector.extract_strided_slice %72 {offsets = [0, 0], sizes = [8, 768], strides = [1, 1]} : vector<8x1024xf32> to vector<8x768xf32>
    %74 = arith.negf %73 : vector<8x768xf32>
    %75 = math.exp %74 : vector<8x768xf32>
    %cst_29 = arith.constant 1.000000e+00 : f32
    %76 = vector.broadcast %cst_29 : f32 to vector<8x768xf32>
    %77 = arith.addf %76, %75 : vector<8x768xf32>
    %78 = arith.divf %76, %77 : vector<8x768xf32>
    %79 = vector.extract_strided_slice %72 {offsets = [0, 768], sizes = [8, 256], strides = [1, 1]} : vector<8x1024xf32> to vector<8x256xf32>
    %80 = math.tanh %79 : vector<8x256xf32>
    %81 = vector.extract_strided_slice %78 {offsets = [0, 0], sizes = [8, 256], strides = [1, 1]} : vector<8x768xf32> to vector<8x256xf32>
    %82 = vector.extract_strided_slice %78 {offsets = [0, 256], sizes = [8, 256], strides = [1, 1]} : vector<8x768xf32> to vector<8x256xf32>
    %83 = vector.extract_strided_slice %78 {offsets = [0, 512], sizes = [8, 256], strides = [1, 1]} : vector<8x768xf32> to vector<8x256xf32>
    %84 = arith.mulf %82, %62 : vector<8x256xf32>
    %85 = arith.mulf %81, %80 : vector<8x256xf32>
    %86 = arith.addf %84, %85 : vector<8x256xf32>
    %87 = math.tanh %86 : vector<8x256xf32>
    %88 = arith.mulf %83, %87 : vector<8x256xf32>
    %c3_i32 = arith.constant 3 : i32
    %c8_i32_30 = arith.constant 8 : i32
    %89 = arith.muli %c3_i32, %c8_i32_30 : i32
    %90 = tpu.assume_multiple %89, 8 : i32
    %91 = arith.index_cast %90 : i32 to index
    %c0_31 = arith.constant 0 : index
    %92 = vector.load %arg10[%91, %c0_31] : memref<64x1024xf32, #tpu.memory_space<vmem>>, vector<8x1024xf32>
    %93 = arith.truncf %88 : vector<8x256xf32> to vector<8x256xbf16>
    %c0_32 = arith.constant 0 : index
    %c0_33 = arith.constant 0 : index
    %94 = vector.load %arg11[%c0_32, %c0_33] : memref<256x1024xbf16, #tpu.memory_space<vmem>>, vector<256x1024xbf16>
    %cst_34 = arith.constant dense<0.000000e+00> : vector<8x1024xf32>
    %95 = tpu.matmul %93, %94, %cst_34 {dimension_numbers = #tpu.dot_dimension_numbers<[1], [0], [0], [1], [0, 0, 1, 1], [], []>} : vector<8x256xbf16>, vector<256x1024xbf16>, vector<8x1024xf32> -> vector<8x1024xf32>
    %96 = arith.addf %92, %95 : vector<8x1024xf32>
    %97 = vector.extract_strided_slice %96 {offsets = [0, 0], sizes = [8, 768], strides = [1, 1]} : vector<8x1024xf32> to vector<8x768xf32>
    %98 = arith.negf %97 : vector<8x768xf32>
    %99 = math.exp %98 : vector<8x768xf32>
    %cst_35 = arith.constant 1.000000e+00 : f32
    %100 = vector.broadcast %cst_35 : f32 to vector<8x768xf32>
    %101 = arith.addf %100, %99 : vector<8x768xf32>
    %102 = arith.divf %100, %101 : vector<8x768xf32>
    %103 = vector.extract_strided_slice %96 {offsets = [0, 768], sizes = [8, 256], strides = [1, 1]} : vector<8x1024xf32> to vector<8x256xf32>
    %104 = math.tanh %103 : vector<8x256xf32>
    %105 = vector.extract_strided_slice %102 {offsets = [0, 0], sizes = [8, 256], strides = [1, 1]} : vector<8x768xf32> to vector<8x256xf32>
    %106 = vector.extract_strided_slice %102 {offsets = [0, 256], sizes = [8, 256], strides = [1, 1]} : vector<8x768xf32> to vector<8x256xf32>
    %107 = vector.extract_strided_slice %102 {offsets = [0, 512], sizes = [8, 256], strides = [1, 1]} : vector<8x768xf32> to vector<8x256xf32>
    %108 = arith.mulf %106, %86 : vector<8x256xf32>
    %109 = arith.mulf %105, %104 : vector<8x256xf32>
    %110 = arith.addf %108, %109 : vector<8x256xf32>
    %111 = math.tanh %110 : vector<8x256xf32>
    %112 = arith.mulf %107, %111 : vector<8x256xf32>
    %c4_i32 = arith.constant 4 : i32
    %c8_i32_36 = arith.constant 8 : i32
    %113 = arith.muli %c4_i32, %c8_i32_36 : i32
    %114 = tpu.assume_multiple %113, 8 : i32
    %115 = arith.index_cast %114 : i32 to index
    %c0_37 = arith.constant 0 : index
    %116 = vector.load %arg10[%115, %c0_37] : memref<64x1024xf32, #tpu.memory_space<vmem>>, vector<8x1024xf32>
    %117 = arith.truncf %112 : vector<8x256xf32> to vector<8x256xbf16>
    %c0_38 = arith.constant 0 : index
    %c0_39 = arith.constant 0 : index
    %118 = vector.load %arg11[%c0_38, %c0_39] : memref<256x1024xbf16, #tpu.memory_space<vmem>>, vector<256x1024xbf16>
    %cst_40 = arith.constant dense<0.000000e+00> : vector<8x1024xf32>
    %119 = tpu.matmul %117, %118, %cst_40 {dimension_numbers = #tpu.dot_dimension_numbers<[1], [0], [0], [1], [0, 0, 1, 1], [], []>} : vector<8x256xbf16>, vector<256x1024xbf16>, vector<8x1024xf32> -> vector<8x1024xf32>
    %120 = arith.addf %116, %119 : vector<8x1024xf32>
    %121 = vector.extract_strided_slice %120 {offsets = [0, 0], sizes = [8, 768], strides = [1, 1]} : vector<8x1024xf32> to vector<8x768xf32>
    %122 = arith.negf %121 : vector<8x768xf32>
    %123 = math.exp %122 : vector<8x768xf32>
    %cst_41 = arith.constant 1.000000e+00 : f32
    %124 = vector.broadcast %cst_41 : f32 to vector<8x768xf32>
    %125 = arith.addf %124, %123 : vector<8x768xf32>
    %126 = arith.divf %124, %125 : vector<8x768xf32>
    %127 = vector.extract_strided_slice %120 {offsets = [0, 768], sizes = [8, 256], strides = [1, 1]} : vector<8x1024xf32> to vector<8x256xf32>
    %128 = math.tanh %127 : vector<8x256xf32>
    %129 = vector.extract_strided_slice %126 {offsets = [0, 0], sizes = [8, 256], strides = [1, 1]} : vector<8x768xf32> to vector<8x256xf32>
    %130 = vector.extract_strided_slice %126 {offsets = [0, 256], sizes = [8, 256], strides = [1, 1]} : vector<8x768xf32> to vector<8x256xf32>
    %131 = vector.extract_strided_slice %126 {offsets = [0, 512], sizes = [8, 256], strides = [1, 1]} : vector<8x768xf32> to vector<8x256xf32>
    %132 = arith.mulf %130, %110 : vector<8x256xf32>
    %133 = arith.mulf %129, %128 : vector<8x256xf32>
    %134 = arith.addf %132, %133 : vector<8x256xf32>
    %135 = math.tanh %134 : vector<8x256xf32>
    %136 = arith.mulf %131, %135 : vector<8x256xf32>
    %c5_i32 = arith.constant 5 : i32
    %c8_i32_42 = arith.constant 8 : i32
    %137 = arith.muli %c5_i32, %c8_i32_42 : i32
    %138 = tpu.assume_multiple %137, 8 : i32
    %139 = arith.index_cast %138 : i32 to index
    %c0_43 = arith.constant 0 : index
    %140 = vector.load %arg10[%139, %c0_43] : memref<64x1024xf32, #tpu.memory_space<vmem>>, vector<8x1024xf32>
    %141 = arith.truncf %136 : vector<8x256xf32> to vector<8x256xbf16>
    %c0_44 = arith.constant 0 : index
    %c0_45 = arith.constant 0 : index
    %142 = vector.load %arg11[%c0_44, %c0_45] : memref<256x1024xbf16, #tpu.memory_space<vmem>>, vector<256x1024xbf16>
    %cst_46 = arith.constant dense<0.000000e+00> : vector<8x1024xf32>
    %143 = tpu.matmul %141, %142, %cst_46 {dimension_numbers = #tpu.dot_dimension_numbers<[1], [0], [0], [1], [0, 0, 1, 1], [], []>} : vector<8x256xbf16>, vector<256x1024xbf16>, vector<8x1024xf32> -> vector<8x1024xf32>
    %144 = arith.addf %140, %143 : vector<8x1024xf32>
    %145 = vector.extract_strided_slice %144 {offsets = [0, 0], sizes = [8, 768], strides = [1, 1]} : vector<8x1024xf32> to vector<8x768xf32>
    %146 = arith.negf %145 : vector<8x768xf32>
    %147 = math.exp %146 : vector<8x768xf32>
    %cst_47 = arith.constant 1.000000e+00 : f32
    %148 = vector.broadcast %cst_47 : f32 to vector<8x768xf32>
    %149 = arith.addf %148, %147 : vector<8x768xf32>
    %150 = arith.divf %148, %149 : vector<8x768xf32>
    %151 = vector.extract_strided_slice %144 {offsets = [0, 768], sizes = [8, 256], strides = [1, 1]} : vector<8x1024xf32> to vector<8x256xf32>
    %152 = math.tanh %151 : vector<8x256xf32>
    %153 = vector.extract_strided_slice %150 {offsets = [0, 0], sizes = [8, 256], strides = [1, 1]} : vector<8x768xf32> to vector<8x256xf32>
    %154 = vector.extract_strided_slice %150 {offsets = [0, 256], sizes = [8, 256], strides = [1, 1]} : vector<8x768xf32> to vector<8x256xf32>
    %155 = vector.extract_strided_slice %150 {offsets = [0, 512], sizes = [8, 256], strides = [1, 1]} : vector<8x768xf32> to vector<8x256xf32>
    %156 = arith.mulf %154, %134 : vector<8x256xf32>
    %157 = arith.mulf %153, %152 : vector<8x256xf32>
    %158 = arith.addf %156, %157 : vector<8x256xf32>
    %159 = math.tanh %158 : vector<8x256xf32>
    %160 = arith.mulf %155, %159 : vector<8x256xf32>
    %c6_i32 = arith.constant 6 : i32
    %c8_i32_48 = arith.constant 8 : i32
    %161 = arith.muli %c6_i32, %c8_i32_48 : i32
    %162 = tpu.assume_multiple %161, 8 : i32
    %163 = arith.index_cast %162 : i32 to index
    %c0_49 = arith.constant 0 : index
    %164 = vector.load %arg10[%163, %c0_49] : memref<64x1024xf32, #tpu.memory_space<vmem>>, vector<8x1024xf32>
    %165 = arith.truncf %160 : vector<8x256xf32> to vector<8x256xbf16>
    %c0_50 = arith.constant 0 : index
    %c0_51 = arith.constant 0 : index
    %166 = vector.load %arg11[%c0_50, %c0_51] : memref<256x1024xbf16, #tpu.memory_space<vmem>>, vector<256x1024xbf16>
    %cst_52 = arith.constant dense<0.000000e+00> : vector<8x1024xf32>
    %167 = tpu.matmul %165, %166, %cst_52 {dimension_numbers = #tpu.dot_dimension_numbers<[1], [0], [0], [1], [0, 0, 1, 1], [], []>} : vector<8x256xbf16>, vector<256x1024xbf16>, vector<8x1024xf32> -> vector<8x1024xf32>
    %168 = arith.addf %164, %167 : vector<8x1024xf32>
    %169 = vector.extract_strided_slice %168 {offsets = [0, 0], sizes = [8, 768], strides = [1, 1]} : vector<8x1024xf32> to vector<8x768xf32>
    %170 = arith.negf %169 : vector<8x768xf32>
    %171 = math.exp %170 : vector<8x768xf32>
    %cst_53 = arith.constant 1.000000e+00 : f32
    %172 = vector.broadcast %cst_53 : f32 to vector<8x768xf32>
    %173 = arith.addf %172, %171 : vector<8x768xf32>
    %174 = arith.divf %172, %173 : vector<8x768xf32>
    %175 = vector.extract_strided_slice %168 {offsets = [0, 768], sizes = [8, 256], strides = [1, 1]} : vector<8x1024xf32> to vector<8x256xf32>
    %176 = math.tanh %175 : vector<8x256xf32>
    %177 = vector.extract_strided_slice %174 {offsets = [0, 0], sizes = [8, 256], strides = [1, 1]} : vector<8x768xf32> to vector<8x256xf32>
    %178 = vector.extract_strided_slice %174 {offsets = [0, 256], sizes = [8, 256], strides = [1, 1]} : vector<8x768xf32> to vector<8x256xf32>
    %179 = vector.extract_strided_slice %174 {offsets = [0, 512], sizes = [8, 256], strides = [1, 1]} : vector<8x768xf32> to vector<8x256xf32>
    %180 = arith.mulf %178, %158 : vector<8x256xf32>
    %181 = arith.mulf %177, %176 : vector<8x256xf32>
    %182 = arith.addf %180, %181 : vector<8x256xf32>
    %183 = math.tanh %182 : vector<8x256xf32>
    %184 = arith.mulf %179, %183 : vector<8x256xf32>
    %c7_i32 = arith.constant 7 : i32
    %c8_i32_54 = arith.constant 8 : i32
    %185 = arith.muli %c7_i32, %c8_i32_54 : i32
    %186 = tpu.assume_multiple %185, 8 : i32
    %187 = arith.index_cast %186 : i32 to index
    %c0_55 = arith.constant 0 : index
    %188 = vector.load %arg10[%187, %c0_55] : memref<64x1024xf32, #tpu.memory_space<vmem>>, vector<8x1024xf32>
    %189 = arith.truncf %184 : vector<8x256xf32> to vector<8x256xbf16>
    %c0_56 = arith.constant 0 : index
    %c0_57 = arith.constant 0 : index
    %190 = vector.load %arg11[%c0_56, %c0_57] : memref<256x1024xbf16, #tpu.memory_space<vmem>>, vector<256x1024xbf16>
    %cst_58 = arith.constant dense<0.000000e+00> : vector<8x1024xf32>
    %191 = tpu.matmul %189, %190, %cst_58 {dimension_numbers = #tpu.dot_dimension_numbers<[1], [0], [0], [1], [0, 0, 1, 1], [], []>} : vector<8x256xbf16>, vector<256x1024xbf16>, vector<8x1024xf32> -> vector<8x1024xf32>
    %192 = arith.addf %188, %191 : vector<8x1024xf32>
    %193 = vector.extract_strided_slice %192 {offsets = [0, 0], sizes = [8, 768], strides = [1, 1]} : vector<8x1024xf32> to vector<8x768xf32>
    %194 = arith.negf %193 : vector<8x768xf32>
    %195 = math.exp %194 : vector<8x768xf32>
    %cst_59 = arith.constant 1.000000e+00 : f32
    %196 = vector.broadcast %cst_59 : f32 to vector<8x768xf32>
    %197 = arith.addf %196, %195 : vector<8x768xf32>
    %198 = arith.divf %196, %197 : vector<8x768xf32>
    %199 = vector.extract_strided_slice %192 {offsets = [0, 768], sizes = [8, 256], strides = [1, 1]} : vector<8x1024xf32> to vector<8x256xf32>
    %200 = math.tanh %199 : vector<8x256xf32>
    %201 = vector.extract_strided_slice %198 {offsets = [0, 0], sizes = [8, 256], strides = [1, 1]} : vector<8x768xf32> to vector<8x256xf32>
    %202 = vector.extract_strided_slice %198 {offsets = [0, 256], sizes = [8, 256], strides = [1, 1]} : vector<8x768xf32> to vector<8x256xf32>
    %203 = vector.extract_strided_slice %198 {offsets = [0, 512], sizes = [8, 256], strides = [1, 1]} : vector<8x768xf32> to vector<8x256xf32>
    %204 = arith.mulf %202, %182 : vector<8x256xf32>
    %205 = arith.mulf %201, %200 : vector<8x256xf32>
    %206 = arith.addf %204, %205 : vector<8x256xf32>
    %207 = math.tanh %206 : vector<8x256xf32>
    %208 = arith.mulf %203, %207 : vector<8x256xf32>
    %c8_i32_60 = arith.constant 8 : i32
    %c1_i32_61 = arith.constant 1 : i32
    %209 = tpu.memref_slice %arg14[%c1_i32_61] : memref<3x!tpu.dma_semaphore, #tpu.memory_space<semaphore_mem>> -> memref<1x!tpu.dma_semaphore, #tpu.memory_space<semaphore_mem>>
    %210 = tpu.memref_squeeze %209 : memref<1x!tpu.dma_semaphore, #tpu.memory_space<semaphore_mem>> -> memref<!tpu.dma_semaphore, #tpu.memory_space<semaphore_mem>>
    tpu.wait_dma2 semaphore(%210 : memref<!tpu.dma_semaphore, #tpu.memory_space<semaphore_mem>>) src(%arg7 : memref<256x128xbf16, #tpu.memory_space<any>>) dst(%arg12 : memref<256x128xbf16, #tpu.memory_space<vmem>>)
    %c2_i32_62 = arith.constant 2 : i32
    %211 = tpu.memref_slice %arg14[%c2_i32_62] : memref<3x!tpu.dma_semaphore, #tpu.memory_space<semaphore_mem>> -> memref<1x!tpu.dma_semaphore, #tpu.memory_space<semaphore_mem>>
    %212 = tpu.memref_squeeze %211 : memref<1x!tpu.dma_semaphore, #tpu.memory_space<semaphore_mem>> -> memref<!tpu.dma_semaphore, #tpu.memory_space<semaphore_mem>>
    tpu.wait_dma2 semaphore(%212 : memref<!tpu.dma_semaphore, #tpu.memory_space<semaphore_mem>>) src(%arg8 : memref<128x128xbf16, #tpu.memory_space<any>>) dst(%arg13 : memref<128x128xbf16, #tpu.memory_space<vmem>>)
    %213 = arith.truncf %208 : vector<8x256xf32> to vector<8x256xbf16>
    %c0_63 = arith.constant 0 : index
    %c0_64 = arith.constant 0 : index
    %214 = vector.load %arg12[%c0_63, %c0_64] : memref<256x128xbf16, #tpu.memory_space<vmem>>, vector<256x128xbf16>
    %cst_65 = arith.constant dense<0.000000e+00> : vector<8x128xf32>
    %215 = tpu.matmul %213, %214, %cst_65 {dimension_numbers = #tpu.dot_dimension_numbers<[1], [0], [0], [1], [0, 0, 1, 1], [], []>} : vector<8x256xbf16>, vector<256x128xbf16>, vector<8x128xf32> -> vector<8x128xf32>
    %c0_66 = arith.constant 0 : index
    %c0_67 = arith.constant 0 : index
    %216 = vector.load %arg4[%c0_66, %c0_67] : memref<1x128xf32, #tpu.memory_space<vmem>>, vector<1x128xf32>
    %217 = vector.broadcast %216 : vector<1x128xf32> to vector<8x128xf32>
    %218 = arith.addf %215, %217 : vector<8x128xf32>
    %cst_68 = arith.constant 0.000000e+00 : f32
    %219 = vector.broadcast %cst_68 : f32 to vector<8x128xf32>
    %220 = arith.maximumf %218, %219 : vector<8x128xf32>
    %221 = arith.truncf %220 : vector<8x128xf32> to vector<8x128xbf16>
    %c0_69 = arith.constant 0 : index
    %c0_70 = arith.constant 0 : index
    %222 = vector.load %arg13[%c0_69, %c0_70] : memref<128x128xbf16, #tpu.memory_space<vmem>>, vector<128x128xbf16>
    %cst_71 = arith.constant dense<0.000000e+00> : vector<8x128xf32>
    %223 = tpu.matmul %221, %222, %cst_71 {dimension_numbers = #tpu.dot_dimension_numbers<[1], [0], [0], [1], [0, 0, 1, 1], [], []>} : vector<8x128xbf16>, vector<128x128xbf16>, vector<8x128xf32> -> vector<8x128xf32>
    %c0_72 = arith.constant 0 : index
    %c0_73 = arith.constant 0 : index
    %224 = vector.load %arg5[%c0_72, %c0_73] : memref<1x128xf32, #tpu.memory_space<vmem>>, vector<1x128xf32>
    %225 = vector.broadcast %224 : vector<1x128xf32> to vector<8x128xf32>
    %226 = arith.addf %223, %225 : vector<8x128xf32>
    %c0_74 = arith.constant 0 : index
    %c0_75 = arith.constant 0 : index
    %227 = vector.load %arg9[%c0_74, %c0_75] : memref<8x128xf32, #tpu.memory_space<vmem>>, vector<8x128xf32>
    tpu.vector_store %arg9[%c0_74, %c0_75], %226 {strides = array<i32>} : memref<8x128xf32, #tpu.memory_space<vmem>>, vector<8x128xf32>,
    return
  }
  func.func @transform_0(%arg0: i32) -> (i32, i32) {
    %c0_i32 = arith.constant 0 : i32
    %c0_i32_0 = arith.constant 0 : i32
    %c0_i32_1 = arith.constant 0 : i32
    return %c0_i32, %c0_i32_0 : i32, i32
  }
  func.func @transform_1(%arg0: i32) -> (i32, i32) {
    %c0_i32 = arith.constant 0 : i32
    %c0_i32_0 = arith.constant 0 : i32
    %c0_i32_1 = arith.constant 0 : i32
    return %c0_i32, %c0_i32_0 : i32, i32
  }
  func.func @transform_2(%arg0: i32) -> (i32, i32) {
    %c0_i32 = arith.constant 0 : i32
    %c0_i32_0 = arith.constant 0 : i32
    %c0_i32_1 = arith.constant 0 : i32
    return %c0_i32, %c0_i32_0 : i32, i32
  }
  func.func @transform_3(%arg0: i32) -> (i32, i32) {
    %c0_i32 = arith.constant 0 : i32
    %c0_i32_0 = arith.constant 0 : i32
    %c0_i32_1 = arith.constant 0 : i32
    return %c0_i32, %c0_i32_0 : i32, i32
  }
  func.func @transform_4(%arg0: i32) -> (i32, i32) {
    %c0_i32 = arith.constant 0 : i32
    %c0_i32_0 = arith.constant 0 : i32
    %c0_i32_1 = arith.constant 0 : i32
    return %c0_i32, %c0_i32_0 : i32, i32
  }
  func.func @transform_8(%arg0: i32) -> (i32, i32) {
    %c0_i32 = arith.constant 0 : i32
    %c0_i32_0 = arith.constant 0 : i32
    %c0_i32_1 = arith.constant 0 : i32
    return %c0_i32, %c0_i32_0 : i32, i32
  }
}

</mosaic_0001>

<llo_original>
// kernel: tpu_custom_call.1
$region0: #{tpu_custom_call.1}
  #allocation0 [shape = 'u32[]', space=smem, size = 0x4, offset = 0x4, fixed_abs, tag = 'smem constant byte address 0x4 - core index']
  #allocation1 [shape = 'u32[72,128]{1,0:T(1,128)}', space=vmem, size = 0x9000, scoped, tag = 'internal scratch']
  #allocation2 [shape = 'f32[64,1024]{1,0:T(8,128)}', space=vmem, size = 0x40000, scoped, tag = 'scratch operand']
  #allocation3 [shape = 'bf16[256,1024]{1,0:T(8,128)(2,1)}', space=vmem, size = 0x80000, scoped, tag = 'scratch operand']
  #allocation4 [shape = 'bf16[256,128]{1,0:T(8,128)(2,1)}', space=vmem, size = 0x10000, scoped, tag = 'scratch operand']
  #allocation5 [shape = 'bf16[128,128]{1,0:T(8,128)(2,1)}', space=vmem, size = 0x8000, scoped, tag = 'scratch operand']
  #allocation6 [shape = 's32[3]{0}', space=sflag, size = 0xc, scoped, tag = 'scratch operand']
  #allocation14 [shape = 's32[]', space=sflag, size = 0x4, offset = 0, fixed_abs, tag = 'sflag constant byte address 0x0 - dummy sync flag']
  #allocation15 [shape = 's32[]', space=sflag, size = 0x4, offset = 0, fixed_abs, tag = 'sflag constant byte address 0x0 - dummy sync flag']
  #allocation16 [shape = 'u32[]', space=smem, size = 0x4, offset = 0x44, fixed_abs, tag = 'smem constant byte address 0x44 - assertion arg 0']
  #allocation17 [shape = 'u32[]', space=smem, size = 0x4, offset = 0x48, fixed_abs, tag = 'smem constant byte address 0x48 - assertion arg 1']
  #allocation18 [shape = 's32[]', space=sflag, size = 0x4, offset = 0, fixed_abs, tag = 'sflag constant byte address 0x0 - dummy sync flag']
  #allocation19 [shape = 's32[]', space=sflag, size = 0x4, offset = 0, fixed_abs, tag = 'sflag constant byte address 0x0 - dummy sync flag']
  #allocation20 [shape = 's32[]', space=sflag, size = 0x4, offset = 0, fixed_abs, tag = 'sflag constant byte address 0x0 - dummy sync flag']
  #allocation21 [shape = 's32[]', space=sflag, size = 0x4, offset = 0, fixed_abs, tag = 'sflag constant byte address 0x0 - dummy sync flag']
  %s0 = inlined_call_operand.hbm [shape: bf16[64,128], index: 0, kind: input, shape index: {}]
  %s1 = inlined_call_operand.hbm [shape: bf16[128,1024], index: 1, kind: input, shape index: {}]
  %s2 = inlined_call_operand.hbm [shape: f32[1,1024], index: 2, kind: input, shape index: {}]
  %s3 = inlined_call_operand.vmem [shape: f32[1,128], index: 3, kind: input, shape index: {}]
  %s4 = inlined_call_operand.vmem [shape: f32[1,128], index: 4, kind: input, shape index: {}]
  %s5 = inlined_call_operand.hbm [shape: bf16[256,1024], index: 5, kind: input, shape index: {}]
  %s6 = inlined_call_operand.hbm [shape: bf16[256,128], index: 6, kind: input, shape index: {}]
  %s7 = inlined_call_operand.hbm [shape: bf16[128,128], index: 7, kind: input, shape index: {}]
  %s8 = inlined_call_operand.hbm [shape: f32[8,128], index: 8, kind: output, shape index: {}]
  %s9 = sld [smem:[#allocation0]]
  $region54: #{tpu_custom_call.1} parent=0
    _
  %s11 = ssub.s32 1, %s9
  %s12 = scalar_select 0, %s11, %s9
  $region1: #{tpu_custom_call.1} parent=0
    #allocation7 [shape = 'u8[16384]{0}', space=vmem, size = 0x4000, scoped, tag = 'input window, operand 0, single buffered']
    #allocation8 [shape = 's32[1]{0}', space=sflag, size = 0x4, scoped, tag = 'scoped memory for tpu_custom_call.1']
    #allocation9 [shape = 's32[1]{0}', space=sflag, size = 0x4, scoped, tag = 'scoped memory for tpu_custom_call.1']
    #allocation10 [shape = 'u8[262144]{0}', space=vmem, size = 0x40000, scoped, tag = 'input window, operand 1, single buffered']
    #allocation11 [shape = 's32[1]{0}', space=sflag, size = 0x4, scoped, tag = 'scoped memory for tpu_custom_call.1']
    #allocation12 [shape = 'u8[4096]{0}', space=vmem, size = 0x1000, scoped, tag = 'input window, operand 2, single buffered']
    #allocation13 [shape = 'u8[4096]{0}', space=vmem, size = 0x1000, scoped, tag = 'output window, operand 0, single buffered']
    %13 = vsyncpa [#allocation8], 0
    %14 = vsyncpa [#allocation11], 0
    %15 = vsyncpa [#allocation9], 0
    // Predicated region
    $region2: #{tpu_custom_call.1} parent=1 // pred_check
      _
    $region3: #{tpu_custom_call.1} parent=1 // pred_check_branch
      %17 = sbr.rel (0) target = $region5
    $region4: #{tpu_custom_call.1} parent=1 // pred_region
      %19 = vsyncadd [#allocation8], 0
      %s20 = sshll.u32 %s0, 4
      %s21 = int_to_ptr.hbm [resolvable:$true] %s20
      %s22 = sshll.u32 [#allocation7], 4
      %s23 = int_to_ptr.vmem [resolvable:$true] %s22
      %28 = dma.hbm_to_vmem [thread:$0]  %s21, 512, %s23, [#allocation8], 64, 64, 4
    $region5: #{tpu_custom_call.1} parent=1 // pred_fallthru
      _
    // Predicated region
    $region6: #{tpu_custom_call.1} parent=1 // pred_check
      _
    $region7: #{tpu_custom_call.1} parent=1 // pred_check_branch
      %30 = sbr.rel (0) target = $region9
    $region8: #{tpu_custom_call.1} parent=1 // pred_region
      %32 = vsyncadd [#allocation11], 0
      %s33 = sshll.u32 %s1, 4
      %s34 = int_to_ptr.hbm [resolvable:$true] %s33
      %s35 = sshll.u32 [#allocation10], 4
      %s36 = int_to_ptr.vmem [resolvable:$true] %s35
      %41 = dma.hbm_to_vmem [thread:$0]  %s34, 8192, %s36, [#allocation11], 512, 512, 32
    $region9: #{tpu_custom_call.1} parent=1 // pred_fallthru
      _
    // Predicated region
    $region10: #{tpu_custom_call.1} parent=1 // pred_check
      _
    $region11: #{tpu_custom_call.1} parent=1 // pred_check_branch
      %43 = sbr.rel (0) target = $region13
    $region12: #{tpu_custom_call.1} parent=1 // pred_region
      %45 = vsyncadd [#allocation11], 0
      %s47 = sshll.u32 %s2, 4
      %s48 = int_to_ptr.hbm [resolvable:$true] %s47
      %s49 = sshll.u32 [#allocation12], 4
      %s50 = int_to_ptr.vmem [resolvable:$true] %s49
      %52 = dma.hbm_to_vmem [thread:$0]  %s48, 128, %s50, [#allocation11]
    $region13: #{tpu_custom_call.1} parent=1 // pred_fallthru
      _
    // Predicated region
    $region14: #{tpu_custom_call.1} parent=1 // pred_check
      _
    $region15: #{tpu_custom_call.1} parent=1 // pred_check_branch
      %54 = sbr.rel (0) target = $region17
    $region16: #{tpu_custom_call.1} parent=1 // pred_region
      _
    $region17: #{tpu_custom_call.1} parent=1 // pred_fallthru
      _
    // Predicated region
    $region18: #{tpu_custom_call.1} parent=1 // pred_check
      _
    $region19: #{tpu_custom_call.1} parent=1 // pred_check_branch
      %56 = sbr.rel (0) target = $region21
    $region20: #{tpu_custom_call.1} parent=1 // pred_region
      _
    $region21: #{tpu_custom_call.1} parent=1 // pred_fallthru
      _
    // Predicated region
    $region22: #{tpu_custom_call.1} parent=1 // pred_check
      _
    $region23: #{tpu_custom_call.1} parent=1 // pred_check_branch
      %58 = sbr.rel (0) target = $region25
    $region24: #{tpu_custom_call.1} parent=1 // pred_region
      %60 = dma.done [#allocation8], 512
    $region25: #{tpu_custom_call.1} parent=1 // pred_fallthru
      _
    // Predicated region
    $region26: #{tpu_custom_call.1} parent=1 // pred_check
      _
    $region27: #{tpu_custom_call.1} parent=1 // pred_check_branch
      %62 = sbr.rel (0) target = $region29
    $region28: #{tpu_custom_call.1} parent=1 // pred_region
      %64 = dma.done [#allocation11], 8192
    $region29: #{tpu_custom_call.1} parent=1 // pred_fallthru
      _
    // Predicated region
    $region30: #{tpu_custom_call.1} parent=1 // pred_check
      _
    $region31: #{tpu_custom_call.1} parent=1 // pred_check_branch
      %66 = sbr.rel (0) target = $region33
    $region32: #{tpu_custom_call.1} parent=1 // pred_region
      %68 = dma.done [#allocation11], 128
    $region33: #{tpu_custom_call.1} parent=1 // pred_fallthru
      _
    // Predicated region
    $region34: #{tpu_custom_call.1} parent=1 // pred_check
      _
    $region35: #{tpu_custom_call.1} parent=1 // pred_check_branch
      %71 = sbr.rel target = $region37
    $region36: #{tpu_custom_call.1} parent=1 // pred_region
      %72 = sst [smem:[#allocation16]] [#allocation15]
      %73 = sst [smem:[#allocation17]] [#allocation14]
    $region37: #{tpu_custom_call.1} parent=1 // pred_fallthru
      _
    %75 = shalt.err (0)
    %s77 = sshll.u32 %s5, 4
    %s78 = int_to_ptr.hbm [resolvable:$true] %s77
    %s79 = sshll.u32 [#allocation3], 4
    %s80 = int_to_ptr.vmem [resolvable:$true] %s79
    %82 = dma.hbm_to_vmem [thread:$0]  %s78, 16384, %s80, [#allocation6]
    %s83 = scalar_lea.sflag [#allocation6], 1
    // Predicated region
    $region38: #{tpu_custom_call.1} parent=1 // pred_check
      _
    $region39: #{tpu_custom_call.1} parent=1 // pred_check_branch
      %85 = sbr.rel target = $region41
    $region40: #{tpu_custom_call.1} parent=1 // pred_region
      %86 = sst [smem:[#allocation16]] [#allocation19]
      %87 = sst [smem:[#allocation17]] [#allocation18]
    $region41: #{tpu_custom_call.1} parent=1 // pred_fallthru
      _
    %89 = shalt.err (0)
    %s91 = sshll.u32 %s6, 4
    %s92 = int_to_ptr.hbm [resolvable:$true] %s91
    %s93 = sshll.u32 [#allocation4], 4
    %s94 = int_to_ptr.vmem [resolvable:$true] %s93
    %96 = dma.hbm_to_vmem [thread:$0]  %s92, 2048, %s94, %s83
    %s97 = scalar_lea.sflag [#allocation6], 2
    // Predicated region
    $region42: #{tpu_custom_call.1} parent=1 // pred_check
      _
    $region43: #{tpu_custom_call.1} parent=1 // pred_check_branch
      %99 = sbr.rel target = $region45
    $region44: #{tpu_custom_call.1} parent=1 // pred_region
      %100 = sst [smem:[#allocation16]] [#allocation21]
      %101 = sst [smem:[#allocation17]] [#allocation20]
    $region45: #{tpu_custom_call.1} parent=1 // pred_fallthru
      _
    %103 = shalt.err (0)
    %s105 = sshll.u32 %s7, 4
    %s106 = int_to_ptr.hbm [resolvable:$true] %s105
    %s107 = sshll.u32 [#allocation5], 4
    %s108 = int_to_ptr.vmem [resolvable:$true] %s107
    %110 = dma.hbm_to_vmem [thread:$0]  %s106, 1024, %s108, %s97
    %v111 = vld [vmem:[#allocation7] sm:$0xf]
    %v112 = vld [vmem:[#allocation7 + $0x4] sm:$0xf]
    %v113 = vld [vmem:[#allocation7 + $0x8] sm:$0xf]
    %v114 = vld [vmem:[#allocation7 + $0xc] sm:$0xf]
    %v115 = vld [vmem:[#allocation7 + $0x10] sm:$0xf]
    %v116 = vld [vmem:[#allocation7 + $0x14] sm:$0xf]
    %v117 = vld [vmem:[#allocation7 + $0x18] sm:$0xf]
    %v118 = vld [vmem:[#allocation7 + $0x1c] sm:$0xf]
    %v119 = vld [vmem:[#allocation10] sm:$0xff]
    %v120 = vld [vmem:[#allocation10 + $0x8] sm:$0xff]
    %v121 = vld [vmem:[#allocation10 + $0x10] sm:$0xff]
    %v122 = vld [vmem:[#allocation10 + $0x18] sm:$0xff]
    %v123 = vld [vmem:[#allocation10 + $0x20] sm:$0xff]
    %v124 = vld [vmem:[#allocation10 + $0x28] sm:$0xff]
    %v125 = vld [vmem:[#allocation10 + $0x30] sm:$0xff]
    %v126 = vld [vmem:[#allocation10 + $0x38] sm:$0xff]
    %v127 = vld [vmem:[#allocation10 + $0x40] sm:$0xff]
    %v128 = vld [vmem:[#allocation10 + $0x48] sm:$0xff]
    %v129 = vld [vmem:[#allocation10 + $0x50] sm:$0xff]
    %v130 = vld [vmem:[#allocation10 + $0x58] sm:$0xff]
    %v131 = vld [vmem:[#allocation10 + $0x60] sm:$0xff]
    %v132 = vld [vmem:[#allocation10 + $0x68] sm:$0xff]
    %v133 = vld [vmem:[#allocation10 + $0x70] sm:$0xff]
    %v134 = vld [vmem:[#allocation10 + $0x78] sm:$0xff]
    %v135 = vld [vmem:[#allocation10 + $0x80] sm:$0xff]
    %v136 = vld [vmem:[#allocation10 + $0x88] sm:$0xff]
    %v137 = vld [vmem:[#allocation10 + $0x90] sm:$0xff]
    %v138 = vld [vmem:[#allocation10 + $0x98] sm:$0xff]
    %v139 = vld [vmem:[#allocation10 + $0xa0] sm:$0xff]
    %v140 = vld [vmem:[#allocation10 + $0xa8] sm:$0xff]
    %v141 = vld [vmem:[#allocation10 + $0xb0] sm:$0xff]
    %v142 = vld [vmem:[#allocation10 + $0xb8] sm:$0xff]
    %v143 = vld [vmem:[#allocation10 + $0xc0] sm:$0xff]
    %v144 = vld [vmem:[#allocation10 + $0xc8] sm:$0xff]
    %v145 = vld [vmem:[#allocation10 + $0xd0] sm:$0xff]
    %v146 = vld [vmem:[#allocation10 + $0xd8] sm:$0xff]
    %v147 = vld [vmem:[#allocation10 + $0xe0] sm:$0xff]
    %v148 = vld [vmem:[#allocation10 + $0xe8] sm:$0xff]
    %v149 = vld [vmem:[#allocation10 + $0xf0] sm:$0xff]
    %v150 = vld [vmem:[#allocation10 + $0xf8] sm:$0xff]
    %v151 = vld [vmem:[#allocation10 + $0x100] sm:$0xff]
    %v152 = vld [vmem:[#allocation10 + $0x108] sm:$0xff]
    %v153 = vld [vmem:[#allocation10 + $0x110] sm:$0xff]
    %v154 = vld [vmem:[#allocation10 + $0x118] sm:$0xff]
    %v155 = vld [vmem:[#allocation10 + $0x120] sm:$0xff]
    %v156 = vld [vmem:[#allocation10 + $0x128] sm:$0xff]
    %v157 = vld [vmem:[#allocation10 + $0x130] sm:$0xff]
    %v158 = vld [vmem:[#allocation10 + $0x138] sm:$0xff]
    %v159 = vld [vmem:[#allocation10 + $0x140] sm:$0xff]
    %v160 = vld [vmem:[#allocation10 + $0x148] sm:$0xff]
    %v161 = vld [vmem:[#allocation10 + $0x150] sm:$0xff]
    %v162 = vld [vmem:[#allocation10 + $0x158] sm:$0xff]
    %v163 = vld [vmem:[#allocation10 + $0x160] sm:$0xff]
    %v164 = vld [vmem:[#allocation10 + $0x168] sm:$0xff]
    %v165 = vld [vmem:[#allocation10 + $0x170] sm:$0xff]
    %v166 = vld [vmem:[#allocation10 + $0x178] sm:$0xff]
    %v167 = vld [vmem:[#allocation10 + $0x180] sm:$0xff]
    %v168 = vld [vmem:[#allocation10 + $0x188] sm:$0xff]
    %v169 = vld [vmem:[#allocation10 + $0x190] sm:$0xff]
    %v170 = vld [vmem:[#allocation10 + $0x198] sm:$0xff]
    %v171 = vld [vmem:[#allocation10 + $0x1a0] sm:$0xff]
    %v172 = vld [vmem:[#allocation10 + $0x1a8] sm:$0xff]
    %v173 = vld [vmem:[#allocation10 + $0x1b0] sm:$0xff]
    %v174 = vld [vmem:[#allocation10 + $0x1b8] sm:$0xff]
    %v175 = vld [vmem:[#allocation10 + $0x1c0] sm:$0xff]
    %v176 = vld [vmem:[#allocation10 + $0x1c8] sm:$0xff]
    %v177 = vld [vmem:[#allocation10 + $0x1d0] sm:$0xff]
    %v178 = vld [vmem:[#allocation10 + $0x1d8] sm:$0xff]
    %v179 = vld [vmem:[#allocation10 + $0x1e0] sm:$0xff]
    %v180 = vld [vmem:[#allocation10 + $0x1e8] sm:$0xff]
    %v181 = vld [vmem:[#allocation10 + $0x1f0] sm:$0xff]
    %v182 = vld [vmem:[#allocation10 + $0x1f8] sm:$0xff]
    %v183 = vld [vmem:[#allocation12] sm:$0xff]
    %v185 = vperm.slane %v183, 0
    %v186 = vperm.slane %v183, 1
    %v187 = vperm.slane %v183, 2
    %v188 = vperm.slane %v183, 3
    %v189 = vperm.slane %v183, 4
    %v190 = vperm.slane %v183, 5
    %v191 = vperm.slane %v183, 6
    %v192 = vperm.slane %v183, 7
    %v209 = vunpack.c.l.b16 %v111
    %v210 = vunpack.c.l.b16 %v112
    %v211 = vunpack.c.l.b16 %v113
    %v212 = vunpack.c.l.b16 %v114
    %v213 = vunpack.c.l.b16 %v115
    %v214 = vunpack.c.l.b16 %v116
    %v215 = vunpack.c.l.b16 %v117
    %v216 = vunpack.c.l.b16 %v118
    %v217 = vpack.c.b16 %v210, %v209
    %v218 = vpack.c.b16 %v212, %v211
    %v219 = vpack.c.b16 %v214, %v213
    %v220 = vpack.c.b16 %v216, %v215
    %v289 = vunpack.c.l.b16 %v119
    %v290 = vunpack.c.h.b16 %v119
    %v291 = vunpack.c.l.b16 %v120
    %v292 = vunpack.c.h.b16 %v120
    %v293 = vunpack.c.l.b16 %v121
    %v294 = vunpack.c.h.b16 %v121
    %v295 = vunpack.c.l.b16 %v122
    %v296 = vunpack.c.h.b16 %v122
    %v297 = vunpack.c.l.b16 %v123
    %v298 = vunpack.c.h.b16 %v123
    %v299 = vunpack.c.l.b16 %v124
    %v300 = vunpack.c.h.b16 %v124
    %v301 = vunpack.c.l.b16 %v125
    %v302 = vunpack.c.h.b16 %v125
    %v303 = vunpack.c.l.b16 %v126
    %v304 = vunpack.c.h.b16 %v126
    %v305 = vunpack.c.l.b16 %v127
    %v306 = vunpack.c.h.b16 %v127
    %v307 = vunpack.c.l.b16 %v128
    %v308 = vunpack.c.h.b16 %v128
    %v309 = vunpack.c.l.b16 %v129
    %v310 = vunpack.c.h.b16 %v129
    %v311 = vunpack.c.l.b16 %v130
    %v312 = vunpack.c.h.b16 %v130
    %v313 = vunpack.c.l.b16 %v131
    %v314 = vunpack.c.h.b16 %v131
    %v315 = vunpack.c.l.b16 %v132
    %v316 = vunpack.c.h.b16 %v132
    %v317 = vunpack.c.l.b16 %v133
    %v318 = vunpack.c.h.b16 %v133
    %v319 = vunpack.c.l.b16 %v134
    %v320 = vunpack.c.h.b16 %v134
    %v321 = vunpack.c.l.b16 %v135
    %v322 = vunpack.c.h.b16 %v135
    %v323 = vunpack.c.l.b16 %v136
    %v324 = vunpack.c.h.b16 %v136
    %v325 = vunpack.c.l.b16 %v137
    %v326 = vunpack.c.h.b16 %v137
    %v327 = vunpack.c.l.b16 %v138
    %v328 = vunpack.c.h.b16 %v138
    %v329 = vunpack.c.l.b16 %v139
    %v330 = vunpack.c.h.b16 %v139
    %v331 = vunpack.c.l.b16 %v140
    %v332 = vunpack.c.h.b16 %v140
    %v333 = vunpack.c.l.b16 %v141
    %v334 = vunpack.c.h.b16 %v141
    %v335 = vunpack.c.l.b16 %v142
    %v336 = vunpack.c.h.b16 %v142
    %v337 = vunpack.c.l.b16 %v143
    %v338 = vunpack.c.h.b16 %v143
    %v339 = vunpack.c.l.b16 %v144
    %v340 = vunpack.c.h.b16 %v144
    %v341 = vunpack.c.l.b16 %v145
    %v342 = vunpack.c.h.b16 %v145
    %v343 = vunpack.c.l.b16 %v146
    %v344 = vunpack.c.h.b16 %v146
    %v345 = vunpack.c.l.b16 %v147
    %v346 = vunpack.c.h.b16 %v147
    %v347 = vunpack.c.l.b16 %v148
    %v348 = vunpack.c.h.b16 %v148
    %v349 = vunpack.c.l.b16 %v149
    %v350 = vunpack.c.h.b16 %v149
    %v351 = vunpack.c.l.b16 %v150
    %v352 = vunpack.c.h.b16 %v150
    %v353 = vunpack.c.l.b16 %v151
    %v354 = vunpack.c.h.b16 %v151
    %v355 = vunpack.c.l.b16 %v152
    %v356 = vunpack.c.h.b16 %v152
    %v357 = vunpack.c.l.b16 %v153
    %v358 = vunpack.c.h.b16 %v153
    %v359 = vunpack.c.l.b16 %v154
    %v360 = vunpack.c.h.b16 %v154
    %v361 = vunpack.c.l.b16 %v155
    %v362 = vunpack.c.h.b16 %v155
    %v363 = vunpack.c.l.b16 %v156
    %v364 = vunpack.c.h.b16 %v156
    %v365 = vunpack.c.l.b16 %v157
    %v366 = vunpack.c.h.b16 %v157
    %v367 = vunpack.c.l.b16 %v158
    %v368 = vunpack.c.h.b16 %v158
    %v369 = vunpack.c.l.b16 %v159
    %v370 = vunpack.c.h.b16 %v159
    %v371 = vunpack.c.l.b16 %v160
    %v372 = vunpack.c.h.b16 %v160
    %v373 = vunpack.c.l.b16 %v161
    %v374 = vunpack.c.h.b16 %v161
    %v375 = vunpack.c.l.b16 %v162
    %v376 = vunpack.c.h.b16 %v162
    %v377 = vunpack.c.l.b16 %v163
    %v378 = vunpack.c.h.b16 %v163
    %v379 = vunpack.c.l.b16 %v164
    %v380 = vunpack.c.h.b16 %v164
    %v381 = vunpack.c.l.b16 %v165
    %v382 = vunpack.c.h.b16 %v165
    %v383 = vunpack.c.l.b16 %v166
    %v384 = vunpack.c.h.b16 %v166
    %v385 = vunpack.c.l.b16 %v167
    %v386 = vunpack.c.h.b16 %v167
    %v387 = vunpack.c.l.b16 %v168
    %v388 = vunpack.c.h.b16 %v168
    %v389 = vunpack.c.l.b16 %v169
    %v390 = vunpack.c.h.b16 %v169
    %v391 = vunpack.c.l.b16 %v170
    %v392 = vunpack.c.h.b16 %v170
    %v393 = vunpack.c.l.b16 %v171
    %v394 = vunpack.c.h.b16 %v171
    %v395 = vunpack.c.l.b16 %v172
    %v396 = vunpack.c.h.b16 %v172
    %v397 = vunpack.c.l.b16 %v173
    %v398 = vunpack.c.h.b16 %v173
    %v399 = vunpack.c.l.b16 %v174
    %v400 = vunpack.c.h.b16 %v174
    %v401 = vunpack.c.l.b16 %v175
    %v402 = vunpack.c.h.b16 %v175
    %v403 = vunpack.c.l.b16 %v176
    %v404 = vunpack.c.h.b16 %v176
    %v405 = vunpack.c.l.b16 %v177
    %v406 = vunpack.c.h.b16 %v177
    %v407 = vunpack.c.l.b16 %v178
    %v408 = vunpack.c.h.b16 %v178
    %v409 = vunpack.c.l.b16 %v179
    %v410 = vunpack.c.h.b16 %v179
    %v411 = vunpack.c.l.b16 %v180
    %v412 = vunpack.c.h.b16 %v180
    %v413 = vunpack.c.l.b16 %v181
    %v414 = vunpack.c.h.b16 %v181
    %v415 = vunpack.c.l.b16 %v182
    %v416 = vunpack.c.h.b16 %v182
    %v417 = vpack.c.b16 %v297, %v289
    %v418 = vpack.c.b16 %v298, %v290
    %v419 = vpack.c.b16 %v299, %v291
    %v420 = vpack.c.b16 %v300, %v292
    %v421 = vpack.c.b16 %v301, %v293
    %v422 = vpack.c.b16 %v302, %v294
    %v423 = vpack.c.b16 %v303, %v295
    %v424 = vpack.c.b16 %v304, %v296
    %v425 = vpack.c.b16 %v313, %v305
    %v426 = vpack.c.b16 %v314, %v306
    %v427 = vpack.c.b16 %v315, %v307
    %v428 = vpack.c.b16 %v316, %v308
    %v429 = vpack.c.b16 %v317, %v309
    %v430 = vpack.c.b16 %v318, %v310
    %v431 = vpack.c.b16 %v319, %v311
    %v432 = vpack.c.b16 %v320, %v312
    %v433 = vpack.c.b16 %v329, %v321
    %v434 = vpack.c.b16 %v330, %v322
    %v435 = vpack.c.b16 %v331, %v323
    %v436 = vpack.c.b16 %v332, %v324
    %v437 = vpack.c.b16 %v333, %v325
    %v438 = vpack.c.b16 %v334, %v326
    %v439 = vpack.c.b16 %v335, %v327
    %v440 = vpack.c.b16 %v336, %v328
    %v441 = vpack.c.b16 %v345, %v337
    %v442 = vpack.c.b16 %v346, %v338
    %v443 = vpack.c.b16 %v347, %v339
    %v444 = vpack.c.b16 %v348, %v340
    %v445 = vpack.c.b16 %v349, %v341
    %v446 = vpack.c.b16 %v350, %v342
    %v447 = vpack.c.b16 %v351, %v343
    %v448 = vpack.c.b16 %v352, %v344
    %v449 = vpack.c.b16 %v361, %v353
    %v450 = vpack.c.b16 %v362, %v354
    %v451 = vpack.c.b16 %v363, %v355
    %v452 = vpack.c.b16 %v364, %v356
    %v453 = vpack.c.b16 %v365, %v357
    %v454 = vpack.c.b16 %v366, %v358
    %v455 = vpack.c.b16 %v367, %v359
    %v456 = vpack.c.b16 %v368, %v360
    %v457 = vpack.c.b16 %v377, %v369
    %v458 = vpack.c.b16 %v378, %v370
    %v459 = vpack.c.b16 %v379, %v371
    %v460 = vpack.c.b16 %v380, %v372
    %v461 = vpack.c.b16 %v381, %v373
    %v462 = vpack.c.b16 %v382, %v374
    %v463 = vpack.c.b16 %v383, %v375
    %v464 = vpack.c.b16 %v384, %v376
    %v465 = vpack.c.b16 %v393, %v385
    %v466 = vpack.c.b16 %v394, %v386
    %v467 = vpack.c.b16 %v395, %v387
    %v468 = vpack.c.b16 %v396, %v388
    %v469 = vpack.c.b16 %v397, %v389
    %v470 = vpack.c.b16 %v398, %v390
    %v471 = vpack.c.b16 %v399, %v391
    %v472 = vpack.c.b16 %v400, %v392
    %v473 = vpack.c.b16 %v409, %v401
    %v474 = vpack.c.b16 %v410, %v402
    %v475 = vpack.c.b16 %v411, %v403
    %v476 = vpack.c.b16 %v412, %v404
    %v477 = vpack.c.b16 %v413, %v405
    %v478 = vpack.c.b16 %v414, %v406
    %v479 = vpack.c.b16 %v415, %v407
    %v480 = vpack.c.b16 %v416, %v408
    %545 = vmatpush.bf16.msra.mxu0 %v473
    %546 = vmatpush.bf16.msra.mxu0 %v465
    %547 = vmatpush.bf16.msra.mxu0 %v457
    %548 = vmatpush.bf16.msra.mxu0 %v449
    %549 = vmatpush.bf16.msra.mxu0 %v441
    %550 = vmatpush.bf16.msra.mxu0 %v433
    %551 = vmatpush.bf16.msra.mxu0 %v425
    %552 = vmatpush.bf16.msra.mxu0 %v417
    %553 = vmatmul.bf16.gmra.mxu0 %v217
    %v554 = vpop.f32.mrf.mxu0
    %v555 = vadd.f32 %v185, %v554
    %v556 = vpop.f32.mrf.mxu0
    %v557 = vadd.f32 %v185, %v556
    %558 = vmatmul.bf16.gmra.mxu0 %v218
    %v559 = vpop.f32.mrf.mxu0
    %v560 = vadd.f32 %v185, %v559
    %v561 = vpop.f32.mrf.mxu0
    %v562 = vadd.f32 %v185, %v561
    %563 = vmatmul.bf16.gmra.mxu0 %v219
    %v564 = vpop.f32.mrf.mxu0
    %v565 = vadd.f32 %v185, %v564
    %v566 = vpop.f32.mrf.mxu0
    %v567 = vadd.f32 %v185, %v566
    %568 = vmatmul.bf16.gmra.mxu0 %v220
    %v569 = vpop.f32.mrf.mxu0
    %v570 = vadd.f32 %v185, %v569
    %v571 = vpop.f32.mrf.mxu0
    %v572 = vadd.f32 %v185, %v571
    %573 = vdwg.mxu0
    %574 = vmatpush.bf16.msra.mxu0 %v474
    %575 = vmatpush.bf16.msra.mxu0 %v466
    %576 = vmatpush.bf16.msra.mxu0 %v458
    %577 = vmatpush.bf16.msra.mxu0 %v450
    %578 = vmatpush.bf16.msra.mxu0 %v442
    %579 = vmatpush.bf16.msra.mxu0 %v434
    %580 = vmatpush.bf16.msra.mxu0 %v426
    %581 = vmatpush.bf16.msra.mxu0 %v418
    %582 = vmatmul.bf16.gmra.mxu0 %v217
    %v583 = vpop.f32.mrf.mxu0
    %v584 = vadd.f32 %v186, %v583
    %v585 = vpop.f32.mrf.mxu0
    %v586 = vadd.f32 %v186, %v585
    %587 = vmatmul.bf16.gmra.mxu0 %v218
    %v588 = vpop.f32.mrf.mxu0
    %v589 = vadd.f32 %v186, %v588
    %v590 = vpop.f32.mrf.mxu0
    %v591 = vadd.f32 %v186, %v590
    %592 = vmatmul.bf16.gmra.mxu0 %v219
    %v593 = vpop.f32.mrf.mxu0
    %v594 = vadd.f32 %v186, %v593
    %v595 = vpop.f32.mrf.mxu0
    %v596 = vadd.f32 %v186, %v595
    %597 = vmatmul.bf16.gmra.mxu0 %v220
    %v598 = vpop.f32.mrf.mxu0
    %v599 = vadd.f32 %v186, %v598
    %v600 = vpop.f32.mrf.mxu0
    %v601 = vadd.f32 %v186, %v600
    %602 = vdwg.mxu0
    %603 = vmatpush.bf16.msra.mxu0 %v475
    %604 = vmatpush.bf16.msra.mxu0 %v467
    %605 = vmatpush.bf16.msra.mxu0 %v459
    %606 = vmatpush.bf16.msra.mxu0 %v451
    %607 = vmatpush.bf16.msra.mxu0 %v443
    %608 = vmatpush.bf16.msra.mxu0 %v435
    %609 = vmatpush.bf16.msra.mxu0 %v427
    %610 = vmatpush.bf16.msra.mxu0 %v419
    %611 = vmatmul.bf16.gmra.mxu0 %v217
    %v612 = vpop.f32.mrf.mxu0
    %v613 = vadd.f32 %v187, %v612
    %v614 = vpop.f32.mrf.mxu0
    %v615 = vadd.f32 %v187, %v614
    %616 = vmatmul.bf16.gmra.mxu0 %v218
    %v617 = vpop.f32.mrf.mxu0
    %v618 = vadd.f32 %v187, %v617
    %v619 = vpop.f32.mrf.mxu0
    %v620 = vadd.f32 %v187, %v619
    %621 = vmatmul.bf16.gmra.mxu0 %v219
    %v622 = vpop.f32.mrf.mxu0
    %v623 = vadd.f32 %v187, %v622
    %v624 = vpop.f32.mrf.mxu0
    %v625 = vadd.f32 %v187, %v624
    %626 = vmatmul.bf16.gmra.mxu0 %v220
    %v627 = vpop.f32.mrf.mxu0
    %v628 = vadd.f32 %v187, %v627
    %v629 = vpop.f32.mrf.mxu0
    %v630 = vadd.f32 %v187, %v629
    %631 = vdwg.mxu0
    %632 = vmatpush.bf16.msra.mxu0 %v476
    %633 = vmatpush.bf16.msra.mxu0 %v468
    %634 = vmatpush.bf16.msra.mxu0 %v460
    %635 = vmatpush.bf16.msra.mxu0 %v452
    %636 = vmatpush.bf16.msra.mxu0 %v444
    %637 = vmatpush.bf16.msra.mxu0 %v436
    %638 = vmatpush.bf16.msra.mxu0 %v428
    %639 = vmatpush.bf16.msra.mxu0 %v420
    %640 = vmatmul.bf16.gmra.mxu0 %v217
    %v641 = vpop.f32.mrf.mxu0
    %v642 = vadd.f32 %v188, %v641
    %v643 = vpop.f32.mrf.mxu0
    %v644 = vadd.f32 %v188, %v643
    %645 = vmatmul.bf16.gmra.mxu0 %v218
    %v646 = vpop.f32.mrf.mxu0
    %v647 = vadd.f32 %v188, %v646
    %v648 = vpop.f32.mrf.mxu0
    %v649 = vadd.f32 %v188, %v648
    %650 = vmatmul.bf16.gmra.mxu0 %v219
    %v651 = vpop.f32.mrf.mxu0
    %v652 = vadd.f32 %v188, %v651
    %v653 = vpop.f32.mrf.mxu0
    %v654 = vadd.f32 %v188, %v653
    %655 = vmatmul.bf16.gmra.mxu0 %v220
    %v656 = vpop.f32.mrf.mxu0
    %v657 = vadd.f32 %v188, %v656
    %v658 = vpop.f32.mrf.mxu0
    %v659 = vadd.f32 %v188, %v658
    %660 = vdwg.mxu0
    %661 = vmatpush.bf16.msra.mxu0 %v477
    %662 = vmatpush.bf16.msra.mxu0 %v469
    %663 = vmatpush.bf16.msra.mxu0 %v461
    %664 = vmatpush.bf16.msra.mxu0 %v453
    %665 = vmatpush.bf16.msra.mxu0 %v445
    %666 = vmatpush.bf16.msra.mxu0 %v437
    %667 = vmatpush.bf16.msra.mxu0 %v429
    %668 = vmatpush.bf16.msra.mxu0 %v421
    %669 = vmatmul.bf16.gmra.mxu0 %v217
    %v670 = vpop.f32.mrf.mxu0
    %v671 = vadd.f32 %v189, %v670
    %v672 = vpop.f32.mrf.mxu0
    %v673 = vadd.f32 %v189, %v672
    %674 = vmatmul.bf16.gmra.mxu0 %v218
    %v675 = vpop.f32.mrf.mxu0
    %v676 = vadd.f32 %v189, %v675
    %v677 = vpop.f32.mrf.mxu0
    %v678 = vadd.f32 %v189, %v677
    %679 = vmatmul.bf16.gmra.mxu0 %v219
    %v680 = vpop.f32.mrf.mxu0
    %v681 = vadd.f32 %v189, %v680
    %v682 = vpop.f32.mrf.mxu0
    %v683 = vadd.f32 %v189, %v682
    %684 = vmatmul.bf16.gmra.mxu0 %v220
    %v685 = vpop.f32.mrf.mxu0
    %v686 = vadd.f32 %v189, %v685
    %v687 = vpop.f32.mrf.mxu0
    %v688 = vadd.f32 %v189, %v687
    %689 = vdwg.mxu0
    %690 = vmatpush.bf16.msra.mxu0 %v478
    %691 = vmatpush.bf16.msra.mxu0 %v470
    %692 = vmatpush.bf16.msra.mxu0 %v462
    %693 = vmatpush.bf16.msra.mxu0 %v454
    %694 = vmatpush.bf16.msra.mxu0 %v446
    %695 = vmatpush.bf16.msra.mxu0 %v438
    %696 = vmatpush.bf16.msra.mxu0 %v430
    %697 = vmatpush.bf16.msra.mxu0 %v422
    %698 = vmatmul.bf16.gmra.mxu0 %v217
    %v699 = vpop.f32.mrf.mxu0
    %v700 = vadd.f32 %v190, %v699
    %v701 = vpop.f32.mrf.mxu0
    %v702 = vadd.f32 %v190, %v701
    %703 = vmatmul.bf16.gmra.mxu0 %v218
    %v704 = vpop.f32.mrf.mxu0
    %v705 = vadd.f32 %v190, %v704
    %v706 = vpop.f32.mrf.mxu0
    %v707 = vadd.f32 %v190, %v706
    %708 = vmatmul.bf16.gmra.mxu0 %v219
    %v709 = vpop.f32.mrf.mxu0
    %v710 = vadd.f32 %v190, %v709
    %v711 = vpop.f32.mrf.mxu0
    %v712 = vadd.f32 %v190, %v711
    %713 = vmatmul.bf16.gmra.mxu0 %v220
    %v714 = vpop.f32.mrf.mxu0
    %v715 = vadd.f32 %v190, %v714
    %v716 = vpop.f32.mrf.mxu0
    %v717 = vadd.f32 %v190, %v716
    %718 = vdwg.mxu0
    %719 = vmatpush.bf16.msra.mxu0 %v479
    %720 = vmatpush.bf16.msra.mxu0 %v471
    %721 = vmatpush.bf16.msra.mxu0 %v463
    %722 = vmatpush.bf16.msra.mxu0 %v455
    %723 = vmatpush.bf16.msra.mxu0 %v447
    %724 = vmatpush.bf16.msra.mxu0 %v439
    %725 = vmatpush.bf16.msra.mxu0 %v431
    %726 = vmatpush.bf16.msra.mxu0 %v423
    %727 = vmatmul.bf16.gmra.mxu0 %v217
    %v728 = vpop.f32.mrf.mxu0
    %v729 = vadd.f32 %v191, %v728
    %v730 = vpop.f32.mrf.mxu0
    %v731 = vadd.f32 %v191, %v730
    %732 = vmatmul.bf16.gmra.mxu0 %v218
    %v733 = vpop.f32.mrf.mxu0
    %v734 = vadd.f32 %v191, %v733
    %v735 = vpop.f32.mrf.mxu0
    %v736 = vadd.f32 %v191, %v735
    %737 = vmatmul.bf16.gmra.mxu0 %v219
    %v738 = vpop.f32.mrf.mxu0
    %v739 = vadd.f32 %v191, %v738
    %v740 = vpop.f32.mrf.mxu0
    %v741 = vadd.f32 %v191, %v740
    %742 = vmatmul.bf16.gmra.mxu0 %v220
    %v743 = vpop.f32.mrf.mxu0
    %v744 = vadd.f32 %v191, %v743
    %v745 = vpop.f32.mrf.mxu0
    %v746 = vadd.f32 %v191, %v745
    %747 = vdwg.mxu0
    %748 = vmatpush.bf16.msra.mxu0 %v480
    %749 = vmatpush.bf16.msra.mxu0 %v472
    %750 = vmatpush.bf16.msra.mxu0 %v464
    %751 = vmatpush.bf16.msra.mxu0 %v456
    %752 = vmatpush.bf16.msra.mxu0 %v448
    %753 = vmatpush.bf16.msra.mxu0 %v440
    %754 = vmatpush.bf16.msra.mxu0 %v432
    %755 = vmatpush.bf16.msra.mxu0 %v424
    %756 = vmatmul.bf16.gmra.mxu0 %v217
    %v757 = vpop.f32.mrf.mxu0
    %v758 = vadd.f32 %v192, %v757
    %v759 = vpop.f32.mrf.mxu0
    %v760 = vadd.f32 %v192, %v759
    %761 = vmatmul.bf16.gmra.mxu0 %v218
    %v762 = vpop.f32.mrf.mxu0
    %v763 = vadd.f32 %v192, %v762
    %v764 = vpop.f32.mrf.mxu0
    %v765 = vadd.f32 %v192, %v764
    %766 = vmatmul.bf16.gmra.mxu0 %v219
    %v767 = vpop.f32.mrf.mxu0
    %v768 = vadd.f32 %v192, %v767
    %v769 = vpop.f32.mrf.mxu0
    %v770 = vadd.f32 %v192, %v769
    %771 = vmatmul.bf16.gmra.mxu0 %v220
    %v772 = vpop.f32.mrf.mxu0
    %v773 = vadd.f32 %v192, %v772
    %v774 = vpop.f32.mrf.mxu0
    %v775 = vadd.f32 %v192, %v774
    %776 = vdwg.mxu0
    %777 = vst [vmem:[#allocation2] sm:$0xff] %v555
    %778 = vst [vmem:[#allocation2 + $0x8] sm:$0xff] %v584
    %779 = vst [vmem:[#allocation2 + $0x10] sm:$0xff] %v613
    %780 = vst [vmem:[#allocation2 + $0x18] sm:$0xff] %v642
    %781 = vst [vmem:[#allocation2 + $0x20] sm:$0xff] %v671
    %782 = vst [vmem:[#allocation2 + $0x28] sm:$0xff] %v700
    %783 = vst [vmem:[#allocation2 + $0x30] sm:$0xff] %v729
    %784 = vst [vmem:[#allocation2 + $0x38] sm:$0xff] %v758
    %785 = vst [vmem:[#allocation2 + $0x40] sm:$0xff] %v557
    %786 = vst [vmem:[#allocation2 + $0x48] sm:$0xff] %v586
    %787 = vst [vmem:[#allocation2 + $0x50] sm:$0xff] %v615
    %788 = vst [vmem:[#allocation2 + $0x58] sm:$0xff] %v644
    %789 = vst [vmem:[#allocation2 + $0x60] sm:$0xff] %v673
    %790 = vst [vmem:[#allocation2 + $0x68] sm:$0xff] %v702
    %791 = vst [vmem:[#allocation2 + $0x70] sm:$0xff] %v731
    %792 = vst [vmem:[#allocation2 + $0x78] sm:$0xff] %v760
    %793 = vst [vmem:[#allocation2 + $0x80] sm:$0xff] %v560
    %794 = vst [vmem:[#allocation2 + $0x88] sm:$0xff] %v589
    %795 = vst [vmem:[#allocation2 + $0x90] sm:$0xff] %v618
    %796 = vst [vmem:[#allocation2 + $0x98] sm:$0xff] %v647
    %797 = vst [vmem:[#allocation2 + $0xa0] sm:$0xff] %v676
    %798 = vst [vmem:[#allocation2 + $0xa8] sm:$0xff] %v705
    %799 = vst [vmem:[#allocation2 + $0xb0] sm:$0xff] %v734
    %800 = vst [vmem:[#allocation2 + $0xb8] sm:$0xff] %v763
    %801 = vst [vmem:[#allocation2 + $0xc0] sm:$0xff] %v562
    %802 = vst [vmem:[#allocation2 + $0xc8] sm:$0xff] %v591
    %803 = vst [vmem:[#allocation2 + $0xd0] sm:$0xff] %v620
    %804 = vst [vmem:[#allocation2 + $0xd8] sm:$0xff] %v649
    %805 = vst [vmem:[#allocation2 + $0xe0] sm:$0xff] %v678
    %806 = vst [vmem:[#allocation2 + $0xe8] sm:$0xff] %v707
    %807 = vst [vmem:[#allocation2 + $0xf0] sm:$0xff] %v736
    %808 = vst [vmem:[#allocation2 + $0xf8] sm:$0xff] %v765
    %809 = vst [vmem:[#allocation2 + $0x100] sm:$0xff] %v565
    %810 = vst [vmem:[#allocation2 + $0x108] sm:$0xff] %v594
    %811 = vst [vmem:[#allocation2 + $0x110] sm:$0xff] %v623
    %812 = vst [vmem:[#allocation2 + $0x118] sm:$0xff] %v652
    %813 = vst [vmem:[#allocation2 + $0x120] sm:$0xff] %v681
    %814 = vst [vmem:[#allocation2 + $0x128] sm:$0xff] %v710
    %815 = vst [vmem:[#allocation2 + $0x130] sm:$0xff] %v739
    %816 = vst [vmem:[#allocation2 + $0x138] sm:$0xff] %v768
    %817 = vst [vmem:[#allocation2 + $0x140] sm:$0xff] %v567
    %818 = vst [vmem:[#allocation2 + $0x148] sm:$0xff] %v596
    %819 = vst [vmem:[#allocation2 + $0x150] sm:$0xff] %v625
    %820 = vst [vmem:[#allocation2 + $0x158] sm:$0xff] %v654
    %821 = vst [vmem:[#allocation2 + $0x160] sm:$0xff] %v683
    %822 = vst [vmem:[#allocation2 + $0x168] sm:$0xff] %v712
    %823 = vst [vmem:[#allocation2 + $0x170] sm:$0xff] %v741
    %824 = vst [vmem:[#allocation2 + $0x178] sm:$0xff] %v770
    %825 = vst [vmem:[#allocation2 + $0x180] sm:$0xff] %v570
    %826 = vst [vmem:[#allocation2 + $0x188] sm:$0xff] %v599
    %827 = vst [vmem:[#allocation2 + $0x190] sm:$0xff] %v628
    %828 = vst [vmem:[#allocation2 + $0x198] sm:$0xff] %v657
    %829 = vst [vmem:[#allocation2 + $0x1a0] sm:$0xff] %v686
    %830 = vst [vmem:[#allocation2 + $0x1a8] sm:$0xff] %v715
    %831 = vst [vmem:[#allocation2 + $0x1b0] sm:$0xff] %v744
    %832 = vst [vmem:[#allocation2 + $0x1b8] sm:$0xff] %v773
    %833 = vst [vmem:[#allocation2 + $0x1c0] sm:$0xff] %v572
    %834 = vst [vmem:[#allocation2 + $0x1c8] sm:$0xff] %v601
    %835 = vst [vmem:[#allocation2 + $0x1d0] sm:$0xff] %v630
    %836 = vst [vmem:[#allocation2 + $0x1d8] sm:$0xff] %v659
    %837 = vst [vmem:[#allocation2 + $0x1e0] sm:$0xff] %v688
    %838 = vst [vmem:[#allocation2 + $0x1e8] sm:$0xff] %v717
    %839 = vst [vmem:[#allocation2 + $0x1f0] sm:$0xff] %v746
    %840 = vst [vmem:[#allocation2 + $0x1f8] sm:$0xff] %v775
    %s841 = smul.u32 4, 32
    %s842 = smul.u32 %s841, 8
    %s843 = sshll.u32 %s842, 4
    %844 = dma.done [#allocation6], %s843
    %s845 = smul.u32 0, 8
    %s846 = smul.addr %s845, 8
    %s847 = scalar_lea.vmem [#allocation2], %s846
    %v848 = vld [vmem:[%s847] sm:$0xff]
    %v849 = vld [vmem:[%s847 + $0x8] sm:$0xff]
    %v850 = vld [vmem:[%s847 + $0x10] sm:$0xff]
    %v851 = vld [vmem:[%s847 + $0x18] sm:$0xff]
    %v852 = vld [vmem:[%s847 + $0x20] sm:$0xff]
    %v853 = vld [vmem:[%s847 + $0x28] sm:$0xff]
    %v854 = vld [vmem:[%s847 + $0x30] sm:$0xff]
    %v855 = vld [vmem:[%s847 + $0x38] sm:$0xff]
    %v856 = vld [vmem:[#allocation3] sm:$0xff]
    %v857 = vld [vmem:[#allocation3 + $0x8] sm:$0xff]
    %v858 = vld [vmem:[#allocation3 + $0x10] sm:$0xff]
    %v859 = vld [vmem:[#allocation3 + $0x18] sm:$0xff]
    %v860 = vld [vmem:[#allocation3 + $0x20] sm:$0xff]
    %v861 = vld [vmem:[#allocation3 + $0x28] sm:$0xff]
    %v862 = vld [vmem:[#allocation3 + $0x30] sm:$0xff]
    %v863 = vld [vmem:[#allocation3 + $0x38] sm:$0xff]
    %v864 = vld [vmem:[#allocation3 + $0x40] sm:$0xff]
    %v865 = vld [vmem:[#allocation3 + $0x48] sm:$0xff]
    %v866 = vld [vmem:[#allocation3 + $0x50] sm:$0xff]
    %v867 = vld [vmem:[#allocation3 + $0x58] sm:$0xff]
    %v868 = vld [vmem:[#allocation3 + $0x60] sm:$0xff]
    %v869 = vld [vmem:[#allocation3 + $0x68] sm:$0xff]
    %v870 = vld [vmem:[#allocation3 + $0x70] sm:$0xff]
    %v871 = vld [vmem:[#allocation3 + $0x78] sm:$0xff]
    %v872 = vld [vmem:[#allocation3 + $0x80] sm:$0xff]
    %v873 = vld [vmem:[#allocation3 + $0x88] sm:$0xff]
    %v874 = vld [vmem:[#allocation3 + $0x90] sm:$0xff]
    %v875 = vld [vmem:[#allocation3 + $0x98] sm:$0xff]
    %v876 = vld [vmem:[#allocation3 + $0xa0] sm:$0xff]
    %v877 = vld [vmem:[#allocation3 + $0xa8] sm:$0xff]
    %v878 = vld [vmem:[#allocation3 + $0xb0] sm:$0xff]
    %v879 = vld [vmem:[#allocation3 + $0xb8] sm:$0xff]
    %v880 = vld [vmem:[#allocation3 + $0xc0] sm:$0xff]
    %v881 = vld [vmem:[#allocation3 + $0xc8] sm:$0xff]
    %v882 = vld [vmem:[#allocation3 + $0xd0] sm:$0xff]
    %v883 = vld [vmem:[#allocation3 + $0xd8] sm:$0xff]
    %v884 = vld [vmem:[#allocation3 + $0xe0] sm:$0xff]
    %v885 = vld [vmem:[#allocation3 + $0xe8] sm:$0xff]
    %v886 = vld [vmem:[#allocation3 + $0xf0] sm:$0xff]
    %v887 = vld [vmem:[#allocation3 + $0xf8] sm:$0xff]
    %v888 = vld [vmem:[#allocation3 + $0x100] sm:$0xff]
    %v889 = vld [vmem:[#allocation3 + $0x108] sm:$0xff]
    %v890 = vld [vmem:[#allocation3 + $0x110] sm:$0xff]
    %v891 = vld [vmem:[#allocation3 + $0x118] sm:$0xff]
    %v892 = vld [vmem:[#allocation3 + $0x120] sm:$0xff]
    %v893 = vld [vmem:[#allocation3 + $0x128] sm:$0xff]
    %v894 = vld [vmem:[#allocation3 + $0x130] sm:$0xff]
    %v895 = vld [vmem:[#allocation3 + $0x138] sm:$0xff]
    %v896 = vld [vmem:[#allocation3 + $0x140] sm:$0xff]
    %v897 = vld [vmem:[#allocation3 + $0x148] sm:$0xff]
    %v898 = vld [vmem:[#allocation3 + $0x150] sm:$0xff]
    %v899 = vld [vmem:[#allocation3 + $0x158] sm:$0xff]
    %v900 = vld [vmem:[#allocation3 + $0x160] sm:$0xff]
    %v901 = vld [vmem:[#allocation3 + $0x168] sm:$0xff]
    %v902 = vld [vmem:[#allocation3 + $0x170] sm:$0xff]
    %v903 = vld [vmem:[#allocation3 + $0x178] sm:$0xff]
    %v904 = vld [vmem:[#allocation3 + $0x180] sm:$0xff]
    %v905 = vld [vmem:[#allocation3 + $0x188] sm:$0xff]
    %v906 = vld [vmem:[#allocation3 + $0x190] sm:$0xff]
    %v907 = vld [vmem:[#allocation3 + $0x198] sm:$0xff]
    %v908 = vld [vmem:[#allocation3 + $0x1a0] sm:$0xff]
    %v909 = vld [vmem:[#allocation3 + $0x1a8] sm:$0xff]
    %v910 = vld [vmem:[#allocation3 + $0x1b0] sm:$0xff]
    %v911 = vld [vmem:[#allocation3 + $0x1b8] sm:$0xff]
    %v912 = vld [vmem:[#allocation3 + $0x1c0] sm:$0xff]
    %v913 = vld [vmem:[#allocation3 + $0x1c8] sm:$0xff]
    %v914 = vld [vmem:[#allocation3 + $0x1d0] sm:$0xff]
    %v915 = vld [vmem:[#allocation3 + $0x1d8] sm:$0xff]
    %v916 = vld [vmem:[#allocation3 + $0x1e0] sm:$0xff]
    %v917 = vld [vmem:[#allocation3 + $0x1e8] sm:$0xff]
    %v918 = vld [vmem:[#allocation3 + $0x1f0] sm:$0xff]
    %v919 = vld [vmem:[#allocation3 + $0x1f8] sm:$0xff]
    %v920 = vld [vmem:[#allocation3 + $0x200] sm:$0xff]
    %v921 = vld [vmem:[#allocation3 + $0x208] sm:$0xff]
    %v922 = vld [vmem:[#allocation3 + $0x210] sm:$0xff]
    %v923 = vld [vmem:[#allocation3 + $0x218] sm:$0xff]
    %v924 = vld [vmem:[#allocation3 + $0x220] sm:$0xff]
    %v925 = vld [vmem:[#allocation3 + $0x228] sm:$0xff]
    %v926 = vld [vmem:[#allocation3 + $0x230] sm:$0xff]
    %v927 = vld [vmem:[#allocation3 + $0x238] sm:$0xff]
    %v928 = vld [vmem:[#allocation3 + $0x240] sm:$0xff]
    %v929 = vld [vmem:[#allocation3 + $0x248] sm:$0xff]
    %v930 = vld [vmem:[#allocation3 + $0x250] sm:$0xff]
    %v931 = vld [vmem:[#allocation3 + $0x258] sm:$0xff]
    %v932 = vld [vmem:[#allocation3 + $0x260] sm:$0xff]
    %v933 = vld [vmem:[#allocation3 + $0x268] sm:$0xff]
    %v934 = vld [vmem:[#allocation3 + $0x270] sm:$0xff]
    %v935 = vld [vmem:[#allocation3 + $0x278] sm:$0xff]
    %v936 = vld [vmem:[#allocation3 + $0x280] sm:$0xff]
    %v937 = vld [vmem:[#allocation3 + $0x288] sm:$0xff]
    %v938 = vld [vmem:[#allocation3 + $0x290] sm:$0xff]
    %v939 = vld [vmem:[#allocation3 + $0x298] sm:$0xff]
    %v940 = vld [vmem:[#allocation3 + $0x2a0] sm:$0xff]
    %v941 = vld [vmem:[#allocation3 + $0x2a8] sm:$0xff]
    %v942 = vld [vmem:[#allocation3 + $0x2b0] sm:$0xff]
    %v943 = vld [vmem:[#allocation3 + $0x2b8] sm:$0xff]
    %v944 = vld [vmem:[#allocation3 + $0x2c0] sm:$0xff]
    %v945 = vld [vmem:[#allocation3 + $0x2c8] sm:$0xff]
    %v946 = vld [vmem:[#allocation3 + $0x2d0] sm:$0xff]
    %v947 = vld [vmem:[#allocation3 + $0x2d8] sm:$0xff]
    %v948 = vld [vmem:[#allocation3 + $0x2e0] sm:$0xff]
    %v949 = vld [vmem:[#allocation3 + $0x2e8] sm:$0xff]
    %v950 = vld [vmem:[#allocation3 + $0x2f0] sm:$0xff]
    %v951 = vld [vmem:[#allocation3 + $0x2f8] sm:$0xff]
    %v952 = vld [vmem:[#allocation3 + $0x300] sm:$0xff]
    %v953 = vld [vmem:[#allocation3 + $0x308] sm:$0xff]
    %v954 = vld [vmem:[#allocation3 + $0x310] sm:$0xff]
    %v955 = vld [vmem:[#allocation3 + $0x318] sm:$0xff]
    %v956 = vld [vmem:[#allocation3 + $0x320] sm:$0xff]
    %v957 = vld [vmem:[#allocation3 + $0x328] sm:$0xff]
    %v958 = vld [vmem:[#allocation3 + $0x330] sm:$0xff]
    %v959 = vld [vmem:[#allocation3 + $0x338] sm:$0xff]
    %v960 = vld [vmem:[#allocation3 + $0x340] sm:$0xff]
    %v961 = vld [vmem:[#allocation3 + $0x348] sm:$0xff]
    %v962 = vld [vmem:[#allocation3 + $0x350] sm:$0xff]
    %v963 = vld [vmem:[#allocation3 + $0x358] sm:$0xff]
    %v964 = vld [vmem:[#allocation3 + $0x360] sm:$0xff]
    %v965 = vld [vmem:[#allocation3 + $0x368] sm:$0xff]
    %v966 = vld [vmem:[#allocation3 + $0x370] sm:$0xff]
    %v967 = vld [vmem:[#allocation3 + $0x378] sm:$0xff]
    %v968 = vld [vmem:[#allocation3 + $0x380] sm:$0xff]
    %v969 = vld [vmem:[#allocation3 + $0x388] sm:$0xff]
    %v970 = vld [vmem:[#allocation3 + $0x390] sm:$0xff]
    %v971 = vld [vmem:[#allocation3 + $0x398] sm:$0xff]
    %v972 = vld [vmem:[#allocation3 + $0x3a0] sm:$0xff]
    %v973 = vld [vmem:[#allocation3 + $0x3a8] sm:$0xff]
    %v974 = vld [vmem:[#allocation3 + $0x3b0] sm:$0xff]
    %v975 = vld [vmem:[#allocation3 + $0x3b8] sm:$0xff]
    %v976 = vld [vmem:[#allocation3 + $0x3c0] sm:$0xff]
    %v977 = vld [vmem:[#allocation3 + $0x3c8] sm:$0xff]
    %v978 = vld [vmem:[#allocation3 + $0x3d0] sm:$0xff]
    %v979 = vld [vmem:[#allocation3 + $0x3d8] sm:$0xff]
    %v980 = vld [vmem:[#allocation3 + $0x3e0] sm:$0xff]
    %v981 = vld [vmem:[#allocation3 + $0x3e8] sm:$0xff]
    %v982 = vld [vmem:[#allocation3 + $0x3f0] sm:$0xff]
    %v983 = vld [vmem:[#allocation3 + $0x3f8] sm:$0xff]
    %v1112 = vunpack.c.l.b16 %v856
    %v1113 = vunpack.c.h.b16 %v856
    %v1114 = vunpack.c.l.b16 %v857
    %v1115 = vunpack.c.h.b16 %v857
    %v1116 = vunpack.c.l.b16 %v858
    %v1117 = vunpack.c.h.b16 %v858
    %v1118 = vunpack.c.l.b16 %v859
    %v1119 = vunpack.c.h.b16 %v859
    %v1120 = vunpack.c.l.b16 %v860
    %v1121 = vunpack.c.h.b16 %v860
    %v1122 = vunpack.c.l.b16 %v861
    %v1123 = vunpack.c.h.b16 %v861
    %v1124 = vunpack.c.l.b16 %v862
    %v1125 = vunpack.c.h.b16 %v862
    %v1126 = vunpack.c.l.b16 %v863
    %v1127 = vunpack.c.h.b16 %v863
    %v1128 = vunpack.c.l.b16 %v864
    %v1129 = vunpack.c.h.b16 %v864
    %v1130 = vunpack.c.l.b16 %v865
    %v1131 = vunpack.c.h.b16 %v865
    %v1132 = vunpack.c.l.b16 %v866
    %v1133 = vunpack.c.h.b16 %v866
    %v1134 = vunpack.c.l.b16 %v867
    %v1135 = vunpack.c.h.b16 %v867
    %v1136 = vunpack.c.l.b16 %v868
    %v1137 = vunpack.c.h.b16 %v868
    %v1138 = vunpack.c.l.b16 %v869
    %v1139 = vunpack.c.h.b16 %v869
    %v1140 = vunpack.c.l.b16 %v870
    %v1141 = vunpack.c.h.b16 %v870
    %v1142 = vunpack.c.l.b16 %v871
    %v1143 = vunpack.c.h.b16 %v871
    %v1144 = vunpack.c.l.b16 %v872
    %v1145 = vunpack.c.h.b16 %v872
    %v1146 = vunpack.c.l.b16 %v873
    %v1147 = vunpack.c.h.b16 %v873
    %v1148 = vunpack.c.l.b16 %v874
    %v1149 = vunpack.c.h.b16 %v874
    %v1150 = vunpack.c.l.b16 %v875
    %v1151 = vunpack.c.h.b16 %v875
    %v1152 = vunpack.c.l.b16 %v876
    %v1153 = vunpack.c.h.b16 %v876
    %v1154 = vunpack.c.l.b16 %v877
    %v1155 = vunpack.c.h.b16 %v877
    %v1156 = vunpack.c.l.b16 %v878
    %v1157 = vunpack.c.h.b16 %v878
    %v1158 = vunpack.c.l.b16 %v879
    %v1159 = vunpack.c.h.b16 %v879
    %v1160 = vunpack.c.l.b16 %v880
    %v1161 = vunpack.c.h.b16 %v880
    %v1162 = vunpack.c.l.b16 %v881
    %v1163 = vunpack.c.h.b16 %v881
    %v1164 = vunpack.c.l.b16 %v882
    %v1165 = vunpack.c.h.b16 %v882
    %v1166 = vunpack.c.l.b16 %v883
    %v1167 = vunpack.c.h.b16 %v883
    %v1168 = vunpack.c.l.b16 %v884
    %v1169 = vunpack.c.h.b16 %v884
    %v1170 = vunpack.c.l.b16 %v885
    %v1171 = vunpack.c.h.b16 %v885
    %v1172 = vunpack.c.l.b16 %v886
    %v1173 = vunpack.c.h.b16 %v886
    %v1174 = vunpack.c.l.b16 %v887
    %v1175 = vunpack.c.h.b16 %v887
    %v1176 = vunpack.c.l.b16 %v888
    %v1177 = vunpack.c.h.b16 %v888
    %v1178 = vunpack.c.l.b16 %v889
    %v1179 = vunpack.c.h.b16 %v889
    %v1180 = vunpack.c.l.b16 %v890
    %v1181 = vunpack.c.h.b16 %v890
    %v1182 = vunpack.c.l.b16 %v891
    %v1183 = vunpack.c.h.b16 %v891
    %v1184 = vunpack.c.l.b16 %v892
    %v1185 = vunpack.c.h.b16 %v892
    %v1186 = vunpack.c.l.b16 %v893
    %v1187 = vunpack.c.h.b16 %v893
    %v1188 = vunpack.c.l.b16 %v894
    %v1189 = vunpack.c.h.b16 %v894
    %v1190 = vunpack.c.l.b16 %v895
    %v1191 = vunpack.c.h.b16 %v895
    %v1192 = vunpack.c.l.b16 %v896
    %v1193 = vunpack.c.h.b16 %v896
    %v1194 = vunpack.c.l.b16 %v897
    %v1195 = vunpack.c.h.b16 %v897
    %v1196 = vunpack.c.l.b16 %v898
    %v1197 = vunpack.c.h.b16 %v898
    %v1198 = vunpack.c.l.b16 %v899
    %v1199 = vunpack.c.h.b16 %v899
    %v1200 = vunpack.c.l.b16 %v900
    %v1201 = vunpack.c.h.b16 %v900
    %v1202 = vunpack.c.l.b16 %v901
    %v1203 = vunpack.c.h.b16 %v901
    %v1204 = vunpack.c.l.b16 %v902
    %v1205 = vunpack.c.h.b16 %v902
    %v1206 = vunpack.c.l.b16 %v903
    %v1207 = vunpack.c.h.b16 %v903
    %v1208 = vunpack.c.l.b16 %v904
    %v1209 = vunpack.c.h.b16 %v904
    %v1210 = vunpack.c.l.b16 %v905
    %v1211 = vunpack.c.h.b16 %v905
    %v1212 = vunpack.c.l.b16 %v906
    %v1213 = vunpack.c.h.b16 %v906
    %v1214 = vunpack.c.l.b16 %v907
    %v1215 = vunpack.c.h.b16 %v907
    %v1216 = vunpack.c.l.b16 %v908
    %v1217 = vunpack.c.h.b16 %v908
    %v1218 = vunpack.c.l.b16 %v909
    %v1219 = vunpack.c.h.b16 %v909
    %v1220 = vunpack.c.l.b16 %v910
    %v1221 = vunpack.c.h.b16 %v910
    %v1222 = vunpack.c.l.b16 %v911
    %v1223 = vunpack.c.h.b16 %v911
    %v1224 = vunpack.c.l.b16 %v912
    %v1225 = vunpack.c.h.b16 %v912
    %v1226 = vunpack.c.l.b16 %v913
    %v1227 = vunpack.c.h.b16 %v913
    %v1228 = vunpack.c.l.b16 %v914
    %v1229 = vunpack.c.h.b16 %v914
    %v1230 = vunpack.c.l.b16 %v915
    %v1231 = vunpack.c.h.b16 %v915
    %v1232 = vunpack.c.l.b16 %v916
    %v1233 = vunpack.c.h.b16 %v916
    %v1234 = vunpack.c.l.b16 %v917
    %v1235 = vunpack.c.h.b16 %v917
    %v1236 = vunpack.c.l.b16 %v918
    %v1237 = vunpack.c.h.b16 %v918
    %v1238 = vunpack.c.l.b16 %v919
    %v1239 = vunpack.c.h.b16 %v919
    %v1240 = vunpack.c.l.b16 %v920
    %v1241 = vunpack.c.h.b16 %v920
    %v1242 = vunpack.c.l.b16 %v921
    %v1243 = vunpack.c.h.b16 %v921
    %v1244 = vunpack.c.l.b16 %v922
    %v1245 = vunpack.c.h.b16 %v922
    %v1246 = vunpack.c.l.b16 %v923
    %v1247 = vunpack.c.h.b16 %v923
    %v1248 = vunpack.c.l.b16 %v924
    %v1249 = vunpack.c.h.b16 %v924
    %v1250 = vunpack.c.l.b16 %v925
    %v1251 = vunpack.c.h.b16 %v925
    %v1252 = vunpack.c.l.b16 %v926
    %v1253 = vunpack.c.h.b16 %v926
    %v1254 = vunpack.c.l.b16 %v927
    %v1255 = vunpack.c.h.b16 %v927
    %v1256 = vunpack.c.l.b16 %v928
    %v1257 = vunpack.c.h.b16 %v928
    %v1258 = vunpack.c.l.b16 %v929
    %v1259 = vunpack.c.h.b16 %v929
    %v1260 = vunpack.c.l.b16 %v930
    %v1261 = vunpack.c.h.b16 %v930
    %v1262 = vunpack.c.l.b16 %v931
    %v1263 = vunpack.c.h.b16 %v931
    %v1264 = vunpack.c.l.b16 %v932
    %v1265 = vunpack.c.h.b16 %v932
    %v1266 = vunpack.c.l.b16 %v933
    %v1267 = vunpack.c.h.b16 %v933
    %v1268 = vunpack.c.l.b16 %v934
    %v1269 = vunpack.c.h.b16 %v934
    %v1270 = vunpack.c.l.b16 %v935
    %v1271 = vunpack.c.h.b16 %v935
    %v1272 = vunpack.c.l.b16 %v936
    %v1273 = vunpack.c.h.b16 %v936
    %v1274 = vunpack.c.l.b16 %v937
    %v1275 = vunpack.c.h.b16 %v937
    %v1276 = vunpack.c.l.b16 %v938
    %v1277 = vunpack.c.h.b16 %v938
    %v1278 = vunpack.c.l.b16 %v939
    %v1279 = vunpack.c.h.b16 %v939
    %v1280 = vunpack.c.l.b16 %v940
    %v1281 = vunpack.c.h.b16 %v940
    %v1282 = vunpack.c.l.b16 %v941
    %v1283 = vunpack.c.h.b16 %v941
    %v1284 = vunpack.c.l.b16 %v942
    %v1285 = vunpack.c.h.b16 %v942
    %v1286 = vunpack.c.l.b16 %v943
    %v1287 = vunpack.c.h.b16 %v943
    %v1288 = vunpack.c.l.b16 %v944
    %v1289 = vunpack.c.h.b16 %v944
    %v1290 = vunpack.c.l.b16 %v945
    %v1291 = vunpack.c.h.b16 %v945
    %v1292 = vunpack.c.l.b16 %v946
    %v1293 = vunpack.c.h.b16 %v946
    %v1294 = vunpack.c.l.b16 %v947
    %v1295 = vunpack.c.h.b16 %v947
    %v1296 = vunpack.c.l.b16 %v948
    %v1297 = vunpack.c.h.b16 %v948
    %v1298 = vunpack.c.l.b16 %v949
    %v1299 = vunpack.c.h.b16 %v949
    %v1300 = vunpack.c.l.b16 %v950
    %v1301 = vunpack.c.h.b16 %v950
    %v1302 = vunpack.c.l.b16 %v951
    %v1303 = vunpack.c.h.b16 %v951
    %v1304 = vunpack.c.l.b16 %v952
    %v1305 = vunpack.c.h.b16 %v952
    %v1306 = vunpack.c.l.b16 %v953
    %v1307 = vunpack.c.h.b16 %v953
    %v1308 = vunpack.c.l.b16 %v954
    %v1309 = vunpack.c.h.b16 %v954
    %v1310 = vunpack.c.l.b16 %v955
    %v1311 = vunpack.c.h.b16 %v955
    %v1312 = vunpack.c.l.b16 %v956
    %v1313 = vunpack.c.h.b16 %v956
    %v1314 = vunpack.c.l.b16 %v957
    %v1315 = vunpack.c.h.b16 %v957
    %v1316 = vunpack.c.l.b16 %v958
    %v1317 = vunpack.c.h.b16 %v958
    %v1318 = vunpack.c.l.b16 %v959
    %v1319 = vunpack.c.h.b16 %v959
    %v1320 = vunpack.c.l.b16 %v960
    %v1321 = vunpack.c.h.b16 %v960
    %v1322 = vunpack.c.l.b16 %v961
    %v1323 = vunpack.c.h.b16 %v961
    %v1324 = vunpack.c.l.b16 %v962
    %v1325 = vunpack.c.h.b16 %v962
    %v1326 = vunpack.c.l.b16 %v963
    %v1327 = vunpack.c.h.b16 %v963
    %v1328 = vunpack.c.l.b16 %v964
    %v1329 = vunpack.c.h.b16 %v964
    %v1330 = vunpack.c.l.b16 %v965
    %v1331 = vunpack.c.h.b16 %v965
    %v1332 = vunpack.c.l.b16 %v966
    %v1333 = vunpack.c.h.b16 %v966
    %v1334 = vunpack.c.l.b16 %v967
    %v1335 = vunpack.c.h.b16 %v967
    %v1336 = vunpack.c.l.b16 %v968
    %v1337 = vunpack.c.h.b16 %v968
    %v1338 = vunpack.c.l.b16 %v969
    %v1339 = vunpack.c.h.b16 %v969
    %v1340 = vunpack.c.l.b16 %v970
    %v1341 = vunpack.c.h.b16 %v970
    %v1342 = vunpack.c.l.b16 %v971
    %v1343 = vunpack.c.h.b16 %v971
    %v1344 = vunpack.c.l.b16 %v972
    %v1345 = vunpack.c.h.b16 %v972
    %v1346 = vunpack.c.l.b16 %v973
    %v1347 = vunpack.c.h.b16 %v973
    %v1348 = vunpack.c.l.b16 %v974
    %v1349 = vunpack.c.h.b16 %v974
    %v1350 = vunpack.c.l.b16 %v975
    %v1351 = vunpack.c.h.b16 %v975
    %v1352 = vunpack.c.l.b16 %v976
    %v1353 = vunpack.c.h.b16 %v976
    %v1354 = vunpack.c.l.b16 %v977
    %v1355 = vunpack.c.h.b16 %v977
    %v1356 = vunpack.c.l.b16 %v978
    %v1357 = vunpack.c.h.b16 %v978
    %v1358 = vunpack.c.l.b16 %v979
    %v1359 = vunpack.c.h.b16 %v979
    %v1360 = vunpack.c.l.b16 %v980
    %v1361 = vunpack.c.h.b16 %v980
    %v1362 = vunpack.c.l.b16 %v981
    %v1363 = vunpack.c.h.b16 %v981
    %v1364 = vunpack.c.l.b16 %v982
    %v1365 = vunpack.c.h.b16 %v982
    %v1366 = vunpack.c.l.b16 %v983
    %v1367 = vunpack.c.h.b16 %v983
    %v1368 = vpack.c.b16 %v1120, %v1112
    %v1369 = vpack.c.b16 %v1121, %v1113
    %v1370 = vpack.c.b16 %v1122, %v1114
    %v1371 = vpack.c.b16 %v1123, %v1115
    %v1372 = vpack.c.b16 %v1124, %v1116
    %v1373 = vpack.c.b16 %v1125, %v1117
    %v1374 = vpack.c.b16 %v1126, %v1118
    %v1375 = vpack.c.b16 %v1127, %v1119
    %v1376 = vpack.c.b16 %v1136, %v1128
    %v1377 = vpack.c.b16 %v1137, %v1129
    %v1378 = vpack.c.b16 %v1138, %v1130
    %v1379 = vpack.c.b16 %v1139, %v1131
    %v1380 = vpack.c.b16 %v1140, %v1132
    %v1381 = vpack.c.b16 %v1141, %v1133
    %v1382 = vpack.c.b16 %v1142, %v1134
    %v1383 = vpack.c.b16 %v1143, %v1135
    %v1384 = vpack.c.b16 %v1152, %v1144
    %v1385 = vpack.c.b16 %v1153, %v1145
    %v1386 = vpack.c.b16 %v1154, %v1146
    %v1387 = vpack.c.b16 %v1155, %v1147
    %v1388 = vpack.c.b16 %v1156, %v1148
    %v1389 = vpack.c.b16 %v1157, %v1149
    %v1390 = vpack.c.b16 %v1158, %v1150
    %v1391 = vpack.c.b16 %v1159, %v1151
    %v1392 = vpack.c.b16 %v1168, %v1160
    %v1393 = vpack.c.b16 %v1169, %v1161
    %v1394 = vpack.c.b16 %v1170, %v1162
    %v1395 = vpack.c.b16 %v1171, %v1163
    %v1396 = vpack.c.b16 %v1172, %v1164
    %v1397 = vpack.c.b16 %v1173, %v1165
    %v1398 = vpack.c.b16 %v1174, %v1166
    %v1399 = vpack.c.b16 %v1175, %v1167
    %v1400 = vpack.c.b16 %v1184, %v1176
    %v1401 = vpack.c.b16 %v1185, %v1177
    %v1402 = vpack.c.b16 %v1186, %v1178
    %v1403 = vpack.c.b16 %v1187, %v1179
    %v1404 = vpack.c.b16 %v1188, %v1180
    %v1405 = vpack.c.b16 %v1189, %v1181
    %v1406 = vpack.c.b16 %v1190, %v1182
    %v1407 = vpack.c.b16 %v1191, %v1183
    %v1408 = vpack.c.b16 %v1200, %v1192
    %v1409 = vpack.c.b16 %v1201, %v1193
    %v1410 = vpack.c.b16 %v1202, %v1194
    %v1411 = vpack.c.b16 %v1203, %v1195
    %v1412 = vpack.c.b16 %v1204, %v1196
    %v1413 = vpack.c.b16 %v1205, %v1197
    %v1414 = vpack.c.b16 %v1206, %v1198
    %v1415 = vpack.c.b16 %v1207, %v1199
    %v1416 = vpack.c.b16 %v1216, %v1208
    %v1417 = vpack.c.b16 %v1217, %v1209
    %v1418 = vpack.c.b16 %v1218, %v1210
    %v1419 = vpack.c.b16 %v1219, %v1211
    %v1420 = vpack.c.b16 %v1220, %v1212
    %v1421 = vpack.c.b16 %v1221, %v1213
    %v1422 = vpack.c.b16 %v1222, %v1214
    %v1423 = vpack.c.b16 %v1223, %v1215
    %v1424 = vpack.c.b16 %v1232, %v1224
    %v1425 = vpack.c.b16 %v1233, %v1225
    %v1426 = vpack.c.b16 %v1234, %v1226
    %v1427 = vpack.c.b16 %v1235, %v1227
    %v1428 = vpack.c.b16 %v1236, %v1228
    %v1429 = vpack.c.b16 %v1237, %v1229
    %v1430 = vpack.c.b16 %v1238, %v1230
    %v1431 = vpack.c.b16 %v1239, %v1231
    %v1432 = vpack.c.b16 %v1248, %v1240
    %v1433 = vpack.c.b16 %v1249, %v1241
    %v1434 = vpack.c.b16 %v1250, %v1242
    %v1435 = vpack.c.b16 %v1251, %v1243
    %v1436 = vpack.c.b16 %v1252, %v1244
    %v1437 = vpack.c.b16 %v1253, %v1245
    %v1438 = vpack.c.b16 %v1254, %v1246
    %v1439 = vpack.c.b16 %v1255, %v1247
    %v1440 = vpack.c.b16 %v1264, %v1256
    %v1441 = vpack.c.b16 %v1265, %v1257
    %v1442 = vpack.c.b16 %v1266, %v1258
    %v1443 = vpack.c.b16 %v1267, %v1259
    %v1444 = vpack.c.b16 %v1268, %v1260
    %v1445 = vpack.c.b16 %v1269, %v1261
    %v1446 = vpack.c.b16 %v1270, %v1262
    %v1447 = vpack.c.b16 %v1271, %v1263
    %v1448 = vpack.c.b16 %v1280, %v1272
    %v1449 = vpack.c.b16 %v1281, %v1273
    %v1450 = vpack.c.b16 %v1282, %v1274
    %v1451 = vpack.c.b16 %v1283, %v1275
    %v1452 = vpack.c.b16 %v1284, %v1276
    %v1453 = vpack.c.b16 %v1285, %v1277
    %v1454 = vpack.c.b16 %v1286, %v1278
    %v1455 = vpack.c.b16 %v1287, %v1279
    %v1456 = vpack.c.b16 %v1296, %v1288
    %v1457 = vpack.c.b16 %v1297, %v1289
    %v1458 = vpack.c.b16 %v1298, %v1290
    %v1459 = vpack.c.b16 %v1299, %v1291
    %v1460 = vpack.c.b16 %v1300, %v1292
    %v1461 = vpack.c.b16 %v1301, %v1293
    %v1462 = vpack.c.b16 %v1302, %v1294
    %v1463 = vpack.c.b16 %v1303, %v1295
    %v1464 = vpack.c.b16 %v1312, %v1304
    %v1465 = vpack.c.b16 %v1313, %v1305
    %v1466 = vpack.c.b16 %v1314, %v1306
    %v1467 = vpack.c.b16 %v1315, %v1307
    %v1468 = vpack.c.b16 %v1316, %v1308
    %v1469 = vpack.c.b16 %v1317, %v1309
    %v1470 = vpack.c.b16 %v1318, %v1310
    %v1471 = vpack.c.b16 %v1319, %v1311
    %v1472 = vpack.c.b16 %v1328, %v1320
    %v1473 = vpack.c.b16 %v1329, %v1321
    %v1474 = vpack.c.b16 %v1330, %v1322
    %v1475 = vpack.c.b16 %v1331, %v1323
    %v1476 = vpack.c.b16 %v1332, %v1324
    %v1477 = vpack.c.b16 %v1333, %v1325
    %v1478 = vpack.c.b16 %v1334, %v1326
    %v1479 = vpack.c.b16 %v1335, %v1327
    %v1480 = vpack.c.b16 %v1344, %v1336
    %v1481 = vpack.c.b16 %v1345, %v1337
    %v1482 = vpack.c.b16 %v1346, %v1338
    %v1483 = vpack.c.b16 %v1347, %v1339
    %v1484 = vpack.c.b16 %v1348, %v1340
    %v1485 = vpack.c.b16 %v1349, %v1341
    %v1486 = vpack.c.b16 %v1350, %v1342
    %v1487 = vpack.c.b16 %v1351, %v1343
    %v1488 = vpack.c.b16 %v1360, %v1352
    %v1489 = vpack.c.b16 %v1361, %v1353
    %v1490 = vpack.c.b16 %v1362, %v1354
    %v1491 = vpack.c.b16 %v1363, %v1355
    %v1492 = vpack.c.b16 %v1364, %v1356
    %v1493 = vpack.c.b16 %v1365, %v1357
    %v1494 = vpack.c.b16 %v1366, %v1358
    %v1495 = vpack.c.b16 %v1367, %v1359
    %1624 = vmatpush.bf16.msra.mxu0 %v1424
    %1625 = vmatpush.bf16.msra.mxu0 %v1416
    %1626 = vmatpush.bf16.msra.mxu0 %v1408
    %1627 = vmatpush.bf16.msra.mxu0 %v1400
    %1628 = vmatpush.bf16.msra.mxu0 %v1392
    %1629 = vmatpush.bf16.msra.mxu0 %v1384
    %1630 = vmatpush.bf16.msra.mxu0 %v1376
    %1631 = vmatpush.bf16.msra.mxu0 %v1368
    %1632 = vmatmul.bf16.gmra.mxu0 0
    %v1633 = vpop.f32.mrf.mxu0
    %v1634 = vadd.f32 0.0, %v1633
    %v1635 = vpop.f32.mrf.mxu0
    %1636 = vdwg.mxu0
    %1637 = vmatpush.bf16.msra.mxu0 %v1488
    %1638 = vmatpush.bf16.msra.mxu0 %v1480
    %1639 = vmatpush.bf16.msra.mxu0 %v1472
    %1640 = vmatpush.bf16.msra.mxu0 %v1464
    %1641 = vmatpush.bf16.msra.mxu0 %v1456
    %1642 = vmatpush.bf16.msra.mxu0 %v1448
    %1643 = vmatpush.bf16.msra.mxu0 %v1440
    %1644 = vmatpush.bf16.msra.mxu0 %v1432
    %1645 = vmatmul.bf16.gmra.mxu0 0
    %v1646 = vpop.f32.mrf.mxu0
    %v1647 = vadd.f32 %v1634, %v1646
    %v1648 = vpop.f32.mrf.mxu0
    %1649 = vdwg.mxu0
    %1650 = vmatpush.bf16.msra.mxu0 %v1425
    %1651 = vmatpush.bf16.msra.mxu0 %v1417
    %1652 = vmatpush.bf16.msra.mxu0 %v1409
    %1653 = vmatpush.bf16.msra.mxu0 %v1401
    %1654 = vmatpush.bf16.msra.mxu0 %v1393
    %1655 = vmatpush.bf16.msra.mxu0 %v1385
    %1656 = vmatpush.bf16.msra.mxu0 %v1377
    %1657 = vmatpush.bf16.msra.mxu0 %v1369
    %1658 = vmatmul.bf16.gmra.mxu0 0
    %v1659 = vpop.f32.mrf.mxu0
    %v1660 = vadd.f32 0.0, %v1659
    %v1661 = vpop.f32.mrf.mxu0
    %1662 = vdwg.mxu0
    %1663 = vmatpush.bf16.msra.mxu0 %v1489
    %1664 = vmatpush.bf16.msra.mxu0 %v1481
    %1665 = vmatpush.bf16.msra.mxu0 %v1473
    %1666 = vmatpush.bf16.msra.mxu0 %v1465
    %1667 = vmatpush.bf16.msra.mxu0 %v1457
    %1668 = vmatpush.bf16.msra.mxu0 %v1449
    %1669 = vmatpush.bf16.msra.mxu0 %v1441
    %1670 = vmatpush.bf16.msra.mxu0 %v1433
    %1671 = vmatmul.bf16.gmra.mxu0 0
    %v1672 = vpop.f32.mrf.mxu0
    %v1673 = vadd.f32 %v1660, %v1672
    %v1674 = vpop.f32.mrf.mxu0
    %1675 = vdwg.mxu0
    %1676 = vmatpush.bf16.msra.mxu0 %v1426
    %1677 = vmatpush.bf16.msra.mxu0 %v1418
    %1678 = vmatpush.bf16.msra.mxu0 %v1410
    %1679 = vmatpush.bf16.msra.mxu0 %v1402
    %1680 = vmatpush.bf16.msra.mxu0 %v1394
    %1681 = vmatpush.bf16.msra.mxu0 %v1386
    %1682 = vmatpush.bf16.msra.mxu0 %v1378
    %1683 = vmatpush.bf16.msra.mxu0 %v1370
    %1684 = vmatmul.bf16.gmra.mxu0 0
    %v1685 = vpop.f32.mrf.mxu0
    %v1686 = vadd.f32 0.0, %v1685
    %v1687 = vpop.f32.mrf.mxu0
    %1688 = vdwg.mxu0
    %1689 = vmatpush.bf16.msra.mxu0 %v1490
    %1690 = vmatpush.bf16.msra.mxu0 %v1482
    %1691 = vmatpush.bf16.msra.mxu0 %v1474
    %1692 = vmatpush.bf16.msra.mxu0 %v1466
    %1693 = vmatpush.bf16.msra.mxu0 %v1458
    %1694 = vmatpush.bf16.msra.mxu0 %v1450
    %1695 = vmatpush.bf16.msra.mxu0 %v1442
    %1696 = vmatpush.bf16.msra.mxu0 %v1434
    %1697 = vmatmul.bf16.gmra.mxu0 0
    %v1698 = vpop.f32.mrf.mxu0
    %v1699 = vadd.f32 %v1686, %v1698
    %v1700 = vpop.f32.mrf.mxu0
    %1701 = vdwg.mxu0
    %1702 = vmatpush.bf16.msra.mxu0 %v1427
    %1703 = vmatpush.bf16.msra.mxu0 %v1419
    %1704 = vmatpush.bf16.msra.mxu0 %v1411
    %1705 = vmatpush.bf16.msra.mxu0 %v1403
    %1706 = vmatpush.bf16.msra.mxu0 %v1395
    %1707 = vmatpush.bf16.msra.mxu0 %v1387
    %1708 = vmatpush.bf16.msra.mxu0 %v1379
    %1709 = vmatpush.bf16.msra.mxu0 %v1371
    %1710 = vmatmul.bf16.gmra.mxu0 0
    %v1711 = vpop.f32.mrf.mxu0
    %v1712 = vadd.f32 0.0, %v1711
    %v1713 = vpop.f32.mrf.mxu0
    %1714 = vdwg.mxu0
    %1715 = vmatpush.bf16.msra.mxu0 %v1491
    %1716 = vmatpush.bf16.msra.mxu0 %v1483
    %1717 = vmatpush.bf16.msra.mxu0 %v1475
    %1718 = vmatpush.bf16.msra.mxu0 %v1467
    %1719 = vmatpush.bf16.msra.mxu0 %v1459
    %1720 = vmatpush.bf16.msra.mxu0 %v1451
    %1721 = vmatpush.bf16.msra.mxu0 %v1443
    %1722 = vmatpush.bf16.msra.mxu0 %v1435
    %1723 = vmatmul.bf16.gmra.mxu0 0
    %v1724 = vpop.f32.mrf.mxu0
    %v1725 = vadd.f32 %v1712, %v1724
    %v1726 = vpop.f32.mrf.mxu0
    %1727 = vdwg.mxu0
    %1728 = vmatpush.bf16.msra.mxu0 %v1428
    %1729 = vmatpush.bf16.msra.mxu0 %v1420
    %1730 = vmatpush.bf16.msra.mxu0 %v1412
    %1731 = vmatpush.bf16.msra.mxu0 %v1404
    %1732 = vmatpush.bf16.msra.mxu0 %v1396
    %1733 = vmatpush.bf16.msra.mxu0 %v1388
    %1734 = vmatpush.bf16.msra.mxu0 %v1380
    %1735 = vmatpush.bf16.msra.mxu0 %v1372
    %1736 = vmatmul.bf16.gmra.mxu0 0
    %v1737 = vpop.f32.mrf.mxu0
    %v1738 = vadd.f32 0.0, %v1737
    %v1739 = vpop.f32.mrf.mxu0
    %1740 = vdwg.mxu0
    %1741 = vmatpush.bf16.msra.mxu0 %v1492
    %1742 = vmatpush.bf16.msra.mxu0 %v1484
    %1743 = vmatpush.bf16.msra.mxu0 %v1476
    %1744 = vmatpush.bf16.msra.mxu0 %v1468
    %1745 = vmatpush.bf16.msra.mxu0 %v1460
    %1746 = vmatpush.bf16.msra.mxu0 %v1452
    %1747 = vmatpush.bf16.msra.mxu0 %v1444
    %1748 = vmatpush.bf16.msra.mxu0 %v1436
    %1749 = vmatmul.bf16.gmra.mxu0 0
    %v1750 = vpop.f32.mrf.mxu0
    %v1751 = vadd.f32 %v1738, %v1750
    %v1752 = vpop.f32.mrf.mxu0
    %1753 = vdwg.mxu0
    %1754 = vmatpush.bf16.msra.mxu0 %v1429
    %1755 = vmatpush.bf16.msra.mxu0 %v1421
    %1756 = vmatpush.bf16.msra.mxu0 %v1413
    %1757 = vmatpush.bf16.msra.mxu0 %v1405
    %1758 = vmatpush.bf16.msra.mxu0 %v1397
    %1759 = vmatpush.bf16.msra.mxu0 %v1389
    %1760 = vmatpush.bf16.msra.mxu0 %v1381
    %1761 = vmatpush.bf16.msra.mxu0 %v1373
    %1762 = vmatmul.bf16.gmra.mxu0 0
    %v1763 = vpop.f32.mrf.mxu0
    %v1764 = vadd.f32 0.0, %v1763
    %v1765 = vpop.f32.mrf.mxu0
    %1766 = vdwg.mxu0
    %1767 = vmatpush.bf16.msra.mxu0 %v1493
    %1768 = vmatpush.bf16.msra.mxu0 %v1485
    %1769 = vmatpush.bf16.msra.mxu0 %v1477
    %1770 = vmatpush.bf16.msra.mxu0 %v1469
    %1771 = vmatpush.bf16.msra.mxu0 %v1461
    %1772 = vmatpush.bf16.msra.mxu0 %v1453
    %1773 = vmatpush.bf16.msra.mxu0 %v1445
    %1774 = vmatpush.bf16.msra.mxu0 %v1437
    %1775 = vmatmul.bf16.gmra.mxu0 0
    %v1776 = vpop.f32.mrf.mxu0
    %v1777 = vadd.f32 %v1764, %v1776
    %v1778 = vpop.f32.mrf.mxu0
    %1779 = vdwg.mxu0
    %1780 = vmatpush.bf16.msra.mxu0 %v1430
    %1781 = vmatpush.bf16.msra.mxu0 %v1422
    %1782 = vmatpush.bf16.msra.mxu0 %v1414
    %1783 = vmatpush.bf16.msra.mxu0 %v1406
    %1784 = vmatpush.bf16.msra.mxu0 %v1398
    %1785 = vmatpush.bf16.msra.mxu0 %v1390
    %1786 = vmatpush.bf16.msra.mxu0 %v1382
    %1787 = vmatpush.bf16.msra.mxu0 %v1374
    %1788 = vmatmul.bf16.gmra.mxu0 0
    %v1789 = vpop.f32.mrf.mxu0
    %v1790 = vadd.f32 0.0, %v1789
    %v1791 = vpop.f32.mrf.mxu0
    %1792 = vdwg.mxu0
    %1793 = vmatpush.bf16.msra.mxu0 %v1494
    %1794 = vmatpush.bf16.msra.mxu0 %v1486
    %1795 = vmatpush.bf16.msra.mxu0 %v1478
    %1796 = vmatpush.bf16.msra.mxu0 %v1470
    %1797 = vmatpush.bf16.msra.mxu0 %v1462
    %1798 = vmatpush.bf16.msra.mxu0 %v1454
    %1799 = vmatpush.bf16.msra.mxu0 %v1446
    %1800 = vmatpush.bf16.msra.mxu0 %v1438
    %1801 = vmatmul.bf16.gmra.mxu0 0
    %v1802 = vpop.f32.mrf.mxu0
    %v1803 = vadd.f32 %v1790, %v1802
    %v1804 = vpop.f32.mrf.mxu0
    %1805 = vdwg.mxu0
    %1806 = vmatpush.bf16.msra.mxu0 %v1431
    %1807 = vmatpush.bf16.msra.mxu0 %v1423
    %1808 = vmatpush.bf16.msra.mxu0 %v1415
    %1809 = vmatpush.bf16.msra.mxu0 %v1407
    %1810 = vmatpush.bf16.msra.mxu0 %v1399
    %1811 = vmatpush.bf16.msra.mxu0 %v1391
    %1812 = vmatpush.bf16.msra.mxu0 %v1383
    %1813 = vmatpush.bf16.msra.mxu0 %v1375
    %1814 = vmatmul.bf16.gmra.mxu0 0
    %v1815 = vpop.f32.mrf.mxu0
    %v1816 = vadd.f32 0.0, %v1815
    %v1817 = vpop.f32.mrf.mxu0
    %1818 = vdwg.mxu0
    %1819 = vmatpush.bf16.msra.mxu0 %v1495
    %1820 = vmatpush.bf16.msra.mxu0 %v1487
    %1821 = vmatpush.bf16.msra.mxu0 %v1479
    %1822 = vmatpush.bf16.msra.mxu0 %v1471
    %1823 = vmatpush.bf16.msra.mxu0 %v1463
    %1824 = vmatpush.bf16.msra.mxu0 %v1455
    %1825 = vmatpush.bf16.msra.mxu0 %v1447
    %1826 = vmatpush.bf16.msra.mxu0 %v1439
    %1827 = vmatmul.bf16.gmra.mxu0 0
    %v1828 = vpop.f32.mrf.mxu0
    %v1829 = vadd.f32 %v1816, %v1828
    %v1830 = vpop.f32.mrf.mxu0
    %1831 = vdwg.mxu0
    %v1832 = vadd.f32 %v848, %v1647
    %v1833 = vadd.f32 %v849, %v1673
    %v1834 = vadd.f32 %v850, %v1699
    %v1835 = vadd.f32 %v851, %v1725
    %v1836 = vadd.f32 %v852, %v1751
    %v1837 = vadd.f32 %v853, %v1777
    %v1838 = vadd.f32 %v854, %v1803
    %v1839 = vadd.f32 %v855, %v1829
    %v1840 = vxor.u32 %v1832, 2147483648
    %v1841 = vxor.u32 %v1833, 2147483648
    %v1842 = vxor.u32 %v1834, 2147483648
    %v1843 = vxor.u32 %v1835, 2147483648
    %v1844 = vxor.u32 %v1836, 2147483648
    %v1845 = vxor.u32 %v1837, 2147483648
    %v1846 = vmul.f32 %v1840, 1.442695
    %v1847 = vpow.pop %v1846
    %v1848 = vmul.f32 %v1841, 1.442695
    %v1849 = vpow.pop %v1848
    %v1850 = vmul.f32 %v1842, 1.442695
    %v1851 = vpow.pop %v1850
    %v1852 = vmul.f32 %v1843, 1.442695
    %v1853 = vpow.pop %v1852
    %v1854 = vmul.f32 %v1844, 1.442695
    %v1855 = vpow.pop %v1854
    %v1856 = vmul.f32 %v1845, 1.442695
    %v1857 = vpow.pop %v1856
    %v1858 = vadd.f32 %v1847, 1.0
    %v1859 = vadd.f32 %v1849, 1.0
    %v1860 = vadd.f32 %v1851, 1.0
    %v1861 = vadd.f32 %v1853, 1.0
    %v1862 = vadd.f32 %v1855, 1.0
    %v1863 = vadd.f32 %v1857, 1.0
    %v1864 = vrcp.pop %v1858
    %v1865 = vmul.f32 %v1858, %v1864
    %v1866 = vsub.f32 1.0, %v1865
    %v1867 = vmul.f32 %v1864, %v1866
    %v1868 = vadd.f32 %v1864, %v1867
    %vm1869 = vweird.f32 %v1858
    %vm1870 = vweird.f32 %v1864
    %vm1871 = vmor %vm1869, %vm1870
    %v1872 = vsel %vm1871, %v1864, %v1868
    %v1873 = vand.u32 2147483647, %v1858
    %vm1874 = vcmp.eq.f32.partialorder %v1873, 8.507059e+37
    %v1875 = vand.u32 %v1858, 2147483648
    %v1876 = vor.u32 1.1754944e-38, %v1875
    %v1877 = vsel %vm1874, %v1876, %v1872
    %v1878 = vmul.f32 1.0, %v1877
    %v1879 = vrcp.pop %v1859
    %v1880 = vmul.f32 %v1859, %v1879
    %v1881 = vsub.f32 1.0, %v1880
    %v1882 = vmul.f32 %v1879, %v1881
    %v1883 = vadd.f32 %v1879, %v1882
    %vm1884 = vweird.f32 %v1859
    %vm1885 = vweird.f32 %v1879
    %vm1886 = vmor %vm1884, %vm1885
    %v1887 = vsel %vm1886, %v1879, %v1883
    %v1888 = vand.u32 2147483647, %v1859
    %vm1889 = vcmp.eq.f32.partialorder %v1888, 8.507059e+37
    %v1890 = vand.u32 %v1859, 2147483648
    %v1891 = vor.u32 1.1754944e-38, %v1890
    %v1892 = vsel %vm1889, %v1891, %v1887
    %v1893 = vmul.f32 1.0, %v1892
    %v1894 = vrcp.pop %v1860
    %v1895 = vmul.f32 %v1860, %v1894
    %v1896 = vsub.f32 1.0, %v1895
    %v1897 = vmul.f32 %v1894, %v1896
    %v1898 = vadd.f32 %v1894, %v1897
    %vm1899 = vweird.f32 %v1860
    %vm1900 = vweird.f32 %v1894
    %vm1901 = vmor %vm1899, %vm1900
    %v1902 = vsel %vm1901, %v1894, %v1898
    %v1903 = vand.u32 2147483647, %v1860
    %vm1904 = vcmp.eq.f32.partialorder %v1903, 8.507059e+37
    %v1905 = vand.u32 %v1860, 2147483648
    %v1906 = vor.u32 1.1754944e-38, %v1905
    %v1907 = vsel %vm1904, %v1906, %v1902
    %v1908 = vmul.f32 1.0, %v1907
    %v1909 = vrcp.pop %v1861
    %v1910 = vmul.f32 %v1861, %v1909
    %v1911 = vsub.f32 1.0, %v1910
    %v1912 = vmul.f32 %v1909, %v1911
    %v1913 = vadd.f32 %v1909, %v1912
    %vm1914 = vweird.f32 %v1861
    %vm1915 = vweird.f32 %v1909
    %vm1916 = vmor %vm1914, %vm1915
    %v1917 = vsel %vm1916, %v1909, %v1913
    %v1918 = vand.u32 2147483647, %v1861
    %vm1919 = vcmp.eq.f32.partialorder %v1918, 8.507059e+37
    %v1920 = vand.u32 %v1861, 2147483648
    %v1921 = vor.u32 1.1754944e-38, %v1920
    %v1922 = vsel %vm1919, %v1921, %v1917
    %v1923 = vmul.f32 1.0, %v1922
    %v1924 = vrcp.pop %v1862
    %v1925 = vmul.f32 %v1862, %v1924
    %v1926 = vsub.f32 1.0, %v1925
    %v1927 = vmul.f32 %v1924, %v1926
    %v1928 = vadd.f32 %v1924, %v1927
    %vm1929 = vweird.f32 %v1862
    %vm1930 = vweird.f32 %v1924
    %vm1931 = vmor %vm1929, %vm1930
    %v1932 = vsel %vm1931, %v1924, %v1928
    %v1933 = vand.u32 2147483647, %v1862
    %vm1934 = vcmp.eq.f32.partialorder %v1933, 8.507059e+37
    %v1935 = vand.u32 %v1862, 2147483648
    %v1936 = vor.u32 1.1754944e-38, %v1935
    %v1937 = vsel %vm1934, %v1936, %v1932
    %v1938 = vmul.f32 1.0, %v1937
    %v1939 = vrcp.pop %v1863
    %v1940 = vmul.f32 %v1863, %v1939
    %v1941 = vsub.f32 1.0, %v1940
    %v1942 = vmul.f32 %v1939, %v1941
    %v1943 = vadd.f32 %v1939, %v1942
    %vm1944 = vweird.f32 %v1863
    %vm1945 = vweird.f32 %v1939
    %vm1946 = vmor %vm1944, %vm1945
    %v1947 = vsel %vm1946, %v1939, %v1943
    %v1948 = vand.u32 2147483647, %v1863
    %vm1949 = vcmp.eq.f32.partialorder %v1948, 8.507059e+37
    %v1950 = vand.u32 %v1863, 2147483648
    %v1951 = vor.u32 1.1754944e-38, %v1950
    %v1952 = vsel %vm1949, %v1951, %v1947
    %v1953 = vmul.f32 1.0, %v1952
    %v1954 = vtanh.pop %v1838
    %v1955 = vtanh.pop %v1839
    %v1956 = vmul.f32 %v1908, 0.0
    %v1957 = vmul.f32 %v1923, 0.0
    %v1958 = vmul.f32 %v1878, %v1954
    %v1959 = vmul.f32 %v1893, %v1955
    %v1960 = vadd.f32 %v1956, %v1958
    %v1961 = vadd.f32 %v1957, %v1959
    %v1962 = vtanh.pop %v1960
    %v1963 = vtanh.pop %v1961
    %v1964 = vmul.f32 %v1938, %v1962
    %v1965 = vmul.f32 %v1953, %v1963
    %s1966 = smul.u32 1, 8
    %s1967 = smul.addr %s1966, 8
    %s1968 = scalar_lea.vmem [#allocation2], %s1967
    %v1969 = vld [vmem:[%s1968] sm:$0xff]
    %v1970 = vld [vmem:[%s1968 + $0x8] sm:$0xff]
    %v1971 = vld [vmem:[%s1968 + $0x10] sm:$0xff]
    %v1972 = vld [vmem:[%s1968 + $0x18] sm:$0xff]
    %v1973 = vld [vmem:[%s1968 + $0x20] sm:$0xff]
    %v1974 = vld [vmem:[%s1968 + $0x28] sm:$0xff]
    %v1975 = vld [vmem:[%s1968 + $0x30] sm:$0xff]
    %v1976 = vld [vmem:[%s1968 + $0x38] sm:$0xff]
    %v1977 = vpack.c.bf16 %v1964, %v1964
    %v1978 = vpack.c.bf16 %v1965, %v1965
    %1979 = vmatpush.bf16.msra.mxu0 %v1424
    %1980 = vmatpush.bf16.msra.mxu0 %v1416
    %1981 = vmatpush.bf16.msra.mxu0 %v1408
    %1982 = vmatpush.bf16.msra.mxu0 %v1400
    %1983 = vmatpush.bf16.msra.mxu0 %v1392
    %1984 = vmatpush.bf16.msra.mxu0 %v1384
    %1985 = vmatpush.bf16.msra.mxu0 %v1376
    %1986 = vmatpush.bf16.msra.mxu0 %v1368
    %1987 = vmatmul.bf16.gmra.mxu0 %v1977
    %v1988 = vpop.f32.mrf.mxu0
    %v1989 = vadd.f32 0.0, %v1988
    %v1990 = vpop.f32.mrf.mxu0
    %1991 = vdwg.mxu0
    %1992 = vmatpush.bf16.msra.mxu0 %v1488
    %1993 = vmatpush.bf16.msra.mxu0 %v1480
    %1994 = vmatpush.bf16.msra.mxu0 %v1472
    %1995 = vmatpush.bf16.msra.mxu0 %v1464
    %1996 = vmatpush.bf16.msra.mxu0 %v1456
    %1997 = vmatpush.bf16.msra.mxu0 %v1448
    %1998 = vmatpush.bf16.msra.mxu0 %v1440
    %1999 = vmatpush.bf16.msra.mxu0 %v1432
    %2000 = vmatmul.bf16.gmra.mxu0 %v1978
    %v2001 = vpop.f32.mrf.mxu0
    %v2002 = vadd.f32 %v1989, %v2001
    %v2003 = vpop.f32.mrf.mxu0
    %2004 = vdwg.mxu0
    %2005 = vmatpush.bf16.msra.mxu0 %v1425
    %2006 = vmatpush.bf16.msra.mxu0 %v1417
    %2007 = vmatpush.bf16.msra.mxu0 %v1409
    %2008 = vmatpush.bf16.msra.mxu0 %v1401
    %2009 = vmatpush.bf16.msra.mxu0 %v1393
    %2010 = vmatpush.bf16.msra.mxu0 %v1385
    %2011 = vmatpush.bf16.msra.mxu0 %v1377
    %2012 = vmatpush.bf16.msra.mxu0 %v1369
    %2013 = vmatmul.bf16.gmra.mxu0 %v1977
    %v2014 = vpop.f32.mrf.mxu0
    %v2015 = vadd.f32 0.0, %v2014
    %v2016 = vpop.f32.mrf.mxu0
    %2017 = vdwg.mxu0
    %2018 = vmatpush.bf16.msra.mxu0 %v1489
    %2019 = vmatpush.bf16.msra.mxu0 %v1481
    %2020 = vmatpush.bf16.msra.mxu0 %v1473
    %2021 = vmatpush.bf16.msra.mxu0 %v1465
    %2022 = vmatpush.bf16.msra.mxu0 %v1457
    %2023 = vmatpush.bf16.msra.mxu0 %v1449
    %2024 = vmatpush.bf16.msra.mxu0 %v1441
    %2025 = vmatpush.bf16.msra.mxu0 %v1433
    %2026 = vmatmul.bf16.gmra.mxu0 %v1978
    %v2027 = vpop.f32.mrf.mxu0
    %v2028 = vadd.f32 %v2015, %v2027
    %v2029 = vpop.f32.mrf.mxu0
    %2030 = vdwg.mxu0
    %2031 = vmatpush.bf16.msra.mxu0 %v1426
    %2032 = vmatpush.bf16.msra.mxu0 %v1418
    %2033 = vmatpush.bf16.msra.mxu0 %v1410
    %2034 = vmatpush.bf16.msra.mxu0 %v1402
    %2035 = vmatpush.bf16.msra.mxu0 %v1394
    %2036 = vmatpush.bf16.msra.mxu0 %v1386
    %2037 = vmatpush.bf16.msra.mxu0 %v1378
    %2038 = vmatpush.bf16.msra.mxu0 %v1370
    %2039 = vmatmul.bf16.gmra.mxu0 %v1977
    %v2040 = vpop.f32.mrf.mxu0
    %v2041 = vadd.f32 0.0, %v2040
    %v2042 = vpop.f32.mrf.mxu0
    %2043 = vdwg.mxu0
    %2044 = vmatpush.bf16.msra.mxu0 %v1490
    %2045 = vmatpush.bf16.msra.mxu0 %v1482
    %2046 = vmatpush.bf16.msra.mxu0 %v1474
    %2047 = vmatpush.bf16.msra.mxu0 %v1466
    %2048 = vmatpush.bf16.msra.mxu0 %v1458
    %2049 = vmatpush.bf16.msra.mxu0 %v1450
    %2050 = vmatpush.bf16.msra.mxu0 %v1442
    %2051 = vmatpush.bf16.msra.mxu0 %v1434
    %2052 = vmatmul.bf16.gmra.mxu0 %v1978
    %v2053 = vpop.f32.mrf.mxu0
    %v2054 = vadd.f32 %v2041, %v2053
    %v2055 = vpop.f32.mrf.mxu0
    %2056 = vdwg.mxu0
    %2057 = vmatpush.bf16.msra.mxu0 %v1427
    %2058 = vmatpush.bf16.msra.mxu0 %v1419
    %2059 = vmatpush.bf16.msra.mxu0 %v1411
    %2060 = vmatpush.bf16.msra.mxu0 %v1403
    %2061 = vmatpush.bf16.msra.mxu0 %v1395
    %2062 = vmatpush.bf16.msra.mxu0 %v1387
    %2063 = vmatpush.bf16.msra.mxu0 %v1379
    %2064 = vmatpush.bf16.msra.mxu0 %v1371
    %2065 = vmatmul.bf16.gmra.mxu0 %v1977
    %v2066 = vpop.f32.mrf.mxu0
    %v2067 = vadd.f32 0.0, %v2066
    %v2068 = vpop.f32.mrf.mxu0
    %2069 = vdwg.mxu0
    %2070 = vmatpush.bf16.msra.mxu0 %v1491
    %2071 = vmatpush.bf16.msra.mxu0 %v1483
    %2072 = vmatpush.bf16.msra.mxu0 %v1475
    %2073 = vmatpush.bf16.msra.mxu0 %v1467
    %2074 = vmatpush.bf16.msra.mxu0 %v1459
    %2075 = vmatpush.bf16.msra.mxu0 %v1451
    %2076 = vmatpush.bf16.msra.mxu0 %v1443
    %2077 = vmatpush.bf16.msra.mxu0 %v1435
    %2078 = vmatmul.bf16.gmra.mxu0 %v1978
    %v2079 = vpop.f32.mrf.mxu0
    %v2080 = vadd.f32 %v2067, %v2079
    %v2081 = vpop.f32.mrf.mxu0
    %2082 = vdwg.mxu0
    %2083 = vmatpush.bf16.msra.mxu0 %v1428
    %2084 = vmatpush.bf16.msra.mxu0 %v1420
    %2085 = vmatpush.bf16.msra.mxu0 %v1412
    %2086 = vmatpush.bf16.msra.mxu0 %v1404
    %2087 = vmatpush.bf16.msra.mxu0 %v1396
    %2088 = vmatpush.bf16.msra.mxu0 %v1388
    %2089 = vmatpush.bf16.msra.mxu0 %v1380
    %2090 = vmatpush.bf16.msra.mxu0 %v1372
    %2091 = vmatmul.bf16.gmra.mxu0 %v1977
    %v2092 = vpop.f32.mrf.mxu0
    %v2093 = vadd.f32 0.0, %v2092
    %v2094 = vpop.f32.mrf.mxu0
    %2095 = vdwg.mxu0
    %2096 = vmatpush.bf16.msra.mxu0 %v1492
    %2097 = vmatpush.bf16.msra.mxu0 %v1484
    %2098 = vmatpush.bf16.msra.mxu0 %v1476
    %2099 = vmatpush.bf16.msra.mxu0 %v1468
    %2100 = vmatpush.bf16.msra.mxu0 %v1460
    %2101 = vmatpush.bf16.msra.mxu0 %v1452
    %2102 = vmatpush.bf16.msra.mxu0 %v1444
    %2103 = vmatpush.bf16.msra.mxu0 %v1436
    %2104 = vmatmul.bf16.gmra.mxu0 %v1978
    %v2105 = vpop.f32.mrf.mxu0
    %v2106 = vadd.f32 %v2093, %v2105
    %v2107 = vpop.f32.mrf.mxu0
    %2108 = vdwg.mxu0
    %2109 = vmatpush.bf16.msra.mxu0 %v1429
    %2110 = vmatpush.bf16.msra.mxu0 %v1421
    %2111 = vmatpush.bf16.msra.mxu0 %v1413
    %2112 = vmatpush.bf16.msra.mxu0 %v1405
    %2113 = vmatpush.bf16.msra.mxu0 %v1397
    %2114 = vmatpush.bf16.msra.mxu0 %v1389
    %2115 = vmatpush.bf16.msra.mxu0 %v1381
    %2116 = vmatpush.bf16.msra.mxu0 %v1373
    %2117 = vmatmul.bf16.gmra.mxu0 %v1977
    %v2118 = vpop.f32.mrf.mxu0
    %v2119 = vadd.f32 0.0, %v2118
    %v2120 = vpop.f32.mrf.mxu0
    %2121 = vdwg.mxu0
    %2122 = vmatpush.bf16.msra.mxu0 %v1493
    %2123 = vmatpush.bf16.msra.mxu0 %v1485
    %2124 = vmatpush.bf16.msra.mxu0 %v1477
    %2125 = vmatpush.bf16.msra.mxu0 %v1469
    %2126 = vmatpush.bf16.msra.mxu0 %v1461
    %2127 = vmatpush.bf16.msra.mxu0 %v1453
    %2128 = vmatpush.bf16.msra.mxu0 %v1445
    %2129 = vmatpush.bf16.msra.mxu0 %v1437
    %2130 = vmatmul.bf16.gmra.mxu0 %v1978
    %v2131 = vpop.f32.mrf.mxu0
    %v2132 = vadd.f32 %v2119, %v2131
    %v2133 = vpop.f32.mrf.mxu0
    %2134 = vdwg.mxu0
    %2135 = vmatpush.bf16.msra.mxu0 %v1430
    %2136 = vmatpush.bf16.msra.mxu0 %v1422
    %2137 = vmatpush.bf16.msra.mxu0 %v1414
    %2138 = vmatpush.bf16.msra.mxu0 %v1406
    %2139 = vmatpush.bf16.msra.mxu0 %v1398
    %2140 = vmatpush.bf16.msra.mxu0 %v1390
    %2141 = vmatpush.bf16.msra.mxu0 %v1382
    %2142 = vmatpush.bf16.msra.mxu0 %v1374
    %2143 = vmatmul.bf16.gmra.mxu0 %v1977
    %v2144 = vpop.f32.mrf.mxu0
    %v2145 = vadd.f32 0.0, %v2144
    %v2146 = vpop.f32.mrf.mxu0
    %2147 = vdwg.mxu0
    %2148 = vmatpush.bf16.msra.mxu0 %v1494
    %2149 = vmatpush.bf16.msra.mxu0 %v1486
    %2150 = vmatpush.bf16.msra.mxu0 %v1478
    %2151 = vmatpush.bf16.msra.mxu0 %v1470
    %2152 = vmatpush.bf16.msra.mxu0 %v1462
    %2153 = vmatpush.bf16.msra.mxu0 %v1454
    %2154 = vmatpush.bf16.msra.mxu0 %v1446
    %2155 = vmatpush.bf16.msra.mxu0 %v1438
    %2156 = vmatmul.bf16.gmra.mxu0 %v1978
    %v2157 = vpop.f32.mrf.mxu0
    %v2158 = vadd.f32 %v2145, %v2157
    %v2159 = vpop.f32.mrf.mxu0
    %2160 = vdwg.mxu0
    %2161 = vmatpush.bf16.msra.mxu0 %v1431
    %2162 = vmatpush.bf16.msra.mxu0 %v1423
    %2163 = vmatpush.bf16.msra.mxu0 %v1415
    %2164 = vmatpush.bf16.msra.mxu0 %v1407
    %2165 = vmatpush.bf16.msra.mxu0 %v1399
    %2166 = vmatpush.bf16.msra.mxu0 %v1391
    %2167 = vmatpush.bf16.msra.mxu0 %v1383
    %2168 = vmatpush.bf16.msra.mxu0 %v1375
    %2169 = vmatmul.bf16.gmra.mxu0 %v1977
    %v2170 = vpop.f32.mrf.mxu0
    %v2171 = vadd.f32 0.0, %v2170
    %v2172 = vpop.f32.mrf.mxu0
    %2173 = vdwg.mxu0
    %2174 = vmatpush.bf16.msra.mxu0 %v1495
    %2175 = vmatpush.bf16.msra.mxu0 %v1487
    %2176 = vmatpush.bf16.msra.mxu0 %v1479
    %2177 = vmatpush.bf16.msra.mxu0 %v1471
    %2178 = vmatpush.bf16.msra.mxu0 %v1463
    %2179 = vmatpush.bf16.msra.mxu0 %v1455
    %2180 = vmatpush.bf16.msra.mxu0 %v1447
    %2181 = vmatpush.bf16.msra.mxu0 %v1439
    %2182 = vmatmul.bf16.gmra.mxu0 %v1978
    %v2183 = vpop.f32.mrf.mxu0
    %v2184 = vadd.f32 %v2171, %v2183
    %v2185 = vpop.f32.mrf.mxu0
    %2186 = vdwg.mxu0
    %v2187 = vadd.f32 %v1969, %v2002
    %v2188 = vadd.f32 %v1970, %v2028
    %v2189 = vadd.f32 %v1971, %v2054
    %v2190 = vadd.f32 %v1972, %v2080
    %v2191 = vadd.f32 %v1973, %v2106
    %v2192 = vadd.f32 %v1974, %v2132
    %v2193 = vadd.f32 %v1975, %v2158
    %v2194 = vadd.f32 %v1976, %v2184
    %v2195 = vxor.u32 %v2187, 2147483648
    %v2196 = vxor.u32 %v2188, 2147483648
    %v2197 = vxor.u32 %v2189, 2147483648
    %v2198 = vxor.u32 %v2190, 2147483648
    %v2199 = vxor.u32 %v2191, 2147483648
    %v2200 = vxor.u32 %v2192, 2147483648
    %v2201 = vmul.f32 %v2195, 1.442695
    %v2202 = vpow.pop %v2201
    %v2203 = vmul.f32 %v2196, 1.442695
    %v2204 = vpow.pop %v2203
    %v2205 = vmul.f32 %v2197, 1.442695
    %v2206 = vpow.pop %v2205
    %v2207 = vmul.f32 %v2198, 1.442695
    %v2208 = vpow.pop %v2207
    %v2209 = vmul.f32 %v2199, 1.442695
    %v2210 = vpow.pop %v2209
    %v2211 = vmul.f32 %v2200, 1.442695
    %v2212 = vpow.pop %v2211
    %v2213 = vadd.f32 %v2202, 1.0
    %v2214 = vadd.f32 %v2204, 1.0
    %v2215 = vadd.f32 %v2206, 1.0
    %v2216 = vadd.f32 %v2208, 1.0
    %v2217 = vadd.f32 %v2210, 1.0
    %v2218 = vadd.f32 %v2212, 1.0
    %v2219 = vrcp.pop %v2213
    %v2220 = vmul.f32 %v2213, %v2219
    %v2221 = vsub.f32 1.0, %v2220
    %v2222 = vmul.f32 %v2219, %v2221
    %v2223 = vadd.f32 %v2219, %v2222
    %vm2224 = vweird.f32 %v2213
    %vm2225 = vweird.f32 %v2219
    %vm2226 = vmor %vm2224, %vm2225
    %v2227 = vsel %vm2226, %v2219, %v2223
    %v2228 = vand.u32 2147483647, %v2213
    %vm2229 = vcmp.eq.f32.partialorder %v2228, 8.507059e+37
    %v2230 = vand.u32 %v2213, 2147483648
    %v2231 = vor.u32 1.1754944e-38, %v2230
    %v2232 = vsel %vm2229, %v2231, %v2227
    %v2233 = vmul.f32 1.0, %v2232
    %v2234 = vrcp.pop %v2214
    %v2235 = vmul.f32 %v2214, %v2234
    %v2236 = vsub.f32 1.0, %v2235
    %v2237 = vmul.f32 %v2234, %v2236
    %v2238 = vadd.f32 %v2234, %v2237
    %vm2239 = vweird.f32 %v2214
    %vm2240 = vweird.f32 %v2234
    %vm2241 = vmor %vm2239, %vm2240
    %v2242 = vsel %vm2241, %v2234, %v2238
    %v2243 = vand.u32 2147483647, %v2214
    %vm2244 = vcmp.eq.f32.partialorder %v2243, 8.507059e+37
    %v2245 = vand.u32 %v2214, 2147483648
    %v2246 = vor.u32 1.1754944e-38, %v2245
    %v2247 = vsel %vm2244, %v2246, %v2242
    %v2248 = vmul.f32 1.0, %v2247
    %v2249 = vrcp.pop %v2215
    %v2250 = vmul.f32 %v2215, %v2249
    %v2251 = vsub.f32 1.0, %v2250
    %v2252 = vmul.f32 %v2249, %v2251
    %v2253 = vadd.f32 %v2249, %v2252
    %vm2254 = vweird.f32 %v2215
    %vm2255 = vweird.f32 %v2249
    %vm2256 = vmor %vm2254, %vm2255
    %v2257 = vsel %vm2256, %v2249, %v2253
    %v2258 = vand.u32 2147483647, %v2215
    %vm2259 = vcmp.eq.f32.partialorder %v2258, 8.507059e+37
    %v2260 = vand.u32 %v2215, 2147483648
    %v2261 = vor.u32 1.1754944e-38, %v2260
    %v2262 = vsel %vm2259, %v2261, %v2257
    %v2263 = vmul.f32 1.0, %v2262
    %v2264 = vrcp.pop %v2216
    %v2265 = vmul.f32 %v2216, %v2264
    %v2266 = vsub.f32 1.0, %v2265
    %v2267 = vmul.f32 %v2264, %v2266
    %v2268 = vadd.f32 %v2264, %v2267
    %vm2269 = vweird.f32 %v2216
    %vm2270 = vweird.f32 %v2264
    %vm2271 = vmor %vm2269, %vm2270
    %v2272 = vsel %vm2271, %v2264, %v2268
    %v2273 = vand.u32 2147483647, %v2216
    %vm2274 = vcmp.eq.f32.partialorder %v2273, 8.507059e+37
    %v2275 = vand.u32 %v2216, 2147483648
    %v2276 = vor.u32 1.1754944e-38, %v2275
    %v2277 = vsel %vm2274, %v2276, %v2272
    %v2278 = vmul.f32 1.0, %v2277
    %v2279 = vrcp.pop %v2217
    %v2280 = vmul.f32 %v2217, %v2279
    %v2281 = vsub.f32 1.0, %v2280
    %v2282 = vmul.f32 %v2279, %v2281
    %v2283 = vadd.f32 %v2279, %v2282
    %vm2284 = vweird.f32 %v2217
    %vm2285 = vweird.f32 %v2279
    %vm2286 = vmor %vm2284, %vm2285
    %v2287 = vsel %vm2286, %v2279, %v2283
    %v2288 = vand.u32 2147483647, %v2217
    %vm2289 = vcmp.eq.f32.partialorder %v2288, 8.507059e+37
    %v2290 = vand.u32 %v2217, 2147483648
    %v2291 = vor.u32 1.1754944e-38, %v2290
    %v2292 = vsel %vm2289, %v2291, %v2287
    %v2293 = vmul.f32 1.0, %v2292
    %v2294 = vrcp.pop %v2218
    %v2295 = vmul.f32 %v2218, %v2294
    %v2296 = vsub.f32 1.0, %v2295
    %v2297 = vmul.f32 %v2294, %v2296
    %v2298 = vadd.f32 %v2294, %v2297
    %vm2299 = vweird.f32 %v2218
    %vm2300 = vweird.f32 %v2294
    %vm2301 = vmor %vm2299, %vm2300
    %v2302 = vsel %vm2301, %v2294, %v2298
    %v2303 = vand.u32 2147483647, %v2218
    %vm2304 = vcmp.eq.f32.partialorder %v2303, 8.507059e+37
    %v2305 = vand.u32 %v2218, 2147483648
    %v2306 = vor.u32 1.1754944e-38, %v2305
    %v2307 = vsel %vm2304, %v2306, %v2302
    %v2308 = vmul.f32 1.0, %v2307
    %v2309 = vtanh.pop %v2193
    %v2310 = vtanh.pop %v2194
    %v2311 = vmul.f32 %v2263, %v1960
    %v2312 = vmul.f32 %v2278, %v1961
    %v2313 = vmul.f32 %v2233, %v2309
    %v2314 = vmul.f32 %v2248, %v2310
    %v2315 = vadd.f32 %v2311, %v2313
    %v2316 = vadd.f32 %v2312, %v2314
    %v2317 = vtanh.pop %v2315
    %v2318 = vtanh.pop %v2316
    %v2319 = vmul.f32 %v2293, %v2317
    %v2320 = vmul.f32 %v2308, %v2318
    %s2321 = smul.u32 2, 8
    %s2322 = smul.addr %s2321, 8
    %s2323 = scalar_lea.vmem [#allocation2], %s2322
    %v2324 = vld [vmem:[%s2323] sm:$0xff]
    %v2325 = vld [vmem:[%s2323 + $0x8] sm:$0xff]
    %v2326 = vld [vmem:[%s2323 + $0x10] sm:$0xff]
    %v2327 = vld [vmem:[%s2323 + $0x18] sm:$0xff]
    %v2328 = vld [vmem:[%s2323 + $0x20] sm:$0xff]
    %v2329 = vld [vmem:[%s2323 + $0x28] sm:$0xff]
    %v2330 = vld [vmem:[%s2323 + $0x30] sm:$0xff]
    %v2331 = vld [vmem:[%s2323 + $0x38] sm:$0xff]
    %v2332 = vpack.c.bf16 %v2319, %v2319
    %v2333 = vpack.c.bf16 %v2320, %v2320
    %2334 = vmatpush.bf16.msra.mxu0 %v1424
    %2335 = vmatpush.bf16.msra.mxu0 %v1416
    %2336 = vmatpush.bf16.msra.mxu0 %v1408
    %2337 = vmatpush.bf16.msra.mxu0 %v1400
    %2338 = vmatpush.bf16.msra.mxu0 %v1392
    %2339 = vmatpush.bf16.msra.mxu0 %v1384
    %2340 = vmatpush.bf16.msra.mxu0 %v1376
    %2341 = vmatpush.bf16.msra.mxu0 %v1368
    %2342 = vmatmul.bf16.gmra.mxu0 %v2332
    %v2343 = vpop.f32.mrf.mxu0
    %v2344 = vadd.f32 0.0, %v2343
    %v2345 = vpop.f32.mrf.mxu0
    %2346 = vdwg.mxu0
    %2347 = vmatpush.bf16.msra.mxu0 %v1488
    %2348 = vmatpush.bf16.msra.mxu0 %v1480
    %2349 = vmatpush.bf16.msra.mxu0 %v1472
    %2350 = vmatpush.bf16.msra.mxu0 %v1464
    %2351 = vmatpush.bf16.msra.mxu0 %v1456
    %2352 = vmatpush.bf16.msra.mxu0 %v1448
    %2353 = vmatpush.bf16.msra.mxu0 %v1440
    %2354 = vmatpush.bf16.msra.mxu0 %v1432
    %2355 = vmatmul.bf16.gmra.mxu0 %v2333
    %v2356 = vpop.f32.mrf.mxu0
    %v2357 = vadd.f32 %v2344, %v2356
    %v2358 = vpop.f32.mrf.mxu0
    %2359 = vdwg.mxu0
    %2360 = vmatpush.bf16.msra.mxu0 %v1425
    %2361 = vmatpush.bf16.msra.mxu0 %v1417
    %2362 = vmatpush.bf16.msra.mxu0 %v1409
    %2363 = vmatpush.bf16.msra.mxu0 %v1401
    %2364 = vmatpush.bf16.msra.mxu0 %v1393
    %2365 = vmatpush.bf16.msra.mxu0 %v1385
    %2366 = vmatpush.bf16.msra.mxu0 %v1377
    %2367 = vmatpush.bf16.msra.mxu0 %v1369
    %2368 = vmatmul.bf16.gmra.mxu0 %v2332
    %v2369 = vpop.f32.mrf.mxu0
    %v2370 = vadd.f32 0.0, %v2369
    %v2371 = vpop.f32.mrf.mxu0
    %2372 = vdwg.mxu0
    %2373 = vmatpush.bf16.msra.mxu0 %v1489
    %2374 = vmatpush.bf16.msra.mxu0 %v1481
    %2375 = vmatpush.bf16.msra.mxu0 %v1473
    %2376 = vmatpush.bf16.msra.mxu0 %v1465
    %2377 = vmatpush.bf16.msra.mxu0 %v1457
    %2378 = vmatpush.bf16.msra.mxu0 %v1449
    %2379 = vmatpush.bf16.msra.mxu0 %v1441
    %2380 = vmatpush.bf16.msra.mxu0 %v1433
    %2381 = vmatmul.bf16.gmra.mxu0 %v2333
    %v2382 = vpop.f32.mrf.mxu0
    %v2383 = vadd.f32 %v2370, %v2382
    %v2384 = vpop.f32.mrf.mxu0
    %2385 = vdwg.mxu0
    %2386 = vmatpush.bf16.msra.mxu0 %v1426
    %2387 = vmatpush.bf16.msra.mxu0 %v1418
    %2388 = vmatpush.bf16.msra.mxu0 %v1410
    %2389 = vmatpush.bf16.msra.mxu0 %v1402
    %2390 = vmatpush.bf16.msra.mxu0 %v1394
    %2391 = vmatpush.bf16.msra.mxu0 %v1386
    %2392 = vmatpush.bf16.msra.mxu0 %v1378
    %2393 = vmatpush.bf16.msra.mxu0 %v1370
    %2394 = vmatmul.bf16.gmra.mxu0 %v2332
    %v2395 = vpop.f32.mrf.mxu0
    %v2396 = vadd.f32 0.0, %v2395
    %v2397 = vpop.f32.mrf.mxu0
    %2398 = vdwg.mxu0
    %2399 = vmatpush.bf16.msra.mxu0 %v1490
    %2400 = vmatpush.bf16.msra.mxu0 %v1482
    %2401 = vmatpush.bf16.msra.mxu0 %v1474
    %2402 = vmatpush.bf16.msra.mxu0 %v1466
    %2403 = vmatpush.bf16.msra.mxu0 %v1458
    %2404 = vmatpush.bf16.msra.mxu0 %v1450
    %2405 = vmatpush.bf16.msra.mxu0 %v1442
    %2406 = vmatpush.bf16.msra.mxu0 %v1434
    %2407 = vmatmul.bf16.gmra.mxu0 %v2333
    %v2408 = vpop.f32.mrf.mxu0
    %v2409 = vadd.f32 %v2396, %v2408
    %v2410 = vpop.f32.mrf.mxu0
    %2411 = vdwg.mxu0
    %2412 = vmatpush.bf16.msra.mxu0 %v1427
    %2413 = vmatpush.bf16.msra.mxu0 %v1419
    %2414 = vmatpush.bf16.msra.mxu0 %v1411
    %2415 = vmatpush.bf16.msra.mxu0 %v1403
    %2416 = vmatpush.bf16.msra.mxu0 %v1395
    %2417 = vmatpush.bf16.msra.mxu0 %v1387
    %2418 = vmatpush.bf16.msra.mxu0 %v1379
    %2419 = vmatpush.bf16.msra.mxu0 %v1371
    %2420 = vmatmul.bf16.gmra.mxu0 %v2332
    %v2421 = vpop.f32.mrf.mxu0
    %v2422 = vadd.f32 0.0, %v2421
    %v2423 = vpop.f32.mrf.mxu0
    %2424 = vdwg.mxu0
    %2425 = vmatpush.bf16.msra.mxu0 %v1491
    %2426 = vmatpush.bf16.msra.mxu0 %v1483
    %2427 = vmatpush.bf16.msra.mxu0 %v1475
    %2428 = vmatpush.bf16.msra.mxu0 %v1467
    %2429 = vmatpush.bf16.msra.mxu0 %v1459
    %2430 = vmatpush.bf16.msra.mxu0 %v1451
    %2431 = vmatpush.bf16.msra.mxu0 %v1443
    %2432 = vmatpush.bf16.msra.mxu0 %v1435
    %2433 = vmatmul.bf16.gmra.mxu0 %v2333
    %v2434 = vpop.f32.mrf.mxu0
    %v2435 = vadd.f32 %v2422, %v2434
    %v2436 = vpop.f32.mrf.mxu0
    %2437 = vdwg.mxu0
    %2438 = vmatpush.bf16.msra.mxu0 %v1428
    %2439 = vmatpush.bf16.msra.mxu0 %v1420
    %2440 = vmatpush.bf16.msra.mxu0 %v1412
    %2441 = vmatpush.bf16.msra.mxu0 %v1404
    %2442 = vmatpush.bf16.msra.mxu0 %v1396
    %2443 = vmatpush.bf16.msra.mxu0 %v1388
    %2444 = vmatpush.bf16.msra.mxu0 %v1380
    %2445 = vmatpush.bf16.msra.mxu0 %v1372
    %2446 = vmatmul.bf16.gmra.mxu0 %v2332
    %v2447 = vpop.f32.mrf.mxu0
    %v2448 = vadd.f32 0.0, %v2447
    %v2449 = vpop.f32.mrf.mxu0
    %2450 = vdwg.mxu0
    %2451 = vmatpush.bf16.msra.mxu0 %v1492
    %2452 = vmatpush.bf16.msra.mxu0 %v1484
    %2453 = vmatpush.bf16.msra.mxu0 %v1476
    %2454 = vmatpush.bf16.msra.mxu0 %v1468
    %2455 = vmatpush.bf16.msra.mxu0 %v1460
    %2456 = vmatpush.bf16.msra.mxu0 %v1452
    %2457 = vmatpush.bf16.msra.mxu0 %v1444
    %2458 = vmatpush.bf16.msra.mxu0 %v1436
    %2459 = vmatmul.bf16.gmra.mxu0 %v2333
    %v2460 = vpop.f32.mrf.mxu0
    %v2461 = vadd.f32 %v2448, %v2460
    %v2462 = vpop.f32.mrf.mxu0
    %2463 = vdwg.mxu0
    %2464 = vmatpush.bf16.msra.mxu0 %v1429
    %2465 = vmatpush.bf16.msra.mxu0 %v1421
    %2466 = vmatpush.bf16.msra.mxu0 %v1413
    %2467 = vmatpush.bf16.msra.mxu0 %v1405
    %2468 = vmatpush.bf16.msra.mxu0 %v1397
    %2469 = vmatpush.bf16.msra.mxu0 %v1389
    %2470 = vmatpush.bf16.msra.mxu0 %v1381
    %2471 = vmatpush.bf16.msra.mxu0 %v1373
    %2472 = vmatmul.bf16.gmra.mxu0 %v2332
    %v2473 = vpop.f32.mrf.mxu0
    %v2474 = vadd.f32 0.0, %v2473
    %v2475 = vpop.f32.mrf.mxu0
    %2476 = vdwg.mxu0
    %2477 = vmatpush.bf16.msra.mxu0 %v1493
    %2478 = vmatpush.bf16.msra.mxu0 %v1485
    %2479 = vmatpush.bf16.msra.mxu0 %v1477
    %2480 = vmatpush.bf16.msra.mxu0 %v1469
    %2481 = vmatpush.bf16.msra.mxu0 %v1461
    %2482 = vmatpush.bf16.msra.mxu0 %v1453
    %2483 = vmatpush.bf16.msra.mxu0 %v1445
    %2484 = vmatpush.bf16.msra.mxu0 %v1437
    %2485 = vmatmul.bf16.gmra.mxu0 %v2333
    %v2486 = vpop.f32.mrf.mxu0
    %v2487 = vadd.f32 %v2474, %v2486
    %v2488 = vpop.f32.mrf.mxu0
    %2489 = vdwg.mxu0
    %2490 = vmatpush.bf16.msra.mxu0 %v1430
    %2491 = vmatpush.bf16.msra.mxu0 %v1422
    %2492 = vmatpush.bf16.msra.mxu0 %v1414
    %2493 = vmatpush.bf16.msra.mxu0 %v1406
    %2494 = vmatpush.bf16.msra.mxu0 %v1398
    %2495 = vmatpush.bf16.msra.mxu0 %v1390
    %2496 = vmatpush.bf16.msra.mxu0 %v1382
    %2497 = vmatpush.bf16.msra.mxu0 %v1374
    %2498 = vmatmul.bf16.gmra.mxu0 %v2332
    %v2499 = vpop.f32.mrf.mxu0
    %v2500 = vadd.f32 0.0, %v2499
    %v2501 = vpop.f32.mrf.mxu0
    %2502 = vdwg.mxu0
    %2503 = vmatpush.bf16.msra.mxu0 %v1494
    %2504 = vmatpush.bf16.msra.mxu0 %v1486
    %2505 = vmatpush.bf16.msra.mxu0 %v1478
    %2506 = vmatpush.bf16.msra.mxu0 %v1470
    %2507 = vmatpush.bf16.msra.mxu0 %v1462
    %2508 = vmatpush.bf16.msra.mxu0 %v1454
    %2509 = vmatpush.bf16.msra.mxu0 %v1446
    %2510 = vmatpush.bf16.msra.mxu0 %v1438
    %2511 = vmatmul.bf16.gmra.mxu0 %v2333
    %v2512 = vpop.f32.mrf.mxu0
    %v2513 = vadd.f32 %v2500, %v2512
    %v2514 = vpop.f32.mrf.mxu0
    %2515 = vdwg.mxu0
    %2516 = vmatpush.bf16.msra.mxu0 %v1431
    %2517 = vmatpush.bf16.msra.mxu0 %v1423
    %2518 = vmatpush.bf16.msra.mxu0 %v1415
    %2519 = vmatpush.bf16.msra.mxu0 %v1407
    %2520 = vmatpush.bf16.msra.mxu0 %v1399
    %2521 = vmatpush.bf16.msra.mxu0 %v1391
    %2522 = vmatpush.bf16.msra.mxu0 %v1383
    %2523 = vmatpush.bf16.msra.mxu0 %v1375
    %2524 = vmatmul.bf16.gmra.mxu0 %v2332
    %v2525 = vpop.f32.mrf.mxu0
    %v2526 = vadd.f32 0.0, %v2525
    %v2527 = vpop.f32.mrf.mxu0
    %2528 = vdwg.mxu0
    %2529 = vmatpush.bf16.msra.mxu0 %v1495
    %2530 = vmatpush.bf16.msra.mxu0 %v1487
    %2531 = vmatpush.bf16.msra.mxu0 %v1479
    %2532 = vmatpush.bf16.msra.mxu0 %v1471
    %2533 = vmatpush.bf16.msra.mxu0 %v1463
    %2534 = vmatpush.bf16.msra.mxu0 %v1455
    %2535 = vmatpush.bf16.msra.mxu0 %v1447
    %2536 = vmatpush.bf16.msra.mxu0 %v1439
    %2537 = vmatmul.bf16.gmra.mxu0 %v2333
    %v2538 = vpop.f32.mrf.mxu0
    %v2539 = vadd.f32 %v2526, %v2538
    %v2540 = vpop.f32.mrf.mxu0
    %2541 = vdwg.mxu0
    %v2542 = vadd.f32 %v2324, %v2357
    %v2543 = vadd.f32 %v2325, %v2383
    %v2544 = vadd.f32 %v2326, %v2409
    %v2545 = vadd.f32 %v2327, %v2435
    %v2546 = vadd.f32 %v2328, %v2461
    %v2547 = vadd.f32 %v2329, %v2487
    %v2548 = vadd.f32 %v2330, %v2513
    %v2549 = vadd.f32 %v2331, %v2539
    %v2550 = vxor.u32 %v2542, 2147483648
    %v2551 = vxor.u32 %v2543, 2147483648
    %v2552 = vxor.u32 %v2544, 2147483648
    %v2553 = vxor.u32 %v2545, 2147483648
    %v2554 = vxor.u32 %v2546, 2147483648
    %v2555 = vxor.u32 %v2547, 2147483648
    %v2556 = vmul.f32 %v2550, 1.442695
    %v2557 = vpow.pop %v2556
    %v2558 = vmul.f32 %v2551, 1.442695
    %v2559 = vpow.pop %v2558
    %v2560 = vmul.f32 %v2552, 1.442695
    %v2561 = vpow.pop %v2560
    %v2562 = vmul.f32 %v2553, 1.442695
    %v2563 = vpow.pop %v2562
    %v2564 = vmul.f32 %v2554, 1.442695
    %v2565 = vpow.pop %v2564
    %v2566 = vmul.f32 %v2555, 1.442695
    %v2567 = vpow.pop %v2566
    %v2568 = vadd.f32 %v2557, 1.0
    %v2569 = vadd.f32 %v2559, 1.0
    %v2570 = vadd.f32 %v2561, 1.0
    %v2571 = vadd.f32 %v2563, 1.0
    %v2572 = vadd.f32 %v2565, 1.0
    %v2573 = vadd.f32 %v2567, 1.0
    %v2574 = vrcp.pop %v2568
    %v2575 = vmul.f32 %v2568, %v2574
    %v2576 = vsub.f32 1.0, %v2575
    %v2577 = vmul.f32 %v2574, %v2576
    %v2578 = vadd.f32 %v2574, %v2577
    %vm2579 = vweird.f32 %v2568
    %vm2580 = vweird.f32 %v2574
    %vm2581 = vmor %vm2579, %vm2580
    %v2582 = vsel %vm2581, %v2574, %v2578
    %v2583 = vand.u32 2147483647, %v2568
    %vm2584 = vcmp.eq.f32.partialorder %v2583, 8.507059e+37
    %v2585 = vand.u32 %v2568, 2147483648
    %v2586 = vor.u32 1.1754944e-38, %v2585
    %v2587 = vsel %vm2584, %v2586, %v2582
    %v2588 = vmul.f32 1.0, %v2587
    %v2589 = vrcp.pop %v2569
    %v2590 = vmul.f32 %v2569, %v2589
    %v2591 = vsub.f32 1.0, %v2590
    %v2592 = vmul.f32 %v2589, %v2591
    %v2593 = vadd.f32 %v2589, %v2592
    %vm2594 = vweird.f32 %v2569
    %vm2595 = vweird.f32 %v2589
    %vm2596 = vmor %vm2594, %vm2595
    %v2597 = vsel %vm2596, %v2589, %v2593
    %v2598 = vand.u32 2147483647, %v2569
    %vm2599 = vcmp.eq.f32.partialorder %v2598, 8.507059e+37
    %v2600 = vand.u32 %v2569, 2147483648
    %v2601 = vor.u32 1.1754944e-38, %v2600
    %v2602 = vsel %vm2599, %v2601, %v2597
    %v2603 = vmul.f32 1.0, %v2602
    %v2604 = vrcp.pop %v2570
    %v2605 = vmul.f32 %v2570, %v2604
    %v2606 = vsub.f32 1.0, %v2605
    %v2607 = vmul.f32 %v2604, %v2606
    %v2608 = vadd.f32 %v2604, %v2607
    %vm2609 = vweird.f32 %v2570
    %vm2610 = vweird.f32 %v2604
    %vm2611 = vmor %vm2609, %vm2610
    %v2612 = vsel %vm2611, %v2604, %v2608
    %v2613 = vand.u32 2147483647, %v2570
    %vm2614 = vcmp.eq.f32.partialorder %v2613, 8.507059e+37
    %v2615 = vand.u32 %v2570, 2147483648
    %v2616 = vor.u32 1.1754944e-38, %v2615
    %v2617 = vsel %vm2614, %v2616, %v2612
    %v2618 = vmul.f32 1.0, %v2617
    %v2619 = vrcp.pop %v2571
    %v2620 = vmul.f32 %v2571, %v2619
    %v2621 = vsub.f32 1.0, %v2620
    %v2622 = vmul.f32 %v2619, %v2621
    %v2623 = vadd.f32 %v2619, %v2622
    %vm2624 = vweird.f32 %v2571
    %vm2625 = vweird.f32 %v2619
    %vm2626 = vmor %vm2624, %vm2625
    %v2627 = vsel %vm2626, %v2619, %v2623
    %v2628 = vand.u32 2147483647, %v2571
    %vm2629 = vcmp.eq.f32.partialorder %v2628, 8.507059e+37
    %v2630 = vand.u32 %v2571, 2147483648
    %v2631 = vor.u32 1.1754944e-38, %v2630
    %v2632 = vsel %vm2629, %v2631, %v2627
    %v2633 = vmul.f32 1.0, %v2632
    %v2634 = vrcp.pop %v2572
    %v2635 = vmul.f32 %v2572, %v2634
    %v2636 = vsub.f32 1.0, %v2635
    %v2637 = vmul.f32 %v2634, %v2636
    %v2638 = vadd.f32 %v2634, %v2637
    %vm2639 = vweird.f32 %v2572
    %vm2640 = vweird.f32 %v2634
    %vm2641 = vmor %vm2639, %vm2640
    %v2642 = vsel %vm2641, %v2634, %v2638
    %v2643 = vand.u32 2147483647, %v2572
    %vm2644 = vcmp.eq.f32.partialorder %v2643, 8.507059e+37
    %v2645 = vand.u32 %v2572, 2147483648
    %v2646 = vor.u32 1.1754944e-38, %v2645
    %v2647 = vsel %vm2644, %v2646, %v2642
    %v2648 = vmul.f32 1.0, %v2647
    %v2649 = vrcp.pop %v2573
    %v2650 = vmul.f32 %v2573, %v2649
    %v2651 = vsub.f32 1.0, %v2650
    %v2652 = vmul.f32 %v2649, %v2651
    %v2653 = vadd.f32 %v2649, %v2652
    %vm2654 = vweird.f32 %v2573
    %vm2655 = vweird.f32 %v2649
    %vm2656 = vmor %vm2654, %vm2655
    %v2657 = vsel %vm2656, %v2649, %v2653
    %v2658 = vand.u32 2147483647, %v2573
    %vm2659 = vcmp.eq.f32.partialorder %v2658, 8.507059e+37
    %v2660 = vand.u32 %v2573, 2147483648
    %v2661 = vor.u32 1.1754944e-38, %v2660
    %v2662 = vsel %vm2659, %v2661, %v2657
    %v2663 = vmul.f32 1.0, %v2662
    %v2664 = vtanh.pop %v2548
    %v2665 = vtanh.pop %v2549
    %v2666 = vmul.f32 %v2618, %v2315
    %v2667 = vmul.f32 %v2633, %v2316
    %v2668 = vmul.f32 %v2588, %v2664
    %v2669 = vmul.f32 %v2603, %v2665
    %v2670 = vadd.f32 %v2666, %v2668
    %v2671 = vadd.f32 %v2667, %v2669
    %v2672 = vtanh.pop %v2670
    %v2673 = vtanh.pop %v2671
    %v2674 = vmul.f32 %v2648, %v2672
    %v2675 = vmul.f32 %v2663, %v2673
    %s2676 = smul.u32 3, 8
    %s2677 = smul.addr %s2676, 8
    %s2678 = scalar_lea.vmem [#allocation2], %s2677
    %v2679 = vld [vmem:[%s2678] sm:$0xff]
    %v2680 = vld [vmem:[%s2678 + $0x8] sm:$0xff]
    %v2681 = vld [vmem:[%s2678 + $0x10] sm:$0xff]
    %v2682 = vld [vmem:[%s2678 + $0x18] sm:$0xff]
    %v2683 = vld [vmem:[%s2678 + $0x20] sm:$0xff]
    %v2684 = vld [vmem:[%s2678 + $0x28] sm:$0xff]
    %v2685 = vld [vmem:[%s2678 + $0x30] sm:$0xff]
    %v2686 = vld [vmem:[%s2678 + $0x38] sm:$0xff]
    %v2687 = vpack.c.bf16 %v2674, %v2674
    %v2688 = vpack.c.bf16 %v2675, %v2675
    %2689 = vmatpush.bf16.msra.mxu0 %v1424
    %2690 = vmatpush.bf16.msra.mxu0 %v1416
    %2691 = vmatpush.bf16.msra.mxu0 %v1408
    %2692 = vmatpush.bf16.msra.mxu0 %v1400
    %2693 = vmatpush.bf16.msra.mxu0 %v1392
    %2694 = vmatpush.bf16.msra.mxu0 %v1384
    %2695 = vmatpush.bf16.msra.mxu0 %v1376
    %2696 = vmatpush.bf16.msra.mxu0 %v1368
    %2697 = vmatmul.bf16.gmra.mxu0 %v2687
    %v2698 = vpop.f32.mrf.mxu0
    %v2699 = vadd.f32 0.0, %v2698
    %v2700 = vpop.f32.mrf.mxu0
    %2701 = vdwg.mxu0
    %2702 = vmatpush.bf16.msra.mxu0 %v1488
    %2703 = vmatpush.bf16.msra.mxu0 %v1480
    %2704 = vmatpush.bf16.msra.mxu0 %v1472
    %2705 = vmatpush.bf16.msra.mxu0 %v1464
    %2706 = vmatpush.bf16.msra.mxu0 %v1456
    %2707 = vmatpush.bf16.msra.mxu0 %v1448
    %2708 = vmatpush.bf16.msra.mxu0 %v1440
    %2709 = vmatpush.bf16.msra.mxu0 %v1432
    %2710 = vmatmul.bf16.gmra.mxu0 %v2688
    %v2711 = vpop.f32.mrf.mxu0
    %v2712 = vadd.f32 %v2699, %v2711
    %v2713 = vpop.f32.mrf.mxu0
    %2714 = vdwg.mxu0
    %2715 = vmatpush.bf16.msra.mxu0 %v1425
    %2716 = vmatpush.bf16.msra.mxu0 %v1417
    %2717 = vmatpush.bf16.msra.mxu0 %v1409
    %2718 = vmatpush.bf16.msra.mxu0 %v1401
    %2719 = vmatpush.bf16.msra.mxu0 %v1393
    %2720 = vmatpush.bf16.msra.mxu0 %v1385
    %2721 = vmatpush.bf16.msra.mxu0 %v1377
    %2722 = vmatpush.bf16.msra.mxu0 %v1369
    %2723 = vmatmul.bf16.gmra.mxu0 %v2687
    %v2724 = vpop.f32.mrf.mxu0
    %v2725 = vadd.f32 0.0, %v2724
    %v2726 = vpop.f32.mrf.mxu0
    %2727 = vdwg.mxu0
    %2728 = vmatpush.bf16.msra.mxu0 %v1489
    %2729 = vmatpush.bf16.msra.mxu0 %v1481
    %2730 = vmatpush.bf16.msra.mxu0 %v1473
    %2731 = vmatpush.bf16.msra.mxu0 %v1465
    %2732 = vmatpush.bf16.msra.mxu0 %v1457
    %2733 = vmatpush.bf16.msra.mxu0 %v1449
    %2734 = vmatpush.bf16.msra.mxu0 %v1441
    %2735 = vmatpush.bf16.msra.mxu0 %v1433
    %2736 = vmatmul.bf16.gmra.mxu0 %v2688
    %v2737 = vpop.f32.mrf.mxu0
    %v2738 = vadd.f32 %v2725, %v2737
    %v2739 = vpop.f32.mrf.mxu0
    %2740 = vdwg.mxu0
    %2741 = vmatpush.bf16.msra.mxu0 %v1426
    %2742 = vmatpush.bf16.msra.mxu0 %v1418
    %2743 = vmatpush.bf16.msra.mxu0 %v1410
    %2744 = vmatpush.bf16.msra.mxu0 %v1402
    %2745 = vmatpush.bf16.msra.mxu0 %v1394
    %2746 = vmatpush.bf16.msra.mxu0 %v1386
    %2747 = vmatpush.bf16.msra.mxu0 %v1378
    %2748 = vmatpush.bf16.msra.mxu0 %v1370
    %2749 = vmatmul.bf16.gmra.mxu0 %v2687
    %v2750 = vpop.f32.mrf.mxu0
    %v2751 = vadd.f32 0.0, %v2750
    %v2752 = vpop.f32.mrf.mxu0
    %2753 = vdwg.mxu0
    %2754 = vmatpush.bf16.msra.mxu0 %v1490
    %2755 = vmatpush.bf16.msra.mxu0 %v1482
    %2756 = vmatpush.bf16.msra.mxu0 %v1474
    %2757 = vmatpush.bf16.msra.mxu0 %v1466
    %2758 = vmatpush.bf16.msra.mxu0 %v1458
    %2759 = vmatpush.bf16.msra.mxu0 %v1450
    %2760 = vmatpush.bf16.msra.mxu0 %v1442
    %2761 = vmatpush.bf16.msra.mxu0 %v1434
    %2762 = vmatmul.bf16.gmra.mxu0 %v2688
    %v2763 = vpop.f32.mrf.mxu0
    %v2764 = vadd.f32 %v2751, %v2763
    %v2765 = vpop.f32.mrf.mxu0
    %2766 = vdwg.mxu0
    %2767 = vmatpush.bf16.msra.mxu0 %v1427
    %2768 = vmatpush.bf16.msra.mxu0 %v1419
    %2769 = vmatpush.bf16.msra.mxu0 %v1411
    %2770 = vmatpush.bf16.msra.mxu0 %v1403
    %2771 = vmatpush.bf16.msra.mxu0 %v1395
    %2772 = vmatpush.bf16.msra.mxu0 %v1387
    %2773 = vmatpush.bf16.msra.mxu0 %v1379
    %2774 = vmatpush.bf16.msra.mxu0 %v1371
    %2775 = vmatmul.bf16.gmra.mxu0 %v2687
    %v2776 = vpop.f32.mrf.mxu0
    %v2777 = vadd.f32 0.0, %v2776
    %v2778 = vpop.f32.mrf.mxu0
    %2779 = vdwg.mxu0
    %2780 = vmatpush.bf16.msra.mxu0 %v1491
    %2781 = vmatpush.bf16.msra.mxu0 %v1483
    %2782 = vmatpush.bf16.msra.mxu0 %v1475
    %2783 = vmatpush.bf16.msra.mxu0 %v1467
    %2784 = vmatpush.bf16.msra.mxu0 %v1459
    %2785 = vmatpush.bf16.msra.mxu0 %v1451
    %2786 = vmatpush.bf16.msra.mxu0 %v1443
    %2787 = vmatpush.bf16.msra.mxu0 %v1435
    %2788 = vmatmul.bf16.gmra.mxu0 %v2688
    %v2789 = vpop.f32.mrf.mxu0
    %v2790 = vadd.f32 %v2777, %v2789
    %v2791 = vpop.f32.mrf.mxu0
    %2792 = vdwg.mxu0
    %2793 = vmatpush.bf16.msra.mxu0 %v1428
    %2794 = vmatpush.bf16.msra.mxu0 %v1420
    %2795 = vmatpush.bf16.msra.mxu0 %v1412
    %2796 = vmatpush.bf16.msra.mxu0 %v1404
    %2797 = vmatpush.bf16.msra.mxu0 %v1396
    %2798 = vmatpush.bf16.msra.mxu0 %v1388
    %2799 = vmatpush.bf16.msra.mxu0 %v1380
    %2800 = vmatpush.bf16.msra.mxu0 %v1372
    %2801 = vmatmul.bf16.gmra.mxu0 %v2687
    %v2802 = vpop.f32.mrf.mxu0
    %v2803 = vadd.f32 0.0, %v2802
    %v2804 = vpop.f32.mrf.mxu0
    %2805 = vdwg.mxu0
    %2806 = vmatpush.bf16.msra.mxu0 %v1492
    %2807 = vmatpush.bf16.msra.mxu0 %v1484
    %2808 = vmatpush.bf16.msra.mxu0 %v1476
    %2809 = vmatpush.bf16.msra.mxu0 %v1468
    %2810 = vmatpush.bf16.msra.mxu0 %v1460
    %2811 = vmatpush.bf16.msra.mxu0 %v1452
    %2812 = vmatpush.bf16.msra.mxu0 %v1444
    %2813 = vmatpush.bf16.msra.mxu0 %v1436
    %2814 = vmatmul.bf16.gmra.mxu0 %v2688
    %v2815 = vpop.f32.mrf.mxu0
    %v2816 = vadd.f32 %v2803, %v2815
    %v2817 = vpop.f32.mrf.mxu0
    %2818 = vdwg.mxu0
    %2819 = vmatpush.bf16.msra.mxu0 %v1429
    %2820 = vmatpush.bf16.msra.mxu0 %v1421
    %2821 = vmatpush.bf16.msra.mxu0 %v1413
    %2822 = vmatpush.bf16.msra.mxu0 %v1405
    %2823 = vmatpush.bf16.msra.mxu0 %v1397
    %2824 = vmatpush.bf16.msra.mxu0 %v1389
    %2825 = vmatpush.bf16.msra.mxu0 %v1381
    %2826 = vmatpush.bf16.msra.mxu0 %v1373
    %2827 = vmatmul.bf16.gmra.mxu0 %v2687
    %v2828 = vpop.f32.mrf.mxu0
    %v2829 = vadd.f32 0.0, %v2828
    %v2830 = vpop.f32.mrf.mxu0
    %2831 = vdwg.mxu0
    %2832 = vmatpush.bf16.msra.mxu0 %v1493
    %2833 = vmatpush.bf16.msra.mxu0 %v1485
    %2834 = vmatpush.bf16.msra.mxu0 %v1477
    %2835 = vmatpush.bf16.msra.mxu0 %v1469
    %2836 = vmatpush.bf16.msra.mxu0 %v1461
    %2837 = vmatpush.bf16.msra.mxu0 %v1453
    %2838 = vmatpush.bf16.msra.mxu0 %v1445
    %2839 = vmatpush.bf16.msra.mxu0 %v1437
    %2840 = vmatmul.bf16.gmra.mxu0 %v2688
    %v2841 = vpop.f32.mrf.mxu0
    %v2842 = vadd.f32 %v2829, %v2841
    %v2843 = vpop.f32.mrf.mxu0
    %2844 = vdwg.mxu0
    %2845 = vmatpush.bf16.msra.mxu0 %v1430
    %2846 = vmatpush.bf16.msra.mxu0 %v1422
    %2847 = vmatpush.bf16.msra.mxu0 %v1414
    %2848 = vmatpush.bf16.msra.mxu0 %v1406
    %2849 = vmatpush.bf16.msra.mxu0 %v1398
    %2850 = vmatpush.bf16.msra.mxu0 %v1390
    %2851 = vmatpush.bf16.msra.mxu0 %v1382
    %2852 = vmatpush.bf16.msra.mxu0 %v1374
    %2853 = vmatmul.bf16.gmra.mxu0 %v2687
    %v2854 = vpop.f32.mrf.mxu0
    %v2855 = vadd.f32 0.0, %v2854
    %v2856 = vpop.f32.mrf.mxu0
    %2857 = vdwg.mxu0
    %2858 = vmatpush.bf16.msra.mxu0 %v1494
    %2859 = vmatpush.bf16.msra.mxu0 %v1486
    %2860 = vmatpush.bf16.msra.mxu0 %v1478
    %2861 = vmatpush.bf16.msra.mxu0 %v1470
    %2862 = vmatpush.bf16.msra.mxu0 %v1462
    %2863 = vmatpush.bf16.msra.mxu0 %v1454
    %2864 = vmatpush.bf16.msra.mxu0 %v1446
    %2865 = vmatpush.bf16.msra.mxu0 %v1438
    %2866 = vmatmul.bf16.gmra.mxu0 %v2688
    %v2867 = vpop.f32.mrf.mxu0
    %v2868 = vadd.f32 %v2855, %v2867
    %v2869 = vpop.f32.mrf.mxu0
    %2870 = vdwg.mxu0
    %2871 = vmatpush.bf16.msra.mxu0 %v1431
    %2872 = vmatpush.bf16.msra.mxu0 %v1423
    %2873 = vmatpush.bf16.msra.mxu0 %v1415
    %2874 = vmatpush.bf16.msra.mxu0 %v1407
    %2875 = vmatpush.bf16.msra.mxu0 %v1399
    %2876 = vmatpush.bf16.msra.mxu0 %v1391
    %2877 = vmatpush.bf16.msra.mxu0 %v1383
    %2878 = vmatpush.bf16.msra.mxu0 %v1375
    %2879 = vmatmul.bf16.gmra.mxu0 %v2687
    %v2880 = vpop.f32.mrf.mxu0
    %v2881 = vadd.f32 0.0, %v2880
    %v2882 = vpop.f32.mrf.mxu0
    %2883 = vdwg.mxu0
    %2884 = vmatpush.bf16.msra.mxu0 %v1495
    %2885 = vmatpush.bf16.msra.mxu0 %v1487
    %2886 = vmatpush.bf16.msra.mxu0 %v1479
    %2887 = vmatpush.bf16.msra.mxu0 %v1471
    %2888 = vmatpush.bf16.msra.mxu0 %v1463
    %2889 = vmatpush.bf16.msra.mxu0 %v1455
    %2890 = vmatpush.bf16.msra.mxu0 %v1447
    %2891 = vmatpush.bf16.msra.mxu0 %v1439
    %2892 = vmatmul.bf16.gmra.mxu0 %v2688
    %v2893 = vpop.f32.mrf.mxu0
    %v2894 = vadd.f32 %v2881, %v2893
    %v2895 = vpop.f32.mrf.mxu0
    %2896 = vdwg.mxu0
    %v2897 = vadd.f32 %v2679, %v2712
    %v2898 = vadd.f32 %v2680, %v2738
    %v2899 = vadd.f32 %v2681, %v2764
    %v2900 = vadd.f32 %v2682, %v2790
    %v2901 = vadd.f32 %v2683, %v2816
    %v2902 = vadd.f32 %v2684, %v2842
    %v2903 = vadd.f32 %v2685, %v2868
    %v2904 = vadd.f32 %v2686, %v2894
    %v2905 = vxor.u32 %v2897, 2147483648
    %v2906 = vxor.u32 %v2898, 2147483648
    %v2907 = vxor.u32 %v2899, 2147483648
    %v2908 = vxor.u32 %v2900, 2147483648
    %v2909 = vxor.u32 %v2901, 2147483648
    %v2910 = vxor.u32 %v2902, 2147483648
    %v2911 = vmul.f32 %v2905, 1.442695
    %v2912 = vpow.pop %v2911
    %v2913 = vmul.f32 %v2906, 1.442695
    %v2914 = vpow.pop %v2913
    %v2915 = vmul.f32 %v2907, 1.442695
    %v2916 = vpow.pop %v2915
    %v2917 = vmul.f32 %v2908, 1.442695
    %v2918 = vpow.pop %v2917
    %v2919 = vmul.f32 %v2909, 1.442695
    %v2920 = vpow.pop %v2919
    %v2921 = vmul.f32 %v2910, 1.442695
    %v2922 = vpow.pop %v2921
    %v2923 = vadd.f32 %v2912, 1.0
    %v2924 = vadd.f32 %v2914, 1.0
    %v2925 = vadd.f32 %v2916, 1.0
    %v2926 = vadd.f32 %v2918, 1.0
    %v2927 = vadd.f32 %v2920, 1.0
    %v2928 = vadd.f32 %v2922, 1.0
    %v2929 = vrcp.pop %v2923
    %v2930 = vmul.f32 %v2923, %v2929
    %v2931 = vsub.f32 1.0, %v2930
    %v2932 = vmul.f32 %v2929, %v2931
    %v2933 = vadd.f32 %v2929, %v2932
    %vm2934 = vweird.f32 %v2923
    %vm2935 = vweird.f32 %v2929
    %vm2936 = vmor %vm2934, %vm2935
    %v2937 = vsel %vm2936, %v2929, %v2933
    %v2938 = vand.u32 2147483647, %v2923
    %vm2939 = vcmp.eq.f32.partialorder %v2938, 8.507059e+37
    %v2940 = vand.u32 %v2923, 2147483648
    %v2941 = vor.u32 1.1754944e-38, %v2940
    %v2942 = vsel %vm2939, %v2941, %v2937
    %v2943 = vmul.f32 1.0, %v2942
    %v2944 = vrcp.pop %v2924
    %v2945 = vmul.f32 %v2924, %v2944
    %v2946 = vsub.f32 1.0, %v2945
    %v2947 = vmul.f32 %v2944, %v2946
    %v2948 = vadd.f32 %v2944, %v2947
    %vm2949 = vweird.f32 %v2924
    %vm2950 = vweird.f32 %v2944
    %vm2951 = vmor %vm2949, %vm2950
    %v2952 = vsel %vm2951, %v2944, %v2948
    %v2953 = vand.u32 2147483647, %v2924
    %vm2954 = vcmp.eq.f32.partialorder %v2953, 8.507059e+37
    %v2955 = vand.u32 %v2924, 2147483648
    %v2956 = vor.u32 1.1754944e-38, %v2955
    %v2957 = vsel %vm2954, %v2956, %v2952
    %v2958 = vmul.f32 1.0, %v2957
    %v2959 = vrcp.pop %v2925
    %v2960 = vmul.f32 %v2925, %v2959
    %v2961 = vsub.f32 1.0, %v2960
    %v2962 = vmul.f32 %v2959, %v2961
    %v2963 = vadd.f32 %v2959, %v2962
    %vm2964 = vweird.f32 %v2925
    %vm2965 = vweird.f32 %v2959
    %vm2966 = vmor %vm2964, %vm2965
    %v2967 = vsel %vm2966, %v2959, %v2963
    %v2968 = vand.u32 2147483647, %v2925
    %vm2969 = vcmp.eq.f32.partialorder %v2968, 8.507059e+37
    %v2970 = vand.u32 %v2925, 2147483648
    %v2971 = vor.u32 1.1754944e-38, %v2970
    %v2972 = vsel %vm2969, %v2971, %v2967
    %v2973 = vmul.f32 1.0, %v2972
    %v2974 = vrcp.pop %v2926
    %v2975 = vmul.f32 %v2926, %v2974
    %v2976 = vsub.f32 1.0, %v2975
    %v2977 = vmul.f32 %v2974, %v2976
    %v2978 = vadd.f32 %v2974, %v2977
    %vm2979 = vweird.f32 %v2926
    %vm2980 = vweird.f32 %v2974
    %vm2981 = vmor %vm2979, %vm2980
    %v2982 = vsel %vm2981, %v2974, %v2978
    %v2983 = vand.u32 2147483647, %v2926
    %vm2984 = vcmp.eq.f32.partialorder %v2983, 8.507059e+37
    %v2985 = vand.u32 %v2926, 2147483648
    %v2986 = vor.u32 1.1754944e-38, %v2985
    %v2987 = vsel %vm2984, %v2986, %v2982
    %v2988 = vmul.f32 1.0, %v2987
    %v2989 = vrcp.pop %v2927
    %v2990 = vmul.f32 %v2927, %v2989
    %v2991 = vsub.f32 1.0, %v2990
    %v2992 = vmul.f32 %v2989, %v2991
    %v2993 = vadd.f32 %v2989, %v2992
    %vm2994 = vweird.f32 %v2927
    %vm2995 = vweird.f32 %v2989
    %vm2996 = vmor %vm2994, %vm2995
    %v2997 = vsel %vm2996, %v2989, %v2993
    %v2998 = vand.u32 2147483647, %v2927
    %vm2999 = vcmp.eq.f32.partialorder %v2998, 8.507059e+37
    %v3000 = vand.u32 %v2927, 2147483648
    %v3001 = vor.u32 1.1754944e-38, %v3000
    %v3002 = vsel %vm2999, %v3001, %v2997
    %v3003 = vmul.f32 1.0, %v3002
    %v3004 = vrcp.pop %v2928
    %v3005 = vmul.f32 %v2928, %v3004
    %v3006 = vsub.f32 1.0, %v3005
    %v3007 = vmul.f32 %v3004, %v3006
    %v3008 = vadd.f32 %v3004, %v3007
    %vm3009 = vweird.f32 %v2928
    %vm3010 = vweird.f32 %v3004
    %vm3011 = vmor %vm3009, %vm3010
    %v3012 = vsel %vm3011, %v3004, %v3008
    %v3013 = vand.u32 2147483647, %v2928
    %vm3014 = vcmp.eq.f32.partialorder %v3013, 8.507059e+37
    %v3015 = vand.u32 %v2928, 2147483648
    %v3016 = vor.u32 1.1754944e-38, %v3015
    %v3017 = vsel %vm3014, %v3016, %v3012
    %v3018 = vmul.f32 1.0, %v3017
    %v3019 = vtanh.pop %v2903
    %v3020 = vtanh.pop %v2904
    %v3021 = vmul.f32 %v2973, %v2670
    %v3022 = vmul.f32 %v2988, %v2671
    %v3023 = vmul.f32 %v2943, %v3019
    %v3024 = vmul.f32 %v2958, %v3020
    %v3025 = vadd.f32 %v3021, %v3023
    %v3026 = vadd.f32 %v3022, %v3024
    %v3027 = vtanh.pop %v3025
    %v3028 = vtanh.pop %v3026
    %v3029 = vmul.f32 %v3003, %v3027
    %v3030 = vmul.f32 %v3018, %v3028
    %s3031 = smul.u32 4, 8
    %s3032 = smul.addr %s3031, 8
    %s3033 = scalar_lea.vmem [#allocation2], %s3032
    %v3034 = vld [vmem:[%s3033] sm:$0xff]
    %v3035 = vld [vmem:[%s3033 + $0x8] sm:$0xff]
    %v3036 = vld [vmem:[%s3033 + $0x10] sm:$0xff]
    %v3037 = vld [vmem:[%s3033 + $0x18] sm:$0xff]
    %v3038 = vld [vmem:[%s3033 + $0x20] sm:$0xff]
    %v3039 = vld [vmem:[%s3033 + $0x28] sm:$0xff]
    %v3040 = vld [vmem:[%s3033 + $0x30] sm:$0xff]
    %v3041 = vld [vmem:[%s3033 + $0x38] sm:$0xff]
    %v3042 = vpack.c.bf16 %v3029, %v3029
    %v3043 = vpack.c.bf16 %v3030, %v3030
    %3044 = vmatpush.bf16.msra.mxu0 %v1424
    %3045 = vmatpush.bf16.msra.mxu0 %v1416
    %3046 = vmatpush.bf16.msra.mxu0 %v1408
    %3047 = vmatpush.bf16.msra.mxu0 %v1400
    %3048 = vmatpush.bf16.msra.mxu0 %v1392
    %3049 = vmatpush.bf16.msra.mxu0 %v1384
    %3050 = vmatpush.bf16.msra.mxu0 %v1376
    %3051 = vmatpush.bf16.msra.mxu0 %v1368
    %3052 = vmatmul.bf16.gmra.mxu0 %v3042
    %v3053 = vpop.f32.mrf.mxu0
    %v3054 = vadd.f32 0.0, %v3053
    %v3055 = vpop.f32.mrf.mxu0
    %3056 = vdwg.mxu0
    %3057 = vmatpush.bf16.msra.mxu0 %v1488
    %3058 = vmatpush.bf16.msra.mxu0 %v1480
    %3059 = vmatpush.bf16.msra.mxu0 %v1472
    %3060 = vmatpush.bf16.msra.mxu0 %v1464
    %3061 = vmatpush.bf16.msra.mxu0 %v1456
    %3062 = vmatpush.bf16.msra.mxu0 %v1448
    %3063 = vmatpush.bf16.msra.mxu0 %v1440
    %3064 = vmatpush.bf16.msra.mxu0 %v1432
    %3065 = vmatmul.bf16.gmra.mxu0 %v3043
    %v3066 = vpop.f32.mrf.mxu0
    %v3067 = vadd.f32 %v3054, %v3066
    %v3068 = vpop.f32.mrf.mxu0
    %3069 = vdwg.mxu0
    %3070 = vmatpush.bf16.msra.mxu0 %v1425
    %3071 = vmatpush.bf16.msra.mxu0 %v1417
    %3072 = vmatpush.bf16.msra.mxu0 %v1409
    %3073 = vmatpush.bf16.msra.mxu0 %v1401
    %3074 = vmatpush.bf16.msra.mxu0 %v1393
    %3075 = vmatpush.bf16.msra.mxu0 %v1385
    %3076 = vmatpush.bf16.msra.mxu0 %v1377
    %3077 = vmatpush.bf16.msra.mxu0 %v1369
    %3078 = vmatmul.bf16.gmra.mxu0 %v3042
    %v3079 = vpop.f32.mrf.mxu0
    %v3080 = vadd.f32 0.0, %v3079
    %v3081 = vpop.f32.mrf.mxu0
    %3082 = vdwg.mxu0
    %3083 = vmatpush.bf16.msra.mxu0 %v1489
    %3084 = vmatpush.bf16.msra.mxu0 %v1481
    %3085 = vmatpush.bf16.msra.mxu0 %v1473
    %3086 = vmatpush.bf16.msra.mxu0 %v1465
    %3087 = vmatpush.bf16.msra.mxu0 %v1457
    %3088 = vmatpush.bf16.msra.mxu0 %v1449
    %3089 = vmatpush.bf16.msra.mxu0 %v1441
    %3090 = vmatpush.bf16.msra.mxu0 %v1433
    %3091 = vmatmul.bf16.gmra.mxu0 %v3043
    %v3092 = vpop.f32.mrf.mxu0
    %v3093 = vadd.f32 %v3080, %v3092
    %v3094 = vpop.f32.mrf.mxu0
    %3095 = vdwg.mxu0
    %3096 = vmatpush.bf16.msra.mxu0 %v1426
    %3097 = vmatpush.bf16.msra.mxu0 %v1418
    %3098 = vmatpush.bf16.msra.mxu0 %v1410
    %3099 = vmatpush.bf16.msra.mxu0 %v1402
    %3100 = vmatpush.bf16.msra.mxu0 %v1394
    %3101 = vmatpush.bf16.msra.mxu0 %v1386
    %3102 = vmatpush.bf16.msra.mxu0 %v1378
    %3103 = vmatpush.bf16.msra.mxu0 %v1370
    %3104 = vmatmul.bf16.gmra.mxu0 %v3042
    %v3105 = vpop.f32.mrf.mxu0
    %v3106 = vadd.f32 0.0, %v3105
    %v3107 = vpop.f32.mrf.mxu0
    %3108 = vdwg.mxu0
    %3109 = vmatpush.bf16.msra.mxu0 %v1490
    %3110 = vmatpush.bf16.msra.mxu0 %v1482
    %3111 = vmatpush.bf16.msra.mxu0 %v1474
    %3112 = vmatpush.bf16.msra.mxu0 %v1466
    %3113 = vmatpush.bf16.msra.mxu0 %v1458
    %3114 = vmatpush.bf16.msra.mxu0 %v1450
    %3115 = vmatpush.bf16.msra.mxu0 %v1442
    %3116 = vmatpush.bf16.msra.mxu0 %v1434
    %3117 = vmatmul.bf16.gmra.mxu0 %v3043
    %v3118 = vpop.f32.mrf.mxu0
    %v3119 = vadd.f32 %v3106, %v3118
    %v3120 = vpop.f32.mrf.mxu0
    %3121 = vdwg.mxu0
    %3122 = vmatpush.bf16.msra.mxu0 %v1427
    %3123 = vmatpush.bf16.msra.mxu0 %v1419
    %3124 = vmatpush.bf16.msra.mxu0 %v1411
    %3125 = vmatpush.bf16.msra.mxu0 %v1403
    %3126 = vmatpush.bf16.msra.mxu0 %v1395
    %3127 = vmatpush.bf16.msra.mxu0 %v1387
    %3128 = vmatpush.bf16.msra.mxu0 %v1379
    %3129 = vmatpush.bf16.msra.mxu0 %v1371
    %3130 = vmatmul.bf16.gmra.mxu0 %v3042
    %v3131 = vpop.f32.mrf.mxu0
    %v3132 = vadd.f32 0.0, %v3131
    %v3133 = vpop.f32.mrf.mxu0
    %3134 = vdwg.mxu0
    %3135 = vmatpush.bf16.msra.mxu0 %v1491
    %3136 = vmatpush.bf16.msra.mxu0 %v1483
    %3137 = vmatpush.bf16.msra.mxu0 %v1475
    %3138 = vmatpush.bf16.msra.mxu0 %v1467
    %3139 = vmatpush.bf16.msra.mxu0 %v1459
    %3140 = vmatpush.bf16.msra.mxu0 %v1451
    %3141 = vmatpush.bf16.msra.mxu0 %v1443
    %3142 = vmatpush.bf16.msra.mxu0 %v1435
    %3143 = vmatmul.bf16.gmra.mxu0 %v3043
    %v3144 = vpop.f32.mrf.mxu0
    %v3145 = vadd.f32 %v3132, %v3144
    %v3146 = vpop.f32.mrf.mxu0
    %3147 = vdwg.mxu0
    %3148 = vmatpush.bf16.msra.mxu0 %v1428
    %3149 = vmatpush.bf16.msra.mxu0 %v1420
    %3150 = vmatpush.bf16.msra.mxu0 %v1412
    %3151 = vmatpush.bf16.msra.mxu0 %v1404
    %3152 = vmatpush.bf16.msra.mxu0 %v1396
    %3153 = vmatpush.bf16.msra.mxu0 %v1388
    %3154 = vmatpush.bf16.msra.mxu0 %v1380
    %3155 = vmatpush.bf16.msra.mxu0 %v1372
    %3156 = vmatmul.bf16.gmra.mxu0 %v3042
    %v3157 = vpop.f32.mrf.mxu0
    %v3158 = vadd.f32 0.0, %v3157
    %v3159 = vpop.f32.mrf.mxu0
    %3160 = vdwg.mxu0
    %3161 = vmatpush.bf16.msra.mxu0 %v1492
    %3162 = vmatpush.bf16.msra.mxu0 %v1484
    %3163 = vmatpush.bf16.msra.mxu0 %v1476
    %3164 = vmatpush.bf16.msra.mxu0 %v1468
    %3165 = vmatpush.bf16.msra.mxu0 %v1460
    %3166 = vmatpush.bf16.msra.mxu0 %v1452
    %3167 = vmatpush.bf16.msra.mxu0 %v1444
    %3168 = vmatpush.bf16.msra.mxu0 %v1436
    %3169 = vmatmul.bf16.gmra.mxu0 %v3043
    %v3170 = vpop.f32.mrf.mxu0
    %v3171 = vadd.f32 %v3158, %v3170
    %v3172 = vpop.f32.mrf.mxu0
    %3173 = vdwg.mxu0
    %3174 = vmatpush.bf16.msra.mxu0 %v1429
    %3175 = vmatpush.bf16.msra.mxu0 %v1421
    %3176 = vmatpush.bf16.msra.mxu0 %v1413
    %3177 = vmatpush.bf16.msra.mxu0 %v1405
    %3178 = vmatpush.bf16.msra.mxu0 %v1397
    %3179 = vmatpush.bf16.msra.mxu0 %v1389
    %3180 = vmatpush.bf16.msra.mxu0 %v1381
    %3181 = vmatpush.bf16.msra.mxu0 %v1373
    %3182 = vmatmul.bf16.gmra.mxu0 %v3042
    %v3183 = vpop.f32.mrf.mxu0
    %v3184 = vadd.f32 0.0, %v3183
    %v3185 = vpop.f32.mrf.mxu0
    %3186 = vdwg.mxu0
    %3187 = vmatpush.bf16.msra.mxu0 %v1493
    %3188 = vmatpush.bf16.msra.mxu0 %v1485
    %3189 = vmatpush.bf16.msra.mxu0 %v1477
    %3190 = vmatpush.bf16.msra.mxu0 %v1469
    %3191 = vmatpush.bf16.msra.mxu0 %v1461
    %3192 = vmatpush.bf16.msra.mxu0 %v1453
    %3193 = vmatpush.bf16.msra.mxu0 %v1445
    %3194 = vmatpush.bf16.msra.mxu0 %v1437
    %3195 = vmatmul.bf16.gmra.mxu0 %v3043
    %v3196 = vpop.f32.mrf.mxu0
    %v3197 = vadd.f32 %v3184, %v3196
    %v3198 = vpop.f32.mrf.mxu0
    %3199 = vdwg.mxu0
    %3200 = vmatpush.bf16.msra.mxu0 %v1430
    %3201 = vmatpush.bf16.msra.mxu0 %v1422
    %3202 = vmatpush.bf16.msra.mxu0 %v1414
    %3203 = vmatpush.bf16.msra.mxu0 %v1406
    %3204 = vmatpush.bf16.msra.mxu0 %v1398
    %3205 = vmatpush.bf16.msra.mxu0 %v1390
    %3206 = vmatpush.bf16.msra.mxu0 %v1382
    %3207 = vmatpush.bf16.msra.mxu0 %v1374
    %3208 = vmatmul.bf16.gmra.mxu0 %v3042
    %v3209 = vpop.f32.mrf.mxu0
    %v3210 = vadd.f32 0.0, %v3209
    %v3211 = vpop.f32.mrf.mxu0
    %3212 = vdwg.mxu0
    %3213 = vmatpush.bf16.msra.mxu0 %v1494
    %3214 = vmatpush.bf16.msra.mxu0 %v1486
    %3215 = vmatpush.bf16.msra.mxu0 %v1478
    %3216 = vmatpush.bf16.msra.mxu0 %v1470
    %3217 = vmatpush.bf16.msra.mxu0 %v1462
    %3218 = vmatpush.bf16.msra.mxu0 %v1454
    %3219 = vmatpush.bf16.msra.mxu0 %v1446
    %3220 = vmatpush.bf16.msra.mxu0 %v1438
    %3221 = vmatmul.bf16.gmra.mxu0 %v3043
    %v3222 = vpop.f32.mrf.mxu0
    %v3223 = vadd.f32 %v3210, %v3222
    %v3224 = vpop.f32.mrf.mxu0
    %3225 = vdwg.mxu0
    %3226 = vmatpush.bf16.msra.mxu0 %v1431
    %3227 = vmatpush.bf16.msra.mxu0 %v1423
    %3228 = vmatpush.bf16.msra.mxu0 %v1415
    %3229 = vmatpush.bf16.msra.mxu0 %v1407
    %3230 = vmatpush.bf16.msra.mxu0 %v1399
    %3231 = vmatpush.bf16.msra.mxu0 %v1391
    %3232 = vmatpush.bf16.msra.mxu0 %v1383
    %3233 = vmatpush.bf16.msra.mxu0 %v1375
    %3234 = vmatmul.bf16.gmra.mxu0 %v3042
    %v3235 = vpop.f32.mrf.mxu0
    %v3236 = vadd.f32 0.0, %v3235
    %v3237 = vpop.f32.mrf.mxu0
    %3238 = vdwg.mxu0
    %3239 = vmatpush.bf16.msra.mxu0 %v1495
    %3240 = vmatpush.bf16.msra.mxu0 %v1487
    %3241 = vmatpush.bf16.msra.mxu0 %v1479
    %3242 = vmatpush.bf16.msra.mxu0 %v1471
    %3243 = vmatpush.bf16.msra.mxu0 %v1463
    %3244 = vmatpush.bf16.msra.mxu0 %v1455
    %3245 = vmatpush.bf16.msra.mxu0 %v1447
    %3246 = vmatpush.bf16.msra.mxu0 %v1439
    %3247 = vmatmul.bf16.gmra.mxu0 %v3043
    %v3248 = vpop.f32.mrf.mxu0
    %v3249 = vadd.f32 %v3236, %v3248
    %v3250 = vpop.f32.mrf.mxu0
    %3251 = vdwg.mxu0
    %v3252 = vadd.f32 %v3034, %v3067
    %v3253 = vadd.f32 %v3035, %v3093
    %v3254 = vadd.f32 %v3036, %v3119
    %v3255 = vadd.f32 %v3037, %v3145
    %v3256 = vadd.f32 %v3038, %v3171
    %v3257 = vadd.f32 %v3039, %v3197
    %v3258 = vadd.f32 %v3040, %v3223
    %v3259 = vadd.f32 %v3041, %v3249
    %v3260 = vxor.u32 %v3252, 2147483648
    %v3261 = vxor.u32 %v3253, 2147483648
    %v3262 = vxor.u32 %v3254, 2147483648
    %v3263 = vxor.u32 %v3255, 2147483648
    %v3264 = vxor.u32 %v3256, 2147483648
    %v3265 = vxor.u32 %v3257, 2147483648
    %v3266 = vmul.f32 %v3260, 1.442695
    %v3267 = vpow.pop %v3266
    %v3268 = vmul.f32 %v3261, 1.442695
    %v3269 = vpow.pop %v3268
    %v3270 = vmul.f32 %v3262, 1.442695
    %v3271 = vpow.pop %v3270
    %v3272 = vmul.f32 %v3263, 1.442695
    %v3273 = vpow.pop %v3272
    %v3274 = vmul.f32 %v3264, 1.442695
    %v3275 = vpow.pop %v3274
    %v3276 = vmul.f32 %v3265, 1.442695
    %v3277 = vpow.pop %v3276
    %v3278 = vadd.f32 %v3267, 1.0
    %v3279 = vadd.f32 %v3269, 1.0
    %v3280 = vadd.f32 %v3271, 1.0
    %v3281 = vadd.f32 %v3273, 1.0
    %v3282 = vadd.f32 %v3275, 1.0
    %v3283 = vadd.f32 %v3277, 1.0
    %v3284 = vrcp.pop %v3278
    %v3285 = vmul.f32 %v3278, %v3284
    %v3286 = vsub.f32 1.0, %v3285
    %v3287 = vmul.f32 %v3284, %v3286
    %v3288 = vadd.f32 %v3284, %v3287
    %vm3289 = vweird.f32 %v3278
    %vm3290 = vweird.f32 %v3284
    %vm3291 = vmor %vm3289, %vm3290
    %v3292 = vsel %vm3291, %v3284, %v3288
    %v3293 = vand.u32 2147483647, %v3278
    %vm3294 = vcmp.eq.f32.partialorder %v3293, 8.507059e+37
    %v3295 = vand.u32 %v3278, 2147483648
    %v3296 = vor.u32 1.1754944e-38, %v3295
    %v3297 = vsel %vm3294, %v3296, %v3292
    %v3298 = vmul.f32 1.0, %v3297
    %v3299 = vrcp.pop %v3279
    %v3300 = vmul.f32 %v3279, %v3299
    %v3301 = vsub.f32 1.0, %v3300
    %v3302 = vmul.f32 %v3299, %v3301
    %v3303 = vadd.f32 %v3299, %v3302
    %vm3304 = vweird.f32 %v3279
    %vm3305 = vweird.f32 %v3299
    %vm3306 = vmor %vm3304, %vm3305
    %v3307 = vsel %vm3306, %v3299, %v3303
    %v3308 = vand.u32 2147483647, %v3279
    %vm3309 = vcmp.eq.f32.partialorder %v3308, 8.507059e+37
    %v3310 = vand.u32 %v3279, 2147483648
    %v3311 = vor.u32 1.1754944e-38, %v3310
    %v3312 = vsel %vm3309, %v3311, %v3307
    %v3313 = vmul.f32 1.0, %v3312
    %v3314 = vrcp.pop %v3280
    %v3315 = vmul.f32 %v3280, %v3314
    %v3316 = vsub.f32 1.0, %v3315
    %v3317 = vmul.f32 %v3314, %v3316
    %v3318 = vadd.f32 %v3314, %v3317
    %vm3319 = vweird.f32 %v3280
    %vm3320 = vweird.f32 %v3314
    %vm3321 = vmor %vm3319, %vm3320
    %v3322 = vsel %vm3321, %v3314, %v3318
    %v3323 = vand.u32 2147483647, %v3280
    %vm3324 = vcmp.eq.f32.partialorder %v3323, 8.507059e+37
    %v3325 = vand.u32 %v3280, 2147483648
    %v3326 = vor.u32 1.1754944e-38, %v3325
    %v3327 = vsel %vm3324, %v3326, %v3322
    %v3328 = vmul.f32 1.0, %v3327
    %v3329 = vrcp.pop %v3281
    %v3330 = vmul.f32 %v3281, %v3329
    %v3331 = vsub.f32 1.0, %v3330
    %v3332 = vmul.f32 %v3329, %v3331
    %v3333 = vadd.f32 %v3329, %v3332
    %vm3334 = vweird.f32 %v3281
    %vm3335 = vweird.f32 %v3329
    %vm3336 = vmor %vm3334, %vm3335
    %v3337 = vsel %vm3336, %v3329, %v3333
    %v3338 = vand.u32 2147483647, %v3281
    %vm3339 = vcmp.eq.f32.partialorder %v3338, 8.507059e+37
    %v3340 = vand.u32 %v3281, 2147483648
    %v3341 = vor.u32 1.1754944e-38, %v3340
    %v3342 = vsel %vm3339, %v3341, %v3337
    %v3343 = vmul.f32 1.0, %v3342
    %v3344 = vrcp.pop %v3282
    %v3345 = vmul.f32 %v3282, %v3344
    %v3346 = vsub.f32 1.0, %v3345
    %v3347 = vmul.f32 %v3344, %v3346
    %v3348 = vadd.f32 %v3344, %v3347
    %vm3349 = vweird.f32 %v3282
    %vm3350 = vweird.f32 %v3344
    %vm3351 = vmor %vm3349, %vm3350
    %v3352 = vsel %vm3351, %v3344, %v3348
    %v3353 = vand.u32 2147483647, %v3282
    %vm3354 = vcmp.eq.f32.partialorder %v3353, 8.507059e+37
    %v3355 = vand.u32 %v3282, 2147483648
    %v3356 = vor.u32 1.1754944e-38, %v3355
    %v3357 = vsel %vm3354, %v3356, %v3352
    %v3358 = vmul.f32 1.0, %v3357
    %v3359 = vrcp.pop %v3283
    %v3360 = vmul.f32 %v3283, %v3359
    %v3361 = vsub.f32 1.0, %v3360
    %v3362 = vmul.f32 %v3359, %v3361
    %v3363 = vadd.f32 %v3359, %v3362
    %vm3364 = vweird.f32 %v3283
    %vm3365 = vweird.f32 %v3359
    %vm3366 = vmor %vm3364, %vm3365
    %v3367 = vsel %vm3366, %v3359, %v3363
    %v3368 = vand.u32 2147483647, %v3283
    %vm3369 = vcmp.eq.f32.partialorder %v3368, 8.507059e+37
    %v3370 = vand.u32 %v3283, 2147483648
    %v3371 = vor.u32 1.1754944e-38, %v3370
    %v3372 = vsel %vm3369, %v3371, %v3367
    %v3373 = vmul.f32 1.0, %v3372
    %v3374 = vtanh.pop %v3258
    %v3375 = vtanh.pop %v3259
    %v3376 = vmul.f32 %v3328, %v3025
    %v3377 = vmul.f32 %v3343, %v3026
    %v3378 = vmul.f32 %v3298, %v3374
    %v3379 = vmul.f32 %v3313, %v3375
    %v3380 = vadd.f32 %v3376, %v3378
    %v3381 = vadd.f32 %v3377, %v3379
    %v3382 = vtanh.pop %v3380
    %v3383 = vtanh.pop %v3381
    %v3384 = vmul.f32 %v3358, %v3382
    %v3385 = vmul.f32 %v3373, %v3383
    %s3386 = smul.u32 5, 8
    %s3387 = smul.addr %s3386, 8
    %s3388 = scalar_lea.vmem [#allocation2], %s3387
    %v3389 = vld [vmem:[%s3388] sm:$0xff]
    %v3390 = vld [vmem:[%s3388 + $0x8] sm:$0xff]
    %v3391 = vld [vmem:[%s3388 + $0x10] sm:$0xff]
    %v3392 = vld [vmem:[%s3388 + $0x18] sm:$0xff]
    %v3393 = vld [vmem:[%s3388 + $0x20] sm:$0xff]
    %v3394 = vld [vmem:[%s3388 + $0x28] sm:$0xff]
    %v3395 = vld [vmem:[%s3388 + $0x30] sm:$0xff]
    %v3396 = vld [vmem:[%s3388 + $0x38] sm:$0xff]
    %v3397 = vpack.c.bf16 %v3384, %v3384
    %v3398 = vpack.c.bf16 %v3385, %v3385
    %3399 = vmatpush.bf16.msra.mxu0 %v1424
    %3400 = vmatpush.bf16.msra.mxu0 %v1416
    %3401 = vmatpush.bf16.msra.mxu0 %v1408
    %3402 = vmatpush.bf16.msra.mxu0 %v1400
    %3403 = vmatpush.bf16.msra.mxu0 %v1392
    %3404 = vmatpush.bf16.msra.mxu0 %v1384
    %3405 = vmatpush.bf16.msra.mxu0 %v1376
    %3406 = vmatpush.bf16.msra.mxu0 %v1368
    %3407 = vmatmul.bf16.gmra.mxu0 %v3397
    %v3408 = vpop.f32.mrf.mxu0
    %v3409 = vadd.f32 0.0, %v3408
    %v3410 = vpop.f32.mrf.mxu0
    %3411 = vdwg.mxu0
    %3412 = vmatpush.bf16.msra.mxu0 %v1488
    %3413 = vmatpush.bf16.msra.mxu0 %v1480
    %3414 = vmatpush.bf16.msra.mxu0 %v1472
    %3415 = vmatpush.bf16.msra.mxu0 %v1464
    %3416 = vmatpush.bf16.msra.mxu0 %v1456
    %3417 = vmatpush.bf16.msra.mxu0 %v1448
    %3418 = vmatpush.bf16.msra.mxu0 %v1440
    %3419 = vmatpush.bf16.msra.mxu0 %v1432
    %3420 = vmatmul.bf16.gmra.mxu0 %v3398
    %v3421 = vpop.f32.mrf.mxu0
    %v3422 = vadd.f32 %v3409, %v3421
    %v3423 = vpop.f32.mrf.mxu0
    %3424 = vdwg.mxu0
    %3425 = vmatpush.bf16.msra.mxu0 %v1425
    %3426 = vmatpush.bf16.msra.mxu0 %v1417
    %3427 = vmatpush.bf16.msra.mxu0 %v1409
    %3428 = vmatpush.bf16.msra.mxu0 %v1401
    %3429 = vmatpush.bf16.msra.mxu0 %v1393
    %3430 = vmatpush.bf16.msra.mxu0 %v1385
    %3431 = vmatpush.bf16.msra.mxu0 %v1377
    %3432 = vmatpush.bf16.msra.mxu0 %v1369
    %3433 = vmatmul.bf16.gmra.mxu0 %v3397
    %v3434 = vpop.f32.mrf.mxu0
    %v3435 = vadd.f32 0.0, %v3434
    %v3436 = vpop.f32.mrf.mxu0
    %3437 = vdwg.mxu0
    %3438 = vmatpush.bf16.msra.mxu0 %v1489
    %3439 = vmatpush.bf16.msra.mxu0 %v1481
    %3440 = vmatpush.bf16.msra.mxu0 %v1473
    %3441 = vmatpush.bf16.msra.mxu0 %v1465
    %3442 = vmatpush.bf16.msra.mxu0 %v1457
    %3443 = vmatpush.bf16.msra.mxu0 %v1449
    %3444 = vmatpush.bf16.msra.mxu0 %v1441
    %3445 = vmatpush.bf16.msra.mxu0 %v1433
    %3446 = vmatmul.bf16.gmra.mxu0 %v3398
    %v3447 = vpop.f32.mrf.mxu0
    %v3448 = vadd.f32 %v3435, %v3447
    %v3449 = vpop.f32.mrf.mxu0
    %3450 = vdwg.mxu0
    %3451 = vmatpush.bf16.msra.mxu0 %v1426
    %3452 = vmatpush.bf16.msra.mxu0 %v1418
    %3453 = vmatpush.bf16.msra.mxu0 %v1410
    %3454 = vmatpush.bf16.msra.mxu0 %v1402
    %3455 = vmatpush.bf16.msra.mxu0 %v1394
    %3456 = vmatpush.bf16.msra.mxu0 %v1386
    %3457 = vmatpush.bf16.msra.mxu0 %v1378
    %3458 = vmatpush.bf16.msra.mxu0 %v1370
    %3459 = vmatmul.bf16.gmra.mxu0 %v3397
    %v3460 = vpop.f32.mrf.mxu0
    %v3461 = vadd.f32 0.0, %v3460
    %v3462 = vpop.f32.mrf.mxu0
    %3463 = vdwg.mxu0
    %3464 = vmatpush.bf16.msra.mxu0 %v1490
    %3465 = vmatpush.bf16.msra.mxu0 %v1482
    %3466 = vmatpush.bf16.msra.mxu0 %v1474
    %3467 = vmatpush.bf16.msra.mxu0 %v1466
    %3468 = vmatpush.bf16.msra.mxu0 %v1458
    %3469 = vmatpush.bf16.msra.mxu0 %v1450
    %3470 = vmatpush.bf16.msra.mxu0 %v1442
    %3471 = vmatpush.bf16.msra.mxu0 %v1434
    %3472 = vmatmul.bf16.gmra.mxu0 %v3398
    %v3473 = vpop.f32.mrf.mxu0
    %v3474 = vadd.f32 %v3461, %v3473
    %v3475 = vpop.f32.mrf.mxu0
    %3476 = vdwg.mxu0
    %3477 = vmatpush.bf16.msra.mxu0 %v1427
    %3478 = vmatpush.bf16.msra.mxu0 %v1419
    %3479 = vmatpush.bf16.msra.mxu0 %v1411
    %3480 = vmatpush.bf16.msra.mxu0 %v1403
    %3481 = vmatpush.bf16.msra.mxu0 %v1395
    %3482 = vmatpush.bf16.msra.mxu0 %v1387
    %3483 = vmatpush.bf16.msra.mxu0 %v1379
    %3484 = vmatpush.bf16.msra.mxu0 %v1371
    %3485 = vmatmul.bf16.gmra.mxu0 %v3397
    %v3486 = vpop.f32.mrf.mxu0
    %v3487 = vadd.f32 0.0, %v3486
    %v3488 = vpop.f32.mrf.mxu0
    %3489 = vdwg.mxu0
    %3490 = vmatpush.bf16.msra.mxu0 %v1491
    %3491 = vmatpush.bf16.msra.mxu0 %v1483
    %3492 = vmatpush.bf16.msra.mxu0 %v1475
    %3493 = vmatpush.bf16.msra.mxu0 %v1467
    %3494 = vmatpush.bf16.msra.mxu0 %v1459
    %3495 = vmatpush.bf16.msra.mxu0 %v1451
    %3496 = vmatpush.bf16.msra.mxu0 %v1443
    %3497 = vmatpush.bf16.msra.mxu0 %v1435
    %3498 = vmatmul.bf16.gmra.mxu0 %v3398
    %v3499 = vpop.f32.mrf.mxu0
    %v3500 = vadd.f32 %v3487, %v3499
    %v3501 = vpop.f32.mrf.mxu0
    %3502 = vdwg.mxu0
    %3503 = vmatpush.bf16.msra.mxu0 %v1428
    %3504 = vmatpush.bf16.msra.mxu0 %v1420
    %3505 = vmatpush.bf16.msra.mxu0 %v1412
    %3506 = vmatpush.bf16.msra.mxu0 %v1404
    %3507 = vmatpush.bf16.msra.mxu0 %v1396
    %3508 = vmatpush.bf16.msra.mxu0 %v1388
    %3509 = vmatpush.bf16.msra.mxu0 %v1380
    %3510 = vmatpush.bf16.msra.mxu0 %v1372
    %3511 = vmatmul.bf16.gmra.mxu0 %v3397
    %v3512 = vpop.f32.mrf.mxu0
    %v3513 = vadd.f32 0.0, %v3512
    %v3514 = vpop.f32.mrf.mxu0
    %3515 = vdwg.mxu0
    %3516 = vmatpush.bf16.msra.mxu0 %v1492
    %3517 = vmatpush.bf16.msra.mxu0 %v1484
    %3518 = vmatpush.bf16.msra.mxu0 %v1476
    %3519 = vmatpush.bf16.msra.mxu0 %v1468
    %3520 = vmatpush.bf16.msra.mxu0 %v1460
    %3521 = vmatpush.bf16.msra.mxu0 %v1452
    %3522 = vmatpush.bf16.msra.mxu0 %v1444
    %3523 = vmatpush.bf16.msra.mxu0 %v1436
    %3524 = vmatmul.bf16.gmra.mxu0 %v3398
    %v3525 = vpop.f32.mrf.mxu0
    %v3526 = vadd.f32 %v3513, %v3525
    %v3527 = vpop.f32.mrf.mxu0
    %3528 = vdwg.mxu0
    %3529 = vmatpush.bf16.msra.mxu0 %v1429
    %3530 = vmatpush.bf16.msra.mxu0 %v1421
    %3531 = vmatpush.bf16.msra.mxu0 %v1413
    %3532 = vmatpush.bf16.msra.mxu0 %v1405
    %3533 = vmatpush.bf16.msra.mxu0 %v1397
    %3534 = vmatpush.bf16.msra.mxu0 %v1389
    %3535 = vmatpush.bf16.msra.mxu0 %v1381
    %3536 = vmatpush.bf16.msra.mxu0 %v1373
    %3537 = vmatmul.bf16.gmra.mxu0 %v3397
    %v3538 = vpop.f32.mrf.mxu0
    %v3539 = vadd.f32 0.0, %v3538
    %v3540 = vpop.f32.mrf.mxu0
    %3541 = vdwg.mxu0
    %3542 = vmatpush.bf16.msra.mxu0 %v1493
    %3543 = vmatpush.bf16.msra.mxu0 %v1485
    %3544 = vmatpush.bf16.msra.mxu0 %v1477
    %3545 = vmatpush.bf16.msra.mxu0 %v1469
    %3546 = vmatpush.bf16.msra.mxu0 %v1461
    %3547 = vmatpush.bf16.msra.mxu0 %v1453
    %3548 = vmatpush.bf16.msra.mxu0 %v1445
    %3549 = vmatpush.bf16.msra.mxu0 %v1437
    %3550 = vmatmul.bf16.gmra.mxu0 %v3398
    %v3551 = vpop.f32.mrf.mxu0
    %v3552 = vadd.f32 %v3539, %v3551
    %v3553 = vpop.f32.mrf.mxu0
    %3554 = vdwg.mxu0
    %3555 = vmatpush.bf16.msra.mxu0 %v1430
    %3556 = vmatpush.bf16.msra.mxu0 %v1422
    %3557 = vmatpush.bf16.msra.mxu0 %v1414
    %3558 = vmatpush.bf16.msra.mxu0 %v1406
    %3559 = vmatpush.bf16.msra.mxu0 %v1398
    %3560 = vmatpush.bf16.msra.mxu0 %v1390
    %3561 = vmatpush.bf16.msra.mxu0 %v1382
    %3562 = vmatpush.bf16.msra.mxu0 %v1374
    %3563 = vmatmul.bf16.gmra.mxu0 %v3397
    %v3564 = vpop.f32.mrf.mxu0
    %v3565 = vadd.f32 0.0, %v3564
    %v3566 = vpop.f32.mrf.mxu0
    %3567 = vdwg.mxu0
    %3568 = vmatpush.bf16.msra.mxu0 %v1494
    %3569 = vmatpush.bf16.msra.mxu0 %v1486
    %3570 = vmatpush.bf16.msra.mxu0 %v1478
    %3571 = vmatpush.bf16.msra.mxu0 %v1470
    %3572 = vmatpush.bf16.msra.mxu0 %v1462
    %3573 = vmatpush.bf16.msra.mxu0 %v1454
    %3574 = vmatpush.bf16.msra.mxu0 %v1446
    %3575 = vmatpush.bf16.msra.mxu0 %v1438
    %3576 = vmatmul.bf16.gmra.mxu0 %v3398
    %v3577 = vpop.f32.mrf.mxu0
    %v3578 = vadd.f32 %v3565, %v3577
    %v3579 = vpop.f32.mrf.mxu0
    %3580 = vdwg.mxu0
    %3581 = vmatpush.bf16.msra.mxu0 %v1431
    %3582 = vmatpush.bf16.msra.mxu0 %v1423
    %3583 = vmatpush.bf16.msra.mxu0 %v1415
    %3584 = vmatpush.bf16.msra.mxu0 %v1407
    %3585 = vmatpush.bf16.msra.mxu0 %v1399
    %3586 = vmatpush.bf16.msra.mxu0 %v1391
    %3587 = vmatpush.bf16.msra.mxu0 %v1383
    %3588 = vmatpush.bf16.msra.mxu0 %v1375
    %3589 = vmatmul.bf16.gmra.mxu0 %v3397
    %v3590 = vpop.f32.mrf.mxu0
    %v3591 = vadd.f32 0.0, %v3590
    %v3592 = vpop.f32.mrf.mxu0
    %3593 = vdwg.mxu0
    %3594 = vmatpush.bf16.msra.mxu0 %v1495
    %3595 = vmatpush.bf16.msra.mxu0 %v1487
    %3596 = vmatpush.bf16.msra.mxu0 %v1479
    %3597 = vmatpush.bf16.msra.mxu0 %v1471
    %3598 = vmatpush.bf16.msra.mxu0 %v1463
    %3599 = vmatpush.bf16.msra.mxu0 %v1455
    %3600 = vmatpush.bf16.msra.mxu0 %v1447
    %3601 = vmatpush.bf16.msra.mxu0 %v1439
    %3602 = vmatmul.bf16.gmra.mxu0 %v3398
    %v3603 = vpop.f32.mrf.mxu0
    %v3604 = vadd.f32 %v3591, %v3603
    %v3605 = vpop.f32.mrf.mxu0
    %3606 = vdwg.mxu0
    %v3607 = vadd.f32 %v3389, %v3422
    %v3608 = vadd.f32 %v3390, %v3448
    %v3609 = vadd.f32 %v3391, %v3474
    %v3610 = vadd.f32 %v3392, %v3500
    %v3611 = vadd.f32 %v3393, %v3526
    %v3612 = vadd.f32 %v3394, %v3552
    %v3613 = vadd.f32 %v3395, %v3578
    %v3614 = vadd.f32 %v3396, %v3604
    %v3615 = vxor.u32 %v3607, 2147483648
    %v3616 = vxor.u32 %v3608, 2147483648
    %v3617 = vxor.u32 %v3609, 2147483648
    %v3618 = vxor.u32 %v3610, 2147483648
    %v3619 = vxor.u32 %v3611, 2147483648
    %v3620 = vxor.u32 %v3612, 2147483648
    %v3621 = vmul.f32 %v3615, 1.442695
    %v3622 = vpow.pop %v3621
    %v3623 = vmul.f32 %v3616, 1.442695
    %v3624 = vpow.pop %v3623
    %v3625 = vmul.f32 %v3617, 1.442695
    %v3626 = vpow.pop %v3625
    %v3627 = vmul.f32 %v3618, 1.442695
    %v3628 = vpow.pop %v3627
    %v3629 = vmul.f32 %v3619, 1.442695
    %v3630 = vpow.pop %v3629
    %v3631 = vmul.f32 %v3620, 1.442695
    %v3632 = vpow.pop %v3631
    %v3633 = vadd.f32 %v3622, 1.0
    %v3634 = vadd.f32 %v3624, 1.0
    %v3635 = vadd.f32 %v3626, 1.0
    %v3636 = vadd.f32 %v3628, 1.0
    %v3637 = vadd.f32 %v3630, 1.0
    %v3638 = vadd.f32 %v3632, 1.0
    %v3639 = vrcp.pop %v3633
    %v3640 = vmul.f32 %v3633, %v3639
    %v3641 = vsub.f32 1.0, %v3640
    %v3642 = vmul.f32 %v3639, %v3641
    %v3643 = vadd.f32 %v3639, %v3642
    %vm3644 = vweird.f32 %v3633
    %vm3645 = vweird.f32 %v3639
    %vm3646 = vmor %vm3644, %vm3645
    %v3647 = vsel %vm3646, %v3639, %v3643
    %v3648 = vand.u32 2147483647, %v3633
    %vm3649 = vcmp.eq.f32.partialorder %v3648, 8.507059e+37
    %v3650 = vand.u32 %v3633, 2147483648
    %v3651 = vor.u32 1.1754944e-38, %v3650
    %v3652 = vsel %vm3649, %v3651, %v3647
    %v3653 = vmul.f32 1.0, %v3652
    %v3654 = vrcp.pop %v3634
    %v3655 = vmul.f32 %v3634, %v3654
    %v3656 = vsub.f32 1.0, %v3655
    %v3657 = vmul.f32 %v3654, %v3656
    %v3658 = vadd.f32 %v3654, %v3657
    %vm3659 = vweird.f32 %v3634
    %vm3660 = vweird.f32 %v3654
    %vm3661 = vmor %vm3659, %vm3660
    %v3662 = vsel %vm3661, %v3654, %v3658
    %v3663 = vand.u32 2147483647, %v3634
    %vm3664 = vcmp.eq.f32.partialorder %v3663, 8.507059e+37
    %v3665 = vand.u32 %v3634, 2147483648
    %v3666 = vor.u32 1.1754944e-38, %v3665
    %v3667 = vsel %vm3664, %v3666, %v3662
    %v3668 = vmul.f32 1.0, %v3667
    %v3669 = vrcp.pop %v3635
    %v3670 = vmul.f32 %v3635, %v3669
    %v3671 = vsub.f32 1.0, %v3670
    %v3672 = vmul.f32 %v3669, %v3671
    %v3673 = vadd.f32 %v3669, %v3672
    %vm3674 = vweird.f32 %v3635
    %vm3675 = vweird.f32 %v3669
    %vm3676 = vmor %vm3674, %vm3675
    %v3677 = vsel %vm3676, %v3669, %v3673
    %v3678 = vand.u32 2147483647, %v3635
    %vm3679 = vcmp.eq.f32.partialorder %v3678, 8.507059e+37
    %v3680 = vand.u32 %v3635, 2147483648
    %v3681 = vor.u32 1.1754944e-38, %v3680
    %v3682 = vsel %vm3679, %v3681, %v3677
    %v3683 = vmul.f32 1.0, %v3682
    %v3684 = vrcp.pop %v3636
    %v3685 = vmul.f32 %v3636, %v3684
    %v3686 = vsub.f32 1.0, %v3685
    %v3687 = vmul.f32 %v3684, %v3686
    %v3688 = vadd.f32 %v3684, %v3687
    %vm3689 = vweird.f32 %v3636
    %vm3690 = vweird.f32 %v3684
    %vm3691 = vmor %vm3689, %vm3690
    %v3692 = vsel %vm3691, %v3684, %v3688
    %v3693 = vand.u32 2147483647, %v3636
    %vm3694 = vcmp.eq.f32.partialorder %v3693, 8.507059e+37
    %v3695 = vand.u32 %v3636, 2147483648
    %v3696 = vor.u32 1.1754944e-38, %v3695
    %v3697 = vsel %vm3694, %v3696, %v3692
    %v3698 = vmul.f32 1.0, %v3697
    %v3699 = vrcp.pop %v3637
    %v3700 = vmul.f32 %v3637, %v3699
    %v3701 = vsub.f32 1.0, %v3700
    %v3702 = vmul.f32 %v3699, %v3701
    %v3703 = vadd.f32 %v3699, %v3702
    %vm3704 = vweird.f32 %v3637
    %vm3705 = vweird.f32 %v3699
    %vm3706 = vmor %vm3704, %vm3705
    %v3707 = vsel %vm3706, %v3699, %v3703
    %v3708 = vand.u32 2147483647, %v3637
    %vm3709 = vcmp.eq.f32.partialorder %v3708, 8.507059e+37
    %v3710 = vand.u32 %v3637, 2147483648
    %v3711 = vor.u32 1.1754944e-38, %v3710
    %v3712 = vsel %vm3709, %v3711, %v3707
    %v3713 = vmul.f32 1.0, %v3712
    %v3714 = vrcp.pop %v3638
    %v3715 = vmul.f32 %v3638, %v3714
    %v3716 = vsub.f32 1.0, %v3715
    %v3717 = vmul.f32 %v3714, %v3716
    %v3718 = vadd.f32 %v3714, %v3717
    %vm3719 = vweird.f32 %v3638
    %vm3720 = vweird.f32 %v3714
    %vm3721 = vmor %vm3719, %vm3720
    %v3722 = vsel %vm3721, %v3714, %v3718
    %v3723 = vand.u32 2147483647, %v3638
    %vm3724 = vcmp.eq.f32.partialorder %v3723, 8.507059e+37
    %v3725 = vand.u32 %v3638, 2147483648
    %v3726 = vor.u32 1.1754944e-38, %v3725
    %v3727 = vsel %vm3724, %v3726, %v3722
    %v3728 = vmul.f32 1.0, %v3727
    %v3729 = vtanh.pop %v3613
    %v3730 = vtanh.pop %v3614
    %v3731 = vmul.f32 %v3683, %v3380
    %v3732 = vmul.f32 %v3698, %v3381
    %v3733 = vmul.f32 %v3653, %v3729
    %v3734 = vmul.f32 %v3668, %v3730
    %v3735 = vadd.f32 %v3731, %v3733
    %v3736 = vadd.f32 %v3732, %v3734
    %v3737 = vtanh.pop %v3735
    %v3738 = vtanh.pop %v3736
    %v3739 = vmul.f32 %v3713, %v3737
    %v3740 = vmul.f32 %v3728, %v3738
    %s3741 = smul.u32 6, 8
    %s3742 = smul.addr %s3741, 8
    %s3743 = scalar_lea.vmem [#allocation2], %s3742
    %v3744 = vld [vmem:[%s3743] sm:$0xff]
    %v3745 = vld [vmem:[%s3743 + $0x8] sm:$0xff]
    %v3746 = vld [vmem:[%s3743 + $0x10] sm:$0xff]
    %v3747 = vld [vmem:[%s3743 + $0x18] sm:$0xff]
    %v3748 = vld [vmem:[%s3743 + $0x20] sm:$0xff]
    %v3749 = vld [vmem:[%s3743 + $0x28] sm:$0xff]
    %v3750 = vld [vmem:[%s3743 + $0x30] sm:$0xff]
    %v3751 = vld [vmem:[%s3743 + $0x38] sm:$0xff]
    %v3752 = vpack.c.bf16 %v3739, %v3739
    %v3753 = vpack.c.bf16 %v3740, %v3740
    %3754 = vmatpush.bf16.msra.mxu0 %v1424
    %3755 = vmatpush.bf16.msra.mxu0 %v1416
    %3756 = vmatpush.bf16.msra.mxu0 %v1408
    %3757 = vmatpush.bf16.msra.mxu0 %v1400
    %3758 = vmatpush.bf16.msra.mxu0 %v1392
    %3759 = vmatpush.bf16.msra.mxu0 %v1384
    %3760 = vmatpush.bf16.msra.mxu0 %v1376
    %3761 = vmatpush.bf16.msra.mxu0 %v1368
    %3762 = vmatmul.bf16.gmra.mxu0 %v3752
    %v3763 = vpop.f32.mrf.mxu0
    %v3764 = vadd.f32 0.0, %v3763
    %v3765 = vpop.f32.mrf.mxu0
    %3766 = vdwg.mxu0
    %3767 = vmatpush.bf16.msra.mxu0 %v1488
    %3768 = vmatpush.bf16.msra.mxu0 %v1480
    %3769 = vmatpush.bf16.msra.mxu0 %v1472
    %3770 = vmatpush.bf16.msra.mxu0 %v1464
    %3771 = vmatpush.bf16.msra.mxu0 %v1456
    %3772 = vmatpush.bf16.msra.mxu0 %v1448
    %3773 = vmatpush.bf16.msra.mxu0 %v1440
    %3774 = vmatpush.bf16.msra.mxu0 %v1432
    %3775 = vmatmul.bf16.gmra.mxu0 %v3753
    %v3776 = vpop.f32.mrf.mxu0
    %v3777 = vadd.f32 %v3764, %v3776
    %v3778 = vpop.f32.mrf.mxu0
    %3779 = vdwg.mxu0
    %3780 = vmatpush.bf16.msra.mxu0 %v1425
    %3781 = vmatpush.bf16.msra.mxu0 %v1417
    %3782 = vmatpush.bf16.msra.mxu0 %v1409
    %3783 = vmatpush.bf16.msra.mxu0 %v1401
    %3784 = vmatpush.bf16.msra.mxu0 %v1393
    %3785 = vmatpush.bf16.msra.mxu0 %v1385
    %3786 = vmatpush.bf16.msra.mxu0 %v1377
    %3787 = vmatpush.bf16.msra.mxu0 %v1369
    %3788 = vmatmul.bf16.gmra.mxu0 %v3752
    %v3789 = vpop.f32.mrf.mxu0
    %v3790 = vadd.f32 0.0, %v3789
    %v3791 = vpop.f32.mrf.mxu0
    %3792 = vdwg.mxu0
    %3793 = vmatpush.bf16.msra.mxu0 %v1489
    %3794 = vmatpush.bf16.msra.mxu0 %v1481
    %3795 = vmatpush.bf16.msra.mxu0 %v1473
    %3796 = vmatpush.bf16.msra.mxu0 %v1465
    %3797 = vmatpush.bf16.msra.mxu0 %v1457
    %3798 = vmatpush.bf16.msra.mxu0 %v1449
    %3799 = vmatpush.bf16.msra.mxu0 %v1441
    %3800 = vmatpush.bf16.msra.mxu0 %v1433
    %3801 = vmatmul.bf16.gmra.mxu0 %v3753
    %v3802 = vpop.f32.mrf.mxu0
    %v3803 = vadd.f32 %v3790, %v3802
    %v3804 = vpop.f32.mrf.mxu0
    %3805 = vdwg.mxu0
    %3806 = vmatpush.bf16.msra.mxu0 %v1426
    %3807 = vmatpush.bf16.msra.mxu0 %v1418
    %3808 = vmatpush.bf16.msra.mxu0 %v1410
    %3809 = vmatpush.bf16.msra.mxu0 %v1402
    %3810 = vmatpush.bf16.msra.mxu0 %v1394
    %3811 = vmatpush.bf16.msra.mxu0 %v1386
    %3812 = vmatpush.bf16.msra.mxu0 %v1378
    %3813 = vmatpush.bf16.msra.mxu0 %v1370
    %3814 = vmatmul.bf16.gmra.mxu0 %v3752
    %v3815 = vpop.f32.mrf.mxu0
    %v3816 = vadd.f32 0.0, %v3815
    %v3817 = vpop.f32.mrf.mxu0
    %3818 = vdwg.mxu0
    %3819 = vmatpush.bf16.msra.mxu0 %v1490
    %3820 = vmatpush.bf16.msra.mxu0 %v1482
    %3821 = vmatpush.bf16.msra.mxu0 %v1474
    %3822 = vmatpush.bf16.msra.mxu0 %v1466
    %3823 = vmatpush.bf16.msra.mxu0 %v1458
    %3824 = vmatpush.bf16.msra.mxu0 %v1450
    %3825 = vmatpush.bf16.msra.mxu0 %v1442
    %3826 = vmatpush.bf16.msra.mxu0 %v1434
    %3827 = vmatmul.bf16.gmra.mxu0 %v3753
    %v3828 = vpop.f32.mrf.mxu0
    %v3829 = vadd.f32 %v3816, %v3828
    %v3830 = vpop.f32.mrf.mxu0
    %3831 = vdwg.mxu0
    %3832 = vmatpush.bf16.msra.mxu0 %v1427
    %3833 = vmatpush.bf16.msra.mxu0 %v1419
    %3834 = vmatpush.bf16.msra.mxu0 %v1411
    %3835 = vmatpush.bf16.msra.mxu0 %v1403
    %3836 = vmatpush.bf16.msra.mxu0 %v1395
    %3837 = vmatpush.bf16.msra.mxu0 %v1387
    %3838 = vmatpush.bf16.msra.mxu0 %v1379
    %3839 = vmatpush.bf16.msra.mxu0 %v1371
    %3840 = vmatmul.bf16.gmra.mxu0 %v3752
    %v3841 = vpop.f32.mrf.mxu0
    %v3842 = vadd.f32 0.0, %v3841
    %v3843 = vpop.f32.mrf.mxu0
    %3844 = vdwg.mxu0
    %3845 = vmatpush.bf16.msra.mxu0 %v1491
    %3846 = vmatpush.bf16.msra.mxu0 %v1483
    %3847 = vmatpush.bf16.msra.mxu0 %v1475
    %3848 = vmatpush.bf16.msra.mxu0 %v1467
    %3849 = vmatpush.bf16.msra.mxu0 %v1459
    %3850 = vmatpush.bf16.msra.mxu0 %v1451
    %3851 = vmatpush.bf16.msra.mxu0 %v1443
    %3852 = vmatpush.bf16.msra.mxu0 %v1435
    %3853 = vmatmul.bf16.gmra.mxu0 %v3753
    %v3854 = vpop.f32.mrf.mxu0
    %v3855 = vadd.f32 %v3842, %v3854
    %v3856 = vpop.f32.mrf.mxu0
    %3857 = vdwg.mxu0
    %3858 = vmatpush.bf16.msra.mxu0 %v1428
    %3859 = vmatpush.bf16.msra.mxu0 %v1420
    %3860 = vmatpush.bf16.msra.mxu0 %v1412
    %3861 = vmatpush.bf16.msra.mxu0 %v1404
    %3862 = vmatpush.bf16.msra.mxu0 %v1396
    %3863 = vmatpush.bf16.msra.mxu0 %v1388
    %3864 = vmatpush.bf16.msra.mxu0 %v1380
    %3865 = vmatpush.bf16.msra.mxu0 %v1372
    %3866 = vmatmul.bf16.gmra.mxu0 %v3752
    %v3867 = vpop.f32.mrf.mxu0
    %v3868 = vadd.f32 0.0, %v3867
    %v3869 = vpop.f32.mrf.mxu0
    %3870 = vdwg.mxu0
    %3871 = vmatpush.bf16.msra.mxu0 %v1492
    %3872 = vmatpush.bf16.msra.mxu0 %v1484
    %3873 = vmatpush.bf16.msra.mxu0 %v1476
    %3874 = vmatpush.bf16.msra.mxu0 %v1468
    %3875 = vmatpush.bf16.msra.mxu0 %v1460
    %3876 = vmatpush.bf16.msra.mxu0 %v1452
    %3877 = vmatpush.bf16.msra.mxu0 %v1444
    %3878 = vmatpush.bf16.msra.mxu0 %v1436
    %3879 = vmatmul.bf16.gmra.mxu0 %v3753
    %v3880 = vpop.f32.mrf.mxu0
    %v3881 = vadd.f32 %v3868, %v3880
    %v3882 = vpop.f32.mrf.mxu0
    %3883 = vdwg.mxu0
    %3884 = vmatpush.bf16.msra.mxu0 %v1429
    %3885 = vmatpush.bf16.msra.mxu0 %v1421
    %3886 = vmatpush.bf16.msra.mxu0 %v1413
    %3887 = vmatpush.bf16.msra.mxu0 %v1405
    %3888 = vmatpush.bf16.msra.mxu0 %v1397
    %3889 = vmatpush.bf16.msra.mxu0 %v1389
    %3890 = vmatpush.bf16.msra.mxu0 %v1381
    %3891 = vmatpush.bf16.msra.mxu0 %v1373
    %3892 = vmatmul.bf16.gmra.mxu0 %v3752
    %v3893 = vpop.f32.mrf.mxu0
    %v3894 = vadd.f32 0.0, %v3893
    %v3895 = vpop.f32.mrf.mxu0
    %3896 = vdwg.mxu0
    %3897 = vmatpush.bf16.msra.mxu0 %v1493
    %3898 = vmatpush.bf16.msra.mxu0 %v1485
    %3899 = vmatpush.bf16.msra.mxu0 %v1477
    %3900 = vmatpush.bf16.msra.mxu0 %v1469
    %3901 = vmatpush.bf16.msra.mxu0 %v1461
    %3902 = vmatpush.bf16.msra.mxu0 %v1453
    %3903 = vmatpush.bf16.msra.mxu0 %v1445
    %3904 = vmatpush.bf16.msra.mxu0 %v1437
    %3905 = vmatmul.bf16.gmra.mxu0 %v3753
    %v3906 = vpop.f32.mrf.mxu0
    %v3907 = vadd.f32 %v3894, %v3906
    %v3908 = vpop.f32.mrf.mxu0
    %3909 = vdwg.mxu0
    %3910 = vmatpush.bf16.msra.mxu0 %v1430
    %3911 = vmatpush.bf16.msra.mxu0 %v1422
    %3912 = vmatpush.bf16.msra.mxu0 %v1414
    %3913 = vmatpush.bf16.msra.mxu0 %v1406
    %3914 = vmatpush.bf16.msra.mxu0 %v1398
    %3915 = vmatpush.bf16.msra.mxu0 %v1390
    %3916 = vmatpush.bf16.msra.mxu0 %v1382
    %3917 = vmatpush.bf16.msra.mxu0 %v1374
    %3918 = vmatmul.bf16.gmra.mxu0 %v3752
    %v3919 = vpop.f32.mrf.mxu0
    %v3920 = vadd.f32 0.0, %v3919
    %v3921 = vpop.f32.mrf.mxu0
    %3922 = vdwg.mxu0
    %3923 = vmatpush.bf16.msra.mxu0 %v1494
    %3924 = vmatpush.bf16.msra.mxu0 %v1486
    %3925 = vmatpush.bf16.msra.mxu0 %v1478
    %3926 = vmatpush.bf16.msra.mxu0 %v1470
    %3927 = vmatpush.bf16.msra.mxu0 %v1462
    %3928 = vmatpush.bf16.msra.mxu0 %v1454
    %3929 = vmatpush.bf16.msra.mxu0 %v1446
    %3930 = vmatpush.bf16.msra.mxu0 %v1438
    %3931 = vmatmul.bf16.gmra.mxu0 %v3753
    %v3932 = vpop.f32.mrf.mxu0
    %v3933 = vadd.f32 %v3920, %v3932
    %v3934 = vpop.f32.mrf.mxu0
    %3935 = vdwg.mxu0
    %3936 = vmatpush.bf16.msra.mxu0 %v1431
    %3937 = vmatpush.bf16.msra.mxu0 %v1423
    %3938 = vmatpush.bf16.msra.mxu0 %v1415
    %3939 = vmatpush.bf16.msra.mxu0 %v1407
    %3940 = vmatpush.bf16.msra.mxu0 %v1399
    %3941 = vmatpush.bf16.msra.mxu0 %v1391
    %3942 = vmatpush.bf16.msra.mxu0 %v1383
    %3943 = vmatpush.bf16.msra.mxu0 %v1375
    %3944 = vmatmul.bf16.gmra.mxu0 %v3752
    %v3945 = vpop.f32.mrf.mxu0
    %v3946 = vadd.f32 0.0, %v3945
    %v3947 = vpop.f32.mrf.mxu0
    %3948 = vdwg.mxu0
    %3949 = vmatpush.bf16.msra.mxu0 %v1495
    %3950 = vmatpush.bf16.msra.mxu0 %v1487
    %3951 = vmatpush.bf16.msra.mxu0 %v1479
    %3952 = vmatpush.bf16.msra.mxu0 %v1471
    %3953 = vmatpush.bf16.msra.mxu0 %v1463
    %3954 = vmatpush.bf16.msra.mxu0 %v1455
    %3955 = vmatpush.bf16.msra.mxu0 %v1447
    %3956 = vmatpush.bf16.msra.mxu0 %v1439
    %3957 = vmatmul.bf16.gmra.mxu0 %v3753
    %v3958 = vpop.f32.mrf.mxu0
    %v3959 = vadd.f32 %v3946, %v3958
    %v3960 = vpop.f32.mrf.mxu0
    %3961 = vdwg.mxu0
    %v3962 = vadd.f32 %v3744, %v3777
    %v3963 = vadd.f32 %v3745, %v3803
    %v3964 = vadd.f32 %v3746, %v3829
    %v3965 = vadd.f32 %v3747, %v3855
    %v3966 = vadd.f32 %v3748, %v3881
    %v3967 = vadd.f32 %v3749, %v3907
    %v3968 = vadd.f32 %v3750, %v3933
    %v3969 = vadd.f32 %v3751, %v3959
    %v3970 = vxor.u32 %v3962, 2147483648
    %v3971 = vxor.u32 %v3963, 2147483648
    %v3972 = vxor.u32 %v3964, 2147483648
    %v3973 = vxor.u32 %v3965, 2147483648
    %v3974 = vxor.u32 %v3966, 2147483648
    %v3975 = vxor.u32 %v3967, 2147483648
    %v3976 = vmul.f32 %v3970, 1.442695
    %v3977 = vpow.pop %v3976
    %v3978 = vmul.f32 %v3971, 1.442695
    %v3979 = vpow.pop %v3978
    %v3980 = vmul.f32 %v3972, 1.442695
    %v3981 = vpow.pop %v3980
    %v3982 = vmul.f32 %v3973, 1.442695
    %v3983 = vpow.pop %v3982
    %v3984 = vmul.f32 %v3974, 1.442695
    %v3985 = vpow.pop %v3984
    %v3986 = vmul.f32 %v3975, 1.442695
    %v3987 = vpow.pop %v3986
    %v3988 = vadd.f32 %v3977, 1.0
    %v3989 = vadd.f32 %v3979, 1.0
    %v3990 = vadd.f32 %v3981, 1.0
    %v3991 = vadd.f32 %v3983, 1.0
    %v3992 = vadd.f32 %v3985, 1.0
    %v3993 = vadd.f32 %v3987, 1.0
    %v3994 = vrcp.pop %v3988
    %v3995 = vmul.f32 %v3988, %v3994
    %v3996 = vsub.f32 1.0, %v3995
    %v3997 = vmul.f32 %v3994, %v3996
    %v3998 = vadd.f32 %v3994, %v3997
    %vm3999 = vweird.f32 %v3988
    %vm4000 = vweird.f32 %v3994
    %vm4001 = vmor %vm3999, %vm4000
    %v4002 = vsel %vm4001, %v3994, %v3998
    %v4003 = vand.u32 2147483647, %v3988
    %vm4004 = vcmp.eq.f32.partialorder %v4003, 8.507059e+37
    %v4005 = vand.u32 %v3988, 2147483648
    %v4006 = vor.u32 1.1754944e-38, %v4005
    %v4007 = vsel %vm4004, %v4006, %v4002
    %v4008 = vmul.f32 1.0, %v4007
    %v4009 = vrcp.pop %v3989
    %v4010 = vmul.f32 %v3989, %v4009
    %v4011 = vsub.f32 1.0, %v4010
    %v4012 = vmul.f32 %v4009, %v4011
    %v4013 = vadd.f32 %v4009, %v4012
    %vm4014 = vweird.f32 %v3989
    %vm4015 = vweird.f32 %v4009
    %vm4016 = vmor %vm4014, %vm4015
    %v4017 = vsel %vm4016, %v4009, %v4013
    %v4018 = vand.u32 2147483647, %v3989
    %vm4019 = vcmp.eq.f32.partialorder %v4018, 8.507059e+37
    %v4020 = vand.u32 %v3989, 2147483648
    %v4021 = vor.u32 1.1754944e-38, %v4020
    %v4022 = vsel %vm4019, %v4021, %v4017
    %v4023 = vmul.f32 1.0, %v4022
    %v4024 = vrcp.pop %v3990
    %v4025 = vmul.f32 %v3990, %v4024
    %v4026 = vsub.f32 1.0, %v4025
    %v4027 = vmul.f32 %v4024, %v4026
    %v4028 = vadd.f32 %v4024, %v4027
    %vm4029 = vweird.f32 %v3990
    %vm4030 = vweird.f32 %v4024
    %vm4031 = vmor %vm4029, %vm4030
    %v4032 = vsel %vm4031, %v4024, %v4028
    %v4033 = vand.u32 2147483647, %v3990
    %vm4034 = vcmp.eq.f32.partialorder %v4033, 8.507059e+37
    %v4035 = vand.u32 %v3990, 2147483648
    %v4036 = vor.u32 1.1754944e-38, %v4035
    %v4037 = vsel %vm4034, %v4036, %v4032
    %v4038 = vmul.f32 1.0, %v4037
    %v4039 = vrcp.pop %v3991
    %v4040 = vmul.f32 %v3991, %v4039
    %v4041 = vsub.f32 1.0, %v4040
    %v4042 = vmul.f32 %v4039, %v4041
    %v4043 = vadd.f32 %v4039, %v4042
    %vm4044 = vweird.f32 %v3991
    %vm4045 = vweird.f32 %v4039
    %vm4046 = vmor %vm4044, %vm4045
    %v4047 = vsel %vm4046, %v4039, %v4043
    %v4048 = vand.u32 2147483647, %v3991
    %vm4049 = vcmp.eq.f32.partialorder %v4048, 8.507059e+37
    %v4050 = vand.u32 %v3991, 2147483648
    %v4051 = vor.u32 1.1754944e-38, %v4050
    %v4052 = vsel %vm4049, %v4051, %v4047
    %v4053 = vmul.f32 1.0, %v4052
    %v4054 = vrcp.pop %v3992
    %v4055 = vmul.f32 %v3992, %v4054
    %v4056 = vsub.f32 1.0, %v4055
    %v4057 = vmul.f32 %v4054, %v4056
    %v4058 = vadd.f32 %v4054, %v4057
    %vm4059 = vweird.f32 %v3992
    %vm4060 = vweird.f32 %v4054
    %vm4061 = vmor %vm4059, %vm4060
    %v4062 = vsel %vm4061, %v4054, %v4058
    %v4063 = vand.u32 2147483647, %v3992
    %vm4064 = vcmp.eq.f32.partialorder %v4063, 8.507059e+37
    %v4065 = vand.u32 %v3992, 2147483648
    %v4066 = vor.u32 1.1754944e-38, %v4065
    %v4067 = vsel %vm4064, %v4066, %v4062
    %v4068 = vmul.f32 1.0, %v4067
    %v4069 = vrcp.pop %v3993
    %v4070 = vmul.f32 %v3993, %v4069
    %v4071 = vsub.f32 1.0, %v4070
    %v4072 = vmul.f32 %v4069, %v4071
    %v4073 = vadd.f32 %v4069, %v4072
    %vm4074 = vweird.f32 %v3993
    %vm4075 = vweird.f32 %v4069
    %vm4076 = vmor %vm4074, %vm4075
    %v4077 = vsel %vm4076, %v4069, %v4073
    %v4078 = vand.u32 2147483647, %v3993
    %vm4079 = vcmp.eq.f32.partialorder %v4078, 8.507059e+37
    %v4080 = vand.u32 %v3993, 2147483648
    %v4081 = vor.u32 1.1754944e-38, %v4080
    %v4082 = vsel %vm4079, %v4081, %v4077
    %v4083 = vmul.f32 1.0, %v4082
    %v4084 = vtanh.pop %v3968
    %v4085 = vtanh.pop %v3969
    %v4086 = vmul.f32 %v4038, %v3735
    %v4087 = vmul.f32 %v4053, %v3736
    %v4088 = vmul.f32 %v4008, %v4084
    %v4089 = vmul.f32 %v4023, %v4085
    %v4090 = vadd.f32 %v4086, %v4088
    %v4091 = vadd.f32 %v4087, %v4089
    %v4092 = vtanh.pop %v4090
    %v4093 = vtanh.pop %v4091
    %v4094 = vmul.f32 %v4068, %v4092
    %v4095 = vmul.f32 %v4083, %v4093
    %s4096 = smul.u32 7, 8
    %s4097 = smul.addr %s4096, 8
    %s4098 = scalar_lea.vmem [#allocation2], %s4097
    %v4099 = vld [vmem:[%s4098] sm:$0xff]
    %v4100 = vld [vmem:[%s4098 + $0x8] sm:$0xff]
    %v4101 = vld [vmem:[%s4098 + $0x10] sm:$0xff]
    %v4102 = vld [vmem:[%s4098 + $0x18] sm:$0xff]
    %v4103 = vld [vmem:[%s4098 + $0x20] sm:$0xff]
    %v4104 = vld [vmem:[%s4098 + $0x28] sm:$0xff]
    %v4105 = vld [vmem:[%s4098 + $0x30] sm:$0xff]
    %v4106 = vld [vmem:[%s4098 + $0x38] sm:$0xff]
    %v4107 = vpack.c.bf16 %v4094, %v4094
    %v4108 = vpack.c.bf16 %v4095, %v4095
    %4109 = vmatpush.bf16.msra.mxu0 %v1424
    %4110 = vmatpush.bf16.msra.mxu0 %v1416
    %4111 = vmatpush.bf16.msra.mxu0 %v1408
    %4112 = vmatpush.bf16.msra.mxu0 %v1400
    %4113 = vmatpush.bf16.msra.mxu0 %v1392
    %4114 = vmatpush.bf16.msra.mxu0 %v1384
    %4115 = vmatpush.bf16.msra.mxu0 %v1376
    %4116 = vmatpush.bf16.msra.mxu0 %v1368
    %4117 = vmatmul.bf16.gmra.mxu0 %v4107
    %v4118 = vpop.f32.mrf.mxu0
    %v4119 = vadd.f32 0.0, %v4118
    %v4120 = vpop.f32.mrf.mxu0
    %4121 = vdwg.mxu0
    %4122 = vmatpush.bf16.msra.mxu0 %v1488
    %4123 = vmatpush.bf16.msra.mxu0 %v1480
    %4124 = vmatpush.bf16.msra.mxu0 %v1472
    %4125 = vmatpush.bf16.msra.mxu0 %v1464
    %4126 = vmatpush.bf16.msra.mxu0 %v1456
    %4127 = vmatpush.bf16.msra.mxu0 %v1448
    %4128 = vmatpush.bf16.msra.mxu0 %v1440
    %4129 = vmatpush.bf16.msra.mxu0 %v1432
    %4130 = vmatmul.bf16.gmra.mxu0 %v4108
    %v4131 = vpop.f32.mrf.mxu0
    %v4132 = vadd.f32 %v4119, %v4131
    %v4133 = vpop.f32.mrf.mxu0
    %4134 = vdwg.mxu0
    %4135 = vmatpush.bf16.msra.mxu0 %v1425
    %4136 = vmatpush.bf16.msra.mxu0 %v1417
    %4137 = vmatpush.bf16.msra.mxu0 %v1409
    %4138 = vmatpush.bf16.msra.mxu0 %v1401
    %4139 = vmatpush.bf16.msra.mxu0 %v1393
    %4140 = vmatpush.bf16.msra.mxu0 %v1385
    %4141 = vmatpush.bf16.msra.mxu0 %v1377
    %4142 = vmatpush.bf16.msra.mxu0 %v1369
    %4143 = vmatmul.bf16.gmra.mxu0 %v4107
    %v4144 = vpop.f32.mrf.mxu0
    %v4145 = vadd.f32 0.0, %v4144
    %v4146 = vpop.f32.mrf.mxu0
    %4147 = vdwg.mxu0
    %4148 = vmatpush.bf16.msra.mxu0 %v1489
    %4149 = vmatpush.bf16.msra.mxu0 %v1481
    %4150 = vmatpush.bf16.msra.mxu0 %v1473
    %4151 = vmatpush.bf16.msra.mxu0 %v1465
    %4152 = vmatpush.bf16.msra.mxu0 %v1457
    %4153 = vmatpush.bf16.msra.mxu0 %v1449
    %4154 = vmatpush.bf16.msra.mxu0 %v1441
    %4155 = vmatpush.bf16.msra.mxu0 %v1433
    %4156 = vmatmul.bf16.gmra.mxu0 %v4108
    %v4157 = vpop.f32.mrf.mxu0
    %v4158 = vadd.f32 %v4145, %v4157
    %v4159 = vpop.f32.mrf.mxu0
    %4160 = vdwg.mxu0
    %4161 = vmatpush.bf16.msra.mxu0 %v1426
    %4162 = vmatpush.bf16.msra.mxu0 %v1418
    %4163 = vmatpush.bf16.msra.mxu0 %v1410
    %4164 = vmatpush.bf16.msra.mxu0 %v1402
    %4165 = vmatpush.bf16.msra.mxu0 %v1394
    %4166 = vmatpush.bf16.msra.mxu0 %v1386
    %4167 = vmatpush.bf16.msra.mxu0 %v1378
    %4168 = vmatpush.bf16.msra.mxu0 %v1370
    %4169 = vmatmul.bf16.gmra.mxu0 %v4107
    %v4170 = vpop.f32.mrf.mxu0
    %v4171 = vadd.f32 0.0, %v4170
    %v4172 = vpop.f32.mrf.mxu0
    %4173 = vdwg.mxu0
    %4174 = vmatpush.bf16.msra.mxu0 %v1490
    %4175 = vmatpush.bf16.msra.mxu0 %v1482
    %4176 = vmatpush.bf16.msra.mxu0 %v1474
    %4177 = vmatpush.bf16.msra.mxu0 %v1466
    %4178 = vmatpush.bf16.msra.mxu0 %v1458
    %4179 = vmatpush.bf16.msra.mxu0 %v1450
    %4180 = vmatpush.bf16.msra.mxu0 %v1442
    %4181 = vmatpush.bf16.msra.mxu0 %v1434
    %4182 = vmatmul.bf16.gmra.mxu0 %v4108
    %v4183 = vpop.f32.mrf.mxu0
    %v4184 = vadd.f32 %v4171, %v4183
    %v4185 = vpop.f32.mrf.mxu0
    %4186 = vdwg.mxu0
    %4187 = vmatpush.bf16.msra.mxu0 %v1427
    %4188 = vmatpush.bf16.msra.mxu0 %v1419
    %4189 = vmatpush.bf16.msra.mxu0 %v1411
    %4190 = vmatpush.bf16.msra.mxu0 %v1403
    %4191 = vmatpush.bf16.msra.mxu0 %v1395
    %4192 = vmatpush.bf16.msra.mxu0 %v1387
    %4193 = vmatpush.bf16.msra.mxu0 %v1379
    %4194 = vmatpush.bf16.msra.mxu0 %v1371
    %4195 = vmatmul.bf16.gmra.mxu0 %v4107
    %v4196 = vpop.f32.mrf.mxu0
    %v4197 = vadd.f32 0.0, %v4196
    %v4198 = vpop.f32.mrf.mxu0
    %4199 = vdwg.mxu0
    %4200 = vmatpush.bf16.msra.mxu0 %v1491
    %4201 = vmatpush.bf16.msra.mxu0 %v1483
    %4202 = vmatpush.bf16.msra.mxu0 %v1475
    %4203 = vmatpush.bf16.msra.mxu0 %v1467
    %4204 = vmatpush.bf16.msra.mxu0 %v1459
    %4205 = vmatpush.bf16.msra.mxu0 %v1451
    %4206 = vmatpush.bf16.msra.mxu0 %v1443
    %4207 = vmatpush.bf16.msra.mxu0 %v1435
    %4208 = vmatmul.bf16.gmra.mxu0 %v4108
    %v4209 = vpop.f32.mrf.mxu0
    %v4210 = vadd.f32 %v4197, %v4209
    %v4211 = vpop.f32.mrf.mxu0
    %4212 = vdwg.mxu0
    %4213 = vmatpush.bf16.msra.mxu0 %v1428
    %4214 = vmatpush.bf16.msra.mxu0 %v1420
    %4215 = vmatpush.bf16.msra.mxu0 %v1412
    %4216 = vmatpush.bf16.msra.mxu0 %v1404
    %4217 = vmatpush.bf16.msra.mxu0 %v1396
    %4218 = vmatpush.bf16.msra.mxu0 %v1388
    %4219 = vmatpush.bf16.msra.mxu0 %v1380
    %4220 = vmatpush.bf16.msra.mxu0 %v1372
    %4221 = vmatmul.bf16.gmra.mxu0 %v4107
    %v4222 = vpop.f32.mrf.mxu0
    %v4223 = vadd.f32 0.0, %v4222
    %v4224 = vpop.f32.mrf.mxu0
    %4225 = vdwg.mxu0
    %4226 = vmatpush.bf16.msra.mxu0 %v1492
    %4227 = vmatpush.bf16.msra.mxu0 %v1484
    %4228 = vmatpush.bf16.msra.mxu0 %v1476
    %4229 = vmatpush.bf16.msra.mxu0 %v1468
    %4230 = vmatpush.bf16.msra.mxu0 %v1460
    %4231 = vmatpush.bf16.msra.mxu0 %v1452
    %4232 = vmatpush.bf16.msra.mxu0 %v1444
    %4233 = vmatpush.bf16.msra.mxu0 %v1436
    %4234 = vmatmul.bf16.gmra.mxu0 %v4108
    %v4235 = vpop.f32.mrf.mxu0
    %v4236 = vadd.f32 %v4223, %v4235
    %v4237 = vpop.f32.mrf.mxu0
    %4238 = vdwg.mxu0
    %4239 = vmatpush.bf16.msra.mxu0 %v1429
    %4240 = vmatpush.bf16.msra.mxu0 %v1421
    %4241 = vmatpush.bf16.msra.mxu0 %v1413
    %4242 = vmatpush.bf16.msra.mxu0 %v1405
    %4243 = vmatpush.bf16.msra.mxu0 %v1397
    %4244 = vmatpush.bf16.msra.mxu0 %v1389
    %4245 = vmatpush.bf16.msra.mxu0 %v1381
    %4246 = vmatpush.bf16.msra.mxu0 %v1373
    %4247 = vmatmul.bf16.gmra.mxu0 %v4107
    %v4248 = vpop.f32.mrf.mxu0
    %v4249 = vadd.f32 0.0, %v4248
    %v4250 = vpop.f32.mrf.mxu0
    %4251 = vdwg.mxu0
    %4252 = vmatpush.bf16.msra.mxu0 %v1493
    %4253 = vmatpush.bf16.msra.mxu0 %v1485
    %4254 = vmatpush.bf16.msra.mxu0 %v1477
    %4255 = vmatpush.bf16.msra.mxu0 %v1469
    %4256 = vmatpush.bf16.msra.mxu0 %v1461
    %4257 = vmatpush.bf16.msra.mxu0 %v1453
    %4258 = vmatpush.bf16.msra.mxu0 %v1445
    %4259 = vmatpush.bf16.msra.mxu0 %v1437
    %4260 = vmatmul.bf16.gmra.mxu0 %v4108
    %v4261 = vpop.f32.mrf.mxu0
    %v4262 = vadd.f32 %v4249, %v4261
    %v4263 = vpop.f32.mrf.mxu0
    %4264 = vdwg.mxu0
    %4265 = vmatpush.bf16.msra.mxu0 %v1430
    %4266 = vmatpush.bf16.msra.mxu0 %v1422
    %4267 = vmatpush.bf16.msra.mxu0 %v1414
    %4268 = vmatpush.bf16.msra.mxu0 %v1406
    %4269 = vmatpush.bf16.msra.mxu0 %v1398
    %4270 = vmatpush.bf16.msra.mxu0 %v1390
    %4271 = vmatpush.bf16.msra.mxu0 %v1382
    %4272 = vmatpush.bf16.msra.mxu0 %v1374
    %4273 = vmatmul.bf16.gmra.mxu0 %v4107
    %v4274 = vpop.f32.mrf.mxu0
    %v4275 = vadd.f32 0.0, %v4274
    %v4276 = vpop.f32.mrf.mxu0
    %4277 = vdwg.mxu0
    %4278 = vmatpush.bf16.msra.mxu0 %v1494
    %4279 = vmatpush.bf16.msra.mxu0 %v1486
    %4280 = vmatpush.bf16.msra.mxu0 %v1478
    %4281 = vmatpush.bf16.msra.mxu0 %v1470
    %4282 = vmatpush.bf16.msra.mxu0 %v1462
    %4283 = vmatpush.bf16.msra.mxu0 %v1454
    %4284 = vmatpush.bf16.msra.mxu0 %v1446
    %4285 = vmatpush.bf16.msra.mxu0 %v1438
    %4286 = vmatmul.bf16.gmra.mxu0 %v4108
    %v4287 = vpop.f32.mrf.mxu0
    %v4288 = vadd.f32 %v4275, %v4287
    %v4289 = vpop.f32.mrf.mxu0
    %4290 = vdwg.mxu0
    %4291 = vmatpush.bf16.msra.mxu0 %v1431
    %4292 = vmatpush.bf16.msra.mxu0 %v1423
    %4293 = vmatpush.bf16.msra.mxu0 %v1415
    %4294 = vmatpush.bf16.msra.mxu0 %v1407
    %4295 = vmatpush.bf16.msra.mxu0 %v1399
    %4296 = vmatpush.bf16.msra.mxu0 %v1391
    %4297 = vmatpush.bf16.msra.mxu0 %v1383
    %4298 = vmatpush.bf16.msra.mxu0 %v1375
    %4299 = vmatmul.bf16.gmra.mxu0 %v4107
    %v4300 = vpop.f32.mrf.mxu0
    %v4301 = vadd.f32 0.0, %v4300
    %v4302 = vpop.f32.mrf.mxu0
    %4303 = vdwg.mxu0
    %4304 = vmatpush.bf16.msra.mxu0 %v1495
    %4305 = vmatpush.bf16.msra.mxu0 %v1487
    %4306 = vmatpush.bf16.msra.mxu0 %v1479
    %4307 = vmatpush.bf16.msra.mxu0 %v1471
    %4308 = vmatpush.bf16.msra.mxu0 %v1463
    %4309 = vmatpush.bf16.msra.mxu0 %v1455
    %4310 = vmatpush.bf16.msra.mxu0 %v1447
    %4311 = vmatpush.bf16.msra.mxu0 %v1439
    %4312 = vmatmul.bf16.gmra.mxu0 %v4108
    %v4313 = vpop.f32.mrf.mxu0
    %v4314 = vadd.f32 %v4301, %v4313
    %v4315 = vpop.f32.mrf.mxu0
    %4316 = vdwg.mxu0
    %v4317 = vadd.f32 %v4099, %v4132
    %v4318 = vadd.f32 %v4100, %v4158
    %v4319 = vadd.f32 %v4101, %v4184
    %v4320 = vadd.f32 %v4102, %v4210
    %v4321 = vadd.f32 %v4103, %v4236
    %v4322 = vadd.f32 %v4104, %v4262
    %v4323 = vadd.f32 %v4105, %v4288
    %v4324 = vadd.f32 %v4106, %v4314
    %v4325 = vxor.u32 %v4317, 2147483648
    %v4326 = vxor.u32 %v4318, 2147483648
    %v4327 = vxor.u32 %v4319, 2147483648
    %v4328 = vxor.u32 %v4320, 2147483648
    %v4329 = vxor.u32 %v4321, 2147483648
    %v4330 = vxor.u32 %v4322, 2147483648
    %v4331 = vmul.f32 %v4325, 1.442695
    %v4332 = vpow.pop %v4331
    %v4333 = vmul.f32 %v4326, 1.442695
    %v4334 = vpow.pop %v4333
    %v4335 = vmul.f32 %v4327, 1.442695
    %v4336 = vpow.pop %v4335
    %v4337 = vmul.f32 %v4328, 1.442695
    %v4338 = vpow.pop %v4337
    %v4339 = vmul.f32 %v4329, 1.442695
    %v4340 = vpow.pop %v4339
    %v4341 = vmul.f32 %v4330, 1.442695
    %v4342 = vpow.pop %v4341
    %v4343 = vadd.f32 %v4332, 1.0
    %v4344 = vadd.f32 %v4334, 1.0
    %v4345 = vadd.f32 %v4336, 1.0
    %v4346 = vadd.f32 %v4338, 1.0
    %v4347 = vadd.f32 %v4340, 1.0
    %v4348 = vadd.f32 %v4342, 1.0
    %v4349 = vrcp.pop %v4343
    %v4350 = vmul.f32 %v4343, %v4349
    %v4351 = vsub.f32 1.0, %v4350
    %v4352 = vmul.f32 %v4349, %v4351
    %v4353 = vadd.f32 %v4349, %v4352
    %vm4354 = vweird.f32 %v4343
    %vm4355 = vweird.f32 %v4349
    %vm4356 = vmor %vm4354, %vm4355
    %v4357 = vsel %vm4356, %v4349, %v4353
    %v4358 = vand.u32 2147483647, %v4343
    %vm4359 = vcmp.eq.f32.partialorder %v4358, 8.507059e+37
    %v4360 = vand.u32 %v4343, 2147483648
    %v4361 = vor.u32 1.1754944e-38, %v4360
    %v4362 = vsel %vm4359, %v4361, %v4357
    %v4363 = vmul.f32 1.0, %v4362
    %v4364 = vrcp.pop %v4344
    %v4365 = vmul.f32 %v4344, %v4364
    %v4366 = vsub.f32 1.0, %v4365
    %v4367 = vmul.f32 %v4364, %v4366
    %v4368 = vadd.f32 %v4364, %v4367
    %vm4369 = vweird.f32 %v4344
    %vm4370 = vweird.f32 %v4364
    %vm4371 = vmor %vm4369, %vm4370
    %v4372 = vsel %vm4371, %v4364, %v4368
    %v4373 = vand.u32 2147483647, %v4344
    %vm4374 = vcmp.eq.f32.partialorder %v4373, 8.507059e+37
    %v4375 = vand.u32 %v4344, 2147483648
    %v4376 = vor.u32 1.1754944e-38, %v4375
    %v4377 = vsel %vm4374, %v4376, %v4372
    %v4378 = vmul.f32 1.0, %v4377
    %v4379 = vrcp.pop %v4345
    %v4380 = vmul.f32 %v4345, %v4379
    %v4381 = vsub.f32 1.0, %v4380
    %v4382 = vmul.f32 %v4379, %v4381
    %v4383 = vadd.f32 %v4379, %v4382
    %vm4384 = vweird.f32 %v4345
    %vm4385 = vweird.f32 %v4379
    %vm4386 = vmor %vm4384, %vm4385
    %v4387 = vsel %vm4386, %v4379, %v4383
    %v4388 = vand.u32 2147483647, %v4345
    %vm4389 = vcmp.eq.f32.partialorder %v4388, 8.507059e+37
    %v4390 = vand.u32 %v4345, 2147483648
    %v4391 = vor.u32 1.1754944e-38, %v4390
    %v4392 = vsel %vm4389, %v4391, %v4387
    %v4393 = vmul.f32 1.0, %v4392
    %v4394 = vrcp.pop %v4346
    %v4395 = vmul.f32 %v4346, %v4394
    %v4396 = vsub.f32 1.0, %v4395
    %v4397 = vmul.f32 %v4394, %v4396
    %v4398 = vadd.f32 %v4394, %v4397
    %vm4399 = vweird.f32 %v4346
    %vm4400 = vweird.f32 %v4394
    %vm4401 = vmor %vm4399, %vm4400
    %v4402 = vsel %vm4401, %v4394, %v4398
    %v4403 = vand.u32 2147483647, %v4346
    %vm4404 = vcmp.eq.f32.partialorder %v4403, 8.507059e+37
    %v4405 = vand.u32 %v4346, 2147483648
    %v4406 = vor.u32 1.1754944e-38, %v4405
    %v4407 = vsel %vm4404, %v4406, %v4402
    %v4408 = vmul.f32 1.0, %v4407
    %v4409 = vrcp.pop %v4347
    %v4410 = vmul.f32 %v4347, %v4409
    %v4411 = vsub.f32 1.0, %v4410
    %v4412 = vmul.f32 %v4409, %v4411
    %v4413 = vadd.f32 %v4409, %v4412
    %vm4414 = vweird.f32 %v4347
    %vm4415 = vweird.f32 %v4409
    %vm4416 = vmor %vm4414, %vm4415
    %v4417 = vsel %vm4416, %v4409, %v4413
    %v4418 = vand.u32 2147483647, %v4347
    %vm4419 = vcmp.eq.f32.partialorder %v4418, 8.507059e+37
    %v4420 = vand.u32 %v4347, 2147483648
    %v4421 = vor.u32 1.1754944e-38, %v4420
    %v4422 = vsel %vm4419, %v4421, %v4417
    %v4423 = vmul.f32 1.0, %v4422
    %v4424 = vrcp.pop %v4348
    %v4425 = vmul.f32 %v4348, %v4424
    %v4426 = vsub.f32 1.0, %v4425
    %v4427 = vmul.f32 %v4424, %v4426
    %v4428 = vadd.f32 %v4424, %v4427
    %vm4429 = vweird.f32 %v4348
    %vm4430 = vweird.f32 %v4424
    %vm4431 = vmor %vm4429, %vm4430
    %v4432 = vsel %vm4431, %v4424, %v4428
    %v4433 = vand.u32 2147483647, %v4348
    %vm4434 = vcmp.eq.f32.partialorder %v4433, 8.507059e+37
    %v4435 = vand.u32 %v4348, 2147483648
    %v4436 = vor.u32 1.1754944e-38, %v4435
    %v4437 = vsel %vm4434, %v4436, %v4432
    %v4438 = vmul.f32 1.0, %v4437
    %v4439 = vtanh.pop %v4323
    %v4440 = vtanh.pop %v4324
    %v4441 = vmul.f32 %v4393, %v4090
    %v4442 = vmul.f32 %v4408, %v4091
    %v4443 = vmul.f32 %v4363, %v4439
    %v4444 = vmul.f32 %v4378, %v4440
    %v4445 = vadd.f32 %v4441, %v4443
    %v4446 = vadd.f32 %v4442, %v4444
    %v4447 = vtanh.pop %v4445
    %v4448 = vtanh.pop %v4446
    %v4449 = vmul.f32 %v4423, %v4447
    %v4450 = vmul.f32 %v4438, %v4448
    %s4451 = smul.u32 %s841, 1
    %s4452 = sshll.u32 %s4451, 4
    %4453 = dma.done %s83, %s4452
    %s4454 = smul.u32 4, 16
    %s4455 = smul.u32 %s4454, 1
    %s4456 = sshll.u32 %s4455, 4
    %4457 = dma.done %s97, %s4456
    %v4458 = vpack.c.bf16 %v4449, %v4449
    %v4459 = vpack.c.bf16 %v4450, %v4450
    %v4460 = vld [vmem:[#allocation4] sm:$0xf]
    %v4461 = vld [vmem:[#allocation4 + $0x4] sm:$0xf]
    %v4462 = vld [vmem:[#allocation4 + $0x8] sm:$0xf]
    %v4463 = vld [vmem:[#allocation4 + $0xc] sm:$0xf]
    %v4464 = vld [vmem:[#allocation4 + $0x10] sm:$0xf]
    %v4465 = vld [vmem:[#allocation4 + $0x14] sm:$0xf]
    %v4466 = vld [vmem:[#allocation4 + $0x18] sm:$0xf]
    %v4467 = vld [vmem:[#allocation4 + $0x1c] sm:$0xf]
    %v4468 = vld [vmem:[#allocation4 + $0x20] sm:$0xf]
    %v4469 = vld [vmem:[#allocation4 + $0x24] sm:$0xf]
    %v4470 = vld [vmem:[#allocation4 + $0x28] sm:$0xf]
    %v4471 = vld [vmem:[#allocation4 + $0x2c] sm:$0xf]
    %v4472 = vld [vmem:[#allocation4 + $0x30] sm:$0xf]
    %v4473 = vld [vmem:[#allocation4 + $0x34] sm:$0xf]
    %v4474 = vld [vmem:[#allocation4 + $0x38] sm:$0xf]
    %v4475 = vld [vmem:[#allocation4 + $0x3c] sm:$0xf]
    %v4476 = vld [vmem:[#allocation4 + $0x40] sm:$0xf]
    %v4477 = vld [vmem:[#allocation4 + $0x44] sm:$0xf]
    %v4478 = vld [vmem:[#allocation4 + $0x48] sm:$0xf]
    %v4479 = vld [vmem:[#allocation4 + $0x4c] sm:$0xf]
    %v4480 = vld [vmem:[#allocation4 + $0x50] sm:$0xf]
    %v4481 = vld [vmem:[#allocation4 + $0x54] sm:$0xf]
    %v4482 = vld [vmem:[#allocation4 + $0x58] sm:$0xf]
    %v4483 = vld [vmem:[#allocation4 + $0x5c] sm:$0xf]
    %v4484 = vld [vmem:[#allocation4 + $0x60] sm:$0xf]
    %v4485 = vld [vmem:[#allocation4 + $0x64] sm:$0xf]
    %v4486 = vld [vmem:[#allocation4 + $0x68] sm:$0xf]
    %v4487 = vld [vmem:[#allocation4 + $0x6c] sm:$0xf]
    %v4488 = vld [vmem:[#allocation4 + $0x70] sm:$0xf]
    %v4489 = vld [vmem:[#allocation4 + $0x74] sm:$0xf]
    %v4490 = vld [vmem:[#allocation4 + $0x78] sm:$0xf]
    %v4491 = vld [vmem:[#allocation4 + $0x7c] sm:$0xf]
    %v4492 = vld [vmem:[%s3] sm:$0x1]
    %v4494 = vperm.slane %v4492, 0
    %v4528 = vunpack.c.l.b16 %v4460
    %v4529 = vunpack.c.l.b16 %v4461
    %v4530 = vunpack.c.l.b16 %v4462
    %v4531 = vunpack.c.l.b16 %v4463
    %v4532 = vunpack.c.l.b16 %v4464
    %v4533 = vunpack.c.l.b16 %v4465
    %v4534 = vunpack.c.l.b16 %v4466
    %v4535 = vunpack.c.l.b16 %v4467
    %v4536 = vunpack.c.l.b16 %v4468
    %v4537 = vunpack.c.l.b16 %v4469
    %v4538 = vunpack.c.l.b16 %v4470
    %v4539 = vunpack.c.l.b16 %v4471
    %v4540 = vunpack.c.l.b16 %v4472
    %v4541 = vunpack.c.l.b16 %v4473
    %v4542 = vunpack.c.l.b16 %v4474
    %v4543 = vunpack.c.l.b16 %v4475
    %v4544 = vunpack.c.l.b16 %v4476
    %v4545 = vunpack.c.l.b16 %v4477
    %v4546 = vunpack.c.l.b16 %v4478
    %v4547 = vunpack.c.l.b16 %v4479
    %v4548 = vunpack.c.l.b16 %v4480
    %v4549 = vunpack.c.l.b16 %v4481
    %v4550 = vunpack.c.l.b16 %v4482
    %v4551 = vunpack.c.l.b16 %v4483
    %v4552 = vunpack.c.l.b16 %v4484
    %v4553 = vunpack.c.l.b16 %v4485
    %v4554 = vunpack.c.l.b16 %v4486
    %v4555 = vunpack.c.l.b16 %v4487
    %v4556 = vunpack.c.l.b16 %v4488
    %v4557 = vunpack.c.l.b16 %v4489
    %v4558 = vunpack.c.l.b16 %v4490
    %v4559 = vunpack.c.l.b16 %v4491
    %v4560 = vpack.c.b16 %v4529, %v4528
    %v4561 = vpack.c.b16 %v4531, %v4530
    %v4562 = vpack.c.b16 %v4533, %v4532
    %v4563 = vpack.c.b16 %v4535, %v4534
    %v4564 = vpack.c.b16 %v4537, %v4536
    %v4565 = vpack.c.b16 %v4539, %v4538
    %v4566 = vpack.c.b16 %v4541, %v4540
    %v4567 = vpack.c.b16 %v4543, %v4542
    %v4568 = vpack.c.b16 %v4545, %v4544
    %v4569 = vpack.c.b16 %v4547, %v4546
    %v4570 = vpack.c.b16 %v4549, %v4548
    %v4571 = vpack.c.b16 %v4551, %v4550
    %v4572 = vpack.c.b16 %v4553, %v4552
    %v4573 = vpack.c.b16 %v4555, %v4554
    %v4574 = vpack.c.b16 %v4557, %v4556
    %v4575 = vpack.c.b16 %v4559, %v4558
    %4592 = vmatpush.bf16.msra.mxu0 %v4567
    %4593 = vmatpush.bf16.msra.mxu0 %v4566
    %4594 = vmatpush.bf16.msra.mxu0 %v4565
    %4595 = vmatpush.bf16.msra.mxu0 %v4564
    %4596 = vmatpush.bf16.msra.mxu0 %v4563
    %4597 = vmatpush.bf16.msra.mxu0 %v4562
    %4598 = vmatpush.bf16.msra.mxu0 %v4561
    %4599 = vmatpush.bf16.msra.mxu0 %v4560
    %4600 = vmatmul.bf16.gmra.mxu0 %v4458
    %v4601 = vpop.f32.mrf.mxu0
    %v4602 = vadd.f32 %v4494, %v4601
    %v4603 = vpop.f32.mrf.mxu0
    %4604 = vdwg.mxu0
    %4605 = vmatpush.bf16.msra.mxu0 %v4575
    %4606 = vmatpush.bf16.msra.mxu0 %v4574
    %4607 = vmatpush.bf16.msra.mxu0 %v4573
    %4608 = vmatpush.bf16.msra.mxu0 %v4572
    %4609 = vmatpush.bf16.msra.mxu0 %v4571
    %4610 = vmatpush.bf16.msra.mxu0 %v4570
    %4611 = vmatpush.bf16.msra.mxu0 %v4569
    %4612 = vmatpush.bf16.msra.mxu0 %v4568
    %4613 = vmatmul.bf16.gmra.mxu0 %v4459
    %v4614 = vpop.f32.mrf.mxu0
    %v4615 = vadd.f32 %v4602, %v4614
    %v4616 = vpop.f32.mrf.mxu0
    %4617 = vdwg.mxu0
    %v4618 = vmax.f32 %v4615, 0.0
    %v4619 = vpack.c.bf16 %v4618, %v4618
    %v4620 = vld [vmem:[#allocation5] sm:$0xf]
    %v4621 = vld [vmem:[#allocation5 + $0x4] sm:$0xf]
    %v4622 = vld [vmem:[#allocation5 + $0x8] sm:$0xf]
    %v4623 = vld [vmem:[#allocation5 + $0xc] sm:$0xf]
    %v4624 = vld [vmem:[#allocation5 + $0x10] sm:$0xf]
    %v4625 = vld [vmem:[#allocation5 + $0x14] sm:$0xf]
    %v4626 = vld [vmem:[#allocation5 + $0x18] sm:$0xf]
    %v4627 = vld [vmem:[#allocation5 + $0x1c] sm:$0xf]
    %v4628 = vld [vmem:[#allocation5 + $0x20] sm:$0xf]
    %v4629 = vld [vmem:[#allocation5 + $0x24] sm:$0xf]
    %v4630 = vld [vmem:[#allocation5 + $0x28] sm:$0xf]
    %v4631 = vld [vmem:[#allocation5 + $0x2c] sm:$0xf]
    %v4632 = vld [vmem:[#allocation5 + $0x30] sm:$0xf]
    %v4633 = vld [vmem:[#allocation5 + $0x34] sm:$0xf]
    %v4634 = vld [vmem:[#allocation5 + $0x38] sm:$0xf]
    %v4635 = vld [vmem:[#allocation5 + $0x3c] sm:$0xf]
    %v4636 = vld [vmem:[%s4] sm:$0x1]
    %v4638 = vperm.slane %v4636, 0
    %v4656 = vunpack.c.l.b16 %v4620
    %v4657 = vunpack.c.l.b16 %v4621
    %v4658 = vunpack.c.l.b16 %v4622
    %v4659 = vunpack.c.l.b16 %v4623
    %v4660 = vunpack.c.l.b16 %v4624
    %v4661 = vunpack.c.l.b16 %v4625
    %v4662 = vunpack.c.l.b16 %v4626
    %v4663 = vunpack.c.l.b16 %v4627
    %v4664 = vunpack.c.l.b16 %v4628
    %v4665 = vunpack.c.l.b16 %v4629
    %v4666 = vunpack.c.l.b16 %v4630
    %v4667 = vunpack.c.l.b16 %v4631
    %v4668 = vunpack.c.l.b16 %v4632
    %v4669 = vunpack.c.l.b16 %v4633
    %v4670 = vunpack.c.l.b16 %v4634
    %v4671 = vunpack.c.l.b16 %v4635
    %v4672 = vpack.c.b16 %v4657, %v4656
    %v4673 = vpack.c.b16 %v4659, %v4658
    %v4674 = vpack.c.b16 %v4661, %v4660
    %v4675 = vpack.c.b16 %v4663, %v4662
    %v4676 = vpack.c.b16 %v4665, %v4664
    %v4677 = vpack.c.b16 %v4667, %v4666
    %v4678 = vpack.c.b16 %v4669, %v4668
    %v4679 = vpack.c.b16 %v4671, %v4670
    %4688 = vmatpush.bf16.msra.mxu0 %v4679
    %4689 = vmatpush.bf16.msra.mxu0 %v4678
    %4690 = vmatpush.bf16.msra.mxu0 %v4677
    %4691 = vmatpush.bf16.msra.mxu0 %v4676
    %4692 = vmatpush.bf16.msra.mxu0 %v4675
    %4693 = vmatpush.bf16.msra.mxu0 %v4674
    %4694 = vmatpush.bf16.msra.mxu0 %v4673
    %4695 = vmatpush.bf16.msra.mxu0 %v4672
    %4696 = vmatmul.bf16.gmra.mxu0 %v4619
    %v4697 = vpop.f32.mrf.mxu0
    %v4698 = vadd.f32 %v4638, %v4697
    %v4699 = vpop.f32.mrf.mxu0
    %4700 = vdwg.mxu0
    %4701 = vst [vmem:[#allocation13] sm:$0xff] %v4698
    // Predicated region
    $region46: #{tpu_custom_call.1} parent=1 // pred_check
      _
    $region47: #{tpu_custom_call.1} parent=1 // pred_check_branch
      %4703 = sbr.rel (0) target = $region49
    $region48: #{tpu_custom_call.1} parent=1 // pred_region
      %4705 = vsyncadd [#allocation9], 0
      %s4707 = sshll.u32 [#allocation13], 4
      %s4708 = int_to_ptr.vmem [resolvable:$true] %s4707
      %s4709 = sshll.u32 %s8, 4
      %s4710 = int_to_ptr.hbm [resolvable:$true] %s4709
      %4712 = dma.vmem_to_hbm [thread:$0]  %s4708, 128, %s4710, [#allocation9]
    $region49: #{tpu_custom_call.1} parent=1 // pred_fallthru
      _
    // Predicated region
    $region50: #{tpu_custom_call.1} parent=1 // pred_check
      _
    $region51: #{tpu_custom_call.1} parent=1 // pred_check_branch
      %4714 = sbr.rel (0) target = $region53
    $region52: #{tpu_custom_call.1} parent=1 // pred_region
      %4716 = dma.done [#allocation9], 128
    $region53: #{tpu_custom_call.1} parent=1 // pred_fallthru
      _
    %4717 = vsyncpa [#allocation8], 1
    %4718 = vsyncpa [#allocation11], 1
    %4719 = vsyncpa [#allocation9], 1
  %4720 = vsyncmov [#allocation6]
  %s4721 = vpop.sfrf %4720
  %p4722 = scmp.eq.s32.totalorder %s4721, 0
  %p4723 = pneg %p4722
  %4725 = shalt.err (%p4723)
  %s4726 = scalar_lea.sflag [#allocation6], 1
  %4727 = vsyncmov %s4726
  %s4728 = vpop.sfrf %4727
  %p4729 = scmp.eq.s32.totalorder %s4728, 0
  %p4730 = pneg %p4729
  %4732 = shalt.err (%p4730)
  %s4733 = scalar_lea.sflag [#allocation6], 2
  %4734 = vsyncmov %s4733
  %s4735 = vpop.sfrf %4734
  %p4736 = scmp.eq.s32.totalorder %s4735, 0
  %p4737 = pneg %p4736
  %4739 = shalt.err (%p4737)

</llo_original>
